<compile_context>
chip_gen: v5e
topology: v5e:2x2
jax: 0.10.0
libtpu: 0.0.40
codegen_flags: <defaults>
</compile_context>

<pallas_src>
import functools
import math

import numpy as np
import jax
import jax.numpy as jnp
from jax.experimental import pallas as pl
from jax.experimental.pallas import tpu as pltpu


def _mish_kernel(x):
    # Mish(x) = x * tanh(softplus(x)) = x * (e^2 + 2e) / (e^2 + 2e + 2), e = exp(x).
    # 1 exp + 1 approx reciprocal on the EUP instead of exp + log1p + tanh.
    e = jnp.exp(jnp.minimum(x, 20.0))          # clamp; mish(x) == x there anyway
    n = e * (e + 2.0)
    return x * n * pl.reciprocal(n + 2.0, approx=True)


def _mish_ref(x):
    # Reference form (matches PyTorch nn.Mish numerically).
    sp = jnp.maximum(x, 0.0) + jnp.log1p(jnp.exp(-jnp.abs(x)))
    return x * jnp.tanh(sp)


# ---------------------------------------------------------------------------
# Single fused kernel: conv branches + Mish + max-pool + flatten + FNN.
# ---------------------------------------------------------------------------
def _textcnn_kernel(x_ref, cw_ref, cb_ref,
                    w1_ref, b1_ref, w2_ref, b2_ref,
                    w3_ref, b3_ref, w4_ref, b4_ref, o_ref, *, L, k, P):
    # x_ref : (TB, Lp, C)   zero-padded (shared pad for max filter size)
    # cw_ref: (T, C, F_tot) stacked per-tap weights, all branches side by side
    # cb_ref: (1, F_tot)    concatenated conv biases (f32)
    # wN/bN : (in, out) / (1, out)  FC weights (FC1 rows pre-permuted on host)
    # o_ref : (TB, out_dim)
    TB = x_ref.shape[0]
    T, C, F_tot = cw_ref.shape
    cd = cw_ref.dtype

    # --- Conv1d('same'), all filter sizes fused: one batched matmul per tap ---
    acc = jnp.zeros((TB, L, F_tot), jnp.float32)
    for t in range(T):                                     # static, small (fs_max)
        xs = x_ref[:, t:t + L, :].astype(cd)               # (TB, L, C)
        wt = jnp.broadcast_to(cw_ref[t][None], (TB, C, F_tot))
        acc = acc + jnp.einsum('blc,bcf->blf', xs, wt,
                               preferred_element_type=jnp.float32)
    y = _mish_kernel(acc + cb_ref[...])                    # (TB, L, F_tot), f32

    # --- max_pool1d(kernel=k, stride=k) + flatten, lane-dense, all in VMEM ---
    feats = [jnp.max(y[:, p * k:(p + 1) * k, :], axis=1) for p in range(P)]
    h = jnp.concatenate(feats, axis=-1)                    # (TB, P*F_tot)

    # --- FNN: 4 x (Linear -> Mish); dropout / FAN are identity at inference ---
    for w_ref, b_ref in ((w1_ref, b1_ref), (w2_ref, b2_ref),
                         (w3_ref, b3_ref), (w4_ref, b4_ref)):
        z = jnp.dot(h.astype(w_ref.dtype), w_ref[...],
                    preferred_element_type=jnp.float32) + b_ref[...]
        h = _mish_kernel(z)
    o_ref[...] = h.astype(o_ref.dtype)


def textcnn_cls_forward(data, conv_weights, conv_biases, fc_weights, fc_biases,
                        *, batch_tile=8, compute_dtype=jnp.float32):
    """data: (B, L, C_in) channels-last; weights in PyTorch layouts. -> (B, 64)."""
    B, L, C = data.shape
    assert len(fc_weights) == 4 and len(fc_biases) == 4
    k = L // 10                       # PyTorch: math.ceil(conv.shape[2] // 10)
    assert k >= 1, "sequence length must be >= 10"
    P = L // k                        # pooled length (module layout assumes 10)

    fss = [int(w.shape[2]) for w in conv_weights]
    Fs = [int(w.shape[0]) for w in conv_weights]
    F_tot = sum(Fs)
    fs_max = max(fss)
    pad_left = (fs_max - 1) // 2
    pad_right = fs_max - 1 - pad_left
    Lp = L + fs_max - 1

    # Pad ONCE (shared across all filter sizes; per-branch 'same' offsets are
    # folded into the tap positions of the stacked weight below).
    x_pad = jnp.pad(data.astype(compute_dtype),
                    ((0, 0), (pad_left, pad_right), (0, 0)))

    # Stack all branches into one (fs_max, C, F_tot) RHS; a branch with filter
    # size fs occupies global taps [pad_left-(fs-1)//2, ...+fs), rest is zero.
    W_conv = jnp.zeros((fs_max, C, F_tot), compute_dtype)
    col = 0
    for w in conv_weights:
        nf, c_in, fs = w.shape
        assert c_in == C
        off = pad_left - (fs - 1) // 2
        W_conv = W_conv.at[off:off + fs, :, col:col + nf].set(
            jnp.transpose(w, (2, 1, 0)).astype(compute_dtype))   # (fs, C, F)
        col += nf
    b_conv = jnp.concatenate([jnp.asarray(b) for b in conv_biases]
                             ).reshape(1, F_tot).astype(jnp.float32)

    # FC weights -> (in, out); permute FC1 rows so it consumes the kernel's
    # natural (position-major) flatten order -> no runtime transpose of the
    # pooled features.  PyTorch order: branch-major, filter-major, pos-minor.
    f_in = P * F_tot
    assert fc_weights[0].shape[1] == f_in, (fc_weights[0].shape, f_in)
    col_off = np.cumsum([0] + Fs[:-1])
    torch_base = np.cumsum([0] + [fb * P for fb in Fs[:-1]])
    perm = np.zeros(f_in, dtype=np.int32)
    for p in range(P):
        for bi, fb in enumerate(Fs):
            for f in range(fb):
                perm[p * F_tot + col_off[bi] + f] = torch_base[bi] + f * P + p
    fc_w = [jnp.transpose(w).astype(compute_dtype) for w in fc_weights]
    fc_w[0] = fc_w[0][perm]
    fc_b = [jnp.asarray(b).reshape(1, -1).astype(jnp.float32) for b in fc_biases]
    out_dim = fc_w[-1].shape[1]

    # Batch tile: a multiple of 8 (or the whole batch) keeps stores aligned.
    TB = B if B <= batch_tile else batch_tile
    grid = (pl.cdiv(B, TB),)

    in_specs = [pl.BlockSpec((TB, Lp, C), lambda i: (i, 0, 0)),   # per-tile input
                pl.BlockSpec(W_conv.shape, lambda i: (0, 0, 0)),  # resident
                pl.BlockSpec(b_conv.shape, lambda i: (0, 0))]     # resident
    args = [x_pad, W_conv, b_conv]
    for w, b in zip(fc_w, fc_b):
        in_specs.append(pl.BlockSpec(w.shape, lambda i: (0, 0)))  # resident
        in_specs.append(pl.BlockSpec(b.shape, lambda i: (0, 0)))  # resident
        args.append(w)
        args.append(b)

    kernel = functools.partial(_textcnn_kernel, L=L, k=k, P=P)
    return pl.pallas_call(
        kernel,
        out_shape=jax.ShapeDtypeStruct((B, out_dim), data.dtype),
        grid=grid,
        in_specs=in_specs,
        out_specs=pl.BlockSpec((TB, out_dim), lambda i: (i, 0)),
        compiler_params=pltpu.CompilerParams(
            dimension_semantics=("parallel",)),
    )(*args)


# ---------------------------------------------------------------------------
# Pure-JAX reference (replicates the PyTorch math; dropout/FAN = identity).
# ---------------------------------------------------------------------------
def _reference_forward(data, conv_weights, conv_biases, fc_weights, fc_biases):
    B, L, _ = data.shape
    embedded = jnp.transpose(data, (0, 2, 1))                # (B, C, L)
    feats = []
    for w, b in zip(conv_weights, conv_biases):
        n_f, _, fs = w.shape
        left = (fs - 1) // 2
        right = (fs - 1) - left
        xp = jnp.pad(embedded, ((0, 0), (0, 0), (left, right)))
        conv = jax.lax.conv_general_dilated(
            xp, w, window_strides=(1,), padding="VALID",
            dimension_numbers=("NCH", "OIH", "NCH"),
            precision=jax.lax.Precision.HIGHEST)
        conv = _mish_ref(conv + b[None, :, None])
        k = L // 10
        P = L // k
        pooled = conv[:, :, :P * k].reshape(B, n_f, P, k).max(axis=3)
        feats.append(pooled.reshape(B, n_f * P))
    h = jnp.concatenate(feats, axis=1)
    for w, b in zip(fc_weights, fc_biases):
        h = _mish_ref(jnp.dot(h, w.T, precision=jax.lax.Precision.HIGHEST) + b)
    return h


if __name__ == "__main__":
    key = jax.random.PRNGKey(0)
    # Small shapes consistent with the module (real model uses C_in=768).
    B, L, C_in = 2, 20, 16
    n_filters = 8
    filter_sizes = (3, 5)
    pooled_len = 10
    f_in = len(filter_sizes) * n_filters * pooled_len        # 160
    fc_dims = [(f_in, 1024), (1024, 512), (512, 256), (256, 64)]

    keys = jax.random.split(key, 1 + 2 * len(filter_sizes) + 2 * len(fc_dims))
    ki = iter(range(len(keys)))

    data = jax.random.normal(keys[next(ki)], (B, L, C_in), jnp.float32)

    # Non-trivial random weights + nonzero biases (catches transpose/perm bugs).
    conv_ws, conv_bs = [], []
    for fs in filter_sizes:
        scale = 1.0 / math.sqrt(C_in * fs)
        conv_ws.append(scale * jax.random.normal(
            keys[next(ki)], (n_filters, C_in, fs), jnp.float32))
        conv_bs.append(0.1 * jax.random.normal(
            keys[next(ki)], (n_filters,), jnp.float32))

    fc_ws, fc_bs = [], []
    for d_in, d_out in fc_dims:
        scale = 1.0 / math.sqrt(d_in)
        fc_ws.append(scale * jax.random.normal(
            keys[next(ki)], (d_out, d_in), jnp.float32))
        fc_bs.append(0.1 * jax.random.normal(
            keys[next(ki)], (d_out,), jnp.float32))

    out = jax.jit(textcnn_cls_forward)(data, conv_ws, conv_bs, fc_ws, fc_bs)
    out = jax.block_until_ready(out)

    ref = jax.block_until_ready(
        _reference_forward(data, conv_ws, conv_bs, fc_ws, fc_bs))

    assert out.shape == (B, 64), out.shape
    max_err = float(jnp.max(jnp.abs(out - ref)))
    assert jnp.allclose(out, ref, atol=2e-2, rtol=2e-2), f"mismatch, max_err={max_err}"

    print("KERNEL_OK")
</pallas_src>

<mosaic_0001>
module attributes {stable_mosaic.version = 11 : i64} {
  func.func @_textcnn_kernel(%arg0: i32, %arg1: memref<2x24x16xf32, #tpu.memory_space<vmem>>, %arg2: memref<5x16x16xf32, #tpu.memory_space<vmem>>, %arg3: memref<1x16xf32, #tpu.memory_space<vmem>>, %arg4: memref<160x1024xf32, #tpu.memory_space<vmem>>, %arg5: memref<1x1024xf32, #tpu.memory_space<vmem>>, %arg6: memref<1024x512xf32, #tpu.memory_space<vmem>>, %arg7: memref<1x512xf32, #tpu.memory_space<vmem>>, %arg8: memref<512x256xf32, #tpu.memory_space<vmem>>, %arg9: memref<1x256xf32, #tpu.memory_space<vmem>>, %arg10: memref<256x64xf32, #tpu.memory_space<vmem>>, %arg11: memref<1x64xf32, #tpu.memory_space<vmem>>, %arg12: memref<2x64xf32, #tpu.memory_space<vmem>>) attributes {dimension_semantics = [#tpu.dimension_semantics<parallel>], iteration_bounds = array<i64: 1>, scalar_prefetch = 0 : i64, scratch_operands = 0 : i64, tpu.core_type = #tpu.core_type<tc>, window_params = [{transform_indices = @transform_0, window_bounds = array<i64: 2, 24, 16>}, {pipeline_mode = #tpu.pipeline_mode<synchronous>, transform_indices = @transform_1, window_bounds = array<i64: 5, 16, 16>}, {pipeline_mode = #tpu.pipeline_mode<synchronous>, transform_indices = @transform_2, window_bounds = array<i64: 1, 16>}, {pipeline_mode = #tpu.pipeline_mode<synchronous>, transform_indices = @transform_3, window_bounds = array<i64: 160, 1024>}, {pipeline_mode = #tpu.pipeline_mode<synchronous>, transform_indices = @transform_4, window_bounds = array<i64: 1, 1024>}, {pipeline_mode = #tpu.pipeline_mode<synchronous>, transform_indices = @transform_5, window_bounds = array<i64: 1024, 512>}, {pipeline_mode = #tpu.pipeline_mode<synchronous>, transform_indices = @transform_6, window_bounds = array<i64: 1, 512>}, {pipeline_mode = #tpu.pipeline_mode<synchronous>, transform_indices = @transform_7, window_bounds = array<i64: 512, 256>}, {pipeline_mode = #tpu.pipeline_mode<synchronous>, transform_indices = @transform_8, window_bounds = array<i64: 1, 256>}, {pipeline_mode = #tpu.pipeline_mode<synchronous>, transform_indices = @transform_9, window_bounds = array<i64: 256, 64>}, {pipeline_mode = #tpu.pipeline_mode<synchronous>, transform_indices = @transform_10, window_bounds = array<i64: 1, 64>}, {transform_indices = @transform_11, window_bounds = array<i64: 2, 64>}]} {
    %cst = arith.constant 0.000000e+00 : f32
    %0 = vector.broadcast %cst : f32 to vector<2x20x16xf32>
    %c0 = arith.constant 0 : index
    %c0_0 = arith.constant 0 : index
    %c0_1 = arith.constant 0 : index
    %1 = vector.load %arg1[%c0, %c0_0, %c0_1] : memref<2x24x16xf32, #tpu.memory_space<vmem>>, vector<2x20x16xf32>
    %c0_2 = arith.constant 0 : index
    %c0_3 = arith.constant 0 : index
    %c0_4 = arith.constant 0 : index
    %2 = vector.load %arg2[%c0_2, %c0_3, %c0_4] : memref<5x16x16xf32, #tpu.memory_space<vmem>>, vector<1x16x16xf32>
    %3 = vector.shape_cast %2 : vector<1x16x16xf32> to vector<16x16xf32>
    %4 = vector.shape_cast %3 : vector<16x16xf32> to vector<1x16x16xf32>
    %5 = vector.shape_cast %4 : vector<1x16x16xf32> to vector<1x16x16xf32>
    %6 = vector.broadcast %5 : vector<1x16x16xf32> to vector<2x16x16xf32>
    "tpu.trace_start"() <{level = 10 : i32, message = "blc,bcf->blf"}> : () -> ()
    %cst_5 = arith.constant dense<0.000000e+00> : vector<2x20x16xf32>
    %7 = tpu.matmul %1, %6, %cst_5 {dimension_numbers = #tpu.dot_dimension_numbers<[2], [1], [1], [2], [0, 0, 0, 1, 1, 2], [0], [0]>} : vector<2x20x16xf32>, vector<2x16x16xf32>, vector<2x20x16xf32> -> vector<2x20x16xf32>
    "tpu.trace_stop"() : () -> ()
    %8 = arith.addf %0, %7 : vector<2x20x16xf32>
    %c0_6 = arith.constant 0 : index
    %c1 = arith.constant 1 : index
    %c0_7 = arith.constant 0 : index
    %9 = vector.load %arg1[%c0_6, %c1, %c0_7] : memref<2x24x16xf32, #tpu.memory_space<vmem>>, vector<2x20x16xf32>
    %c1_8 = arith.constant 1 : index
    %c0_9 = arith.constant 0 : index
    %c0_10 = arith.constant 0 : index
    %10 = vector.load %arg2[%c1_8, %c0_9, %c0_10] : memref<5x16x16xf32, #tpu.memory_space<vmem>>, vector<1x16x16xf32>
    %11 = vector.shape_cast %10 : vector<1x16x16xf32> to vector<16x16xf32>
    %12 = vector.shape_cast %11 : vector<16x16xf32> to vector<1x16x16xf32>
    %13 = vector.shape_cast %12 : vector<1x16x16xf32> to vector<1x16x16xf32>
    %14 = vector.broadcast %13 : vector<1x16x16xf32> to vector<2x16x16xf32>
    "tpu.trace_start"() <{level = 10 : i32, message = "blc,bcf->blf"}> : () -> ()
    %cst_11 = arith.constant dense<0.000000e+00> : vector<2x20x16xf32>
    %15 = tpu.matmul %9, %14, %cst_11 {dimension_numbers = #tpu.dot_dimension_numbers<[2], [1], [1], [2], [0, 0, 0, 1, 1, 2], [0], [0]>} : vector<2x20x16xf32>, vector<2x16x16xf32>, vector<2x20x16xf32> -> vector<2x20x16xf32>
    "tpu.trace_stop"() : () -> ()
    %16 = arith.addf %8, %15 : vector<2x20x16xf32>
    %c0_12 = arith.constant 0 : index
    %c2 = arith.constant 2 : index
    %c0_13 = arith.constant 0 : index
    %17 = vector.load %arg1[%c0_12, %c2, %c0_13] : memref<2x24x16xf32, #tpu.memory_space<vmem>>, vector<2x20x16xf32>
    %c2_14 = arith.constant 2 : index
    %c0_15 = arith.constant 0 : index
    %c0_16 = arith.constant 0 : index
    %18 = vector.load %arg2[%c2_14, %c0_15, %c0_16] : memref<5x16x16xf32, #tpu.memory_space<vmem>>, vector<1x16x16xf32>
    %19 = vector.shape_cast %18 : vector<1x16x16xf32> to vector<16x16xf32>
    %20 = vector.shape_cast %19 : vector<16x16xf32> to vector<1x16x16xf32>
    %21 = vector.shape_cast %20 : vector<1x16x16xf32> to vector<1x16x16xf32>
    %22 = vector.broadcast %21 : vector<1x16x16xf32> to vector<2x16x16xf32>
    "tpu.trace_start"() <{level = 10 : i32, message = "blc,bcf->blf"}> : () -> ()
    %cst_17 = arith.constant dense<0.000000e+00> : vector<2x20x16xf32>
    %23 = tpu.matmul %17, %22, %cst_17 {dimension_numbers = #tpu.dot_dimension_numbers<[2], [1], [1], [2], [0, 0, 0, 1, 1, 2], [0], [0]>} : vector<2x20x16xf32>, vector<2x16x16xf32>, vector<2x20x16xf32> -> vector<2x20x16xf32>
    "tpu.trace_stop"() : () -> ()
    %24 = arith.addf %16, %23 : vector<2x20x16xf32>
    %c0_18 = arith.constant 0 : index
    %c3 = arith.constant 3 : index
    %c0_19 = arith.constant 0 : index
    %25 = vector.load %arg1[%c0_18, %c3, %c0_19] : memref<2x24x16xf32, #tpu.memory_space<vmem>>, vector<2x20x16xf32>
    %c3_20 = arith.constant 3 : index
    %c0_21 = arith.constant 0 : index
    %c0_22 = arith.constant 0 : index
    %26 = vector.load %arg2[%c3_20, %c0_21, %c0_22] : memref<5x16x16xf32, #tpu.memory_space<vmem>>, vector<1x16x16xf32>
    %27 = vector.shape_cast %26 : vector<1x16x16xf32> to vector<16x16xf32>
    %28 = vector.shape_cast %27 : vector<16x16xf32> to vector<1x16x16xf32>
    %29 = vector.shape_cast %28 : vector<1x16x16xf32> to vector<1x16x16xf32>
    %30 = vector.broadcast %29 : vector<1x16x16xf32> to vector<2x16x16xf32>
    "tpu.trace_start"() <{level = 10 : i32, message = "blc,bcf->blf"}> : () -> ()
    %cst_23 = arith.constant dense<0.000000e+00> : vector<2x20x16xf32>
    %31 = tpu.matmul %25, %30, %cst_23 {dimension_numbers = #tpu.dot_dimension_numbers<[2], [1], [1], [2], [0, 0, 0, 1, 1, 2], [0], [0]>} : vector<2x20x16xf32>, vector<2x16x16xf32>, vector<2x20x16xf32> -> vector<2x20x16xf32>
    "tpu.trace_stop"() : () -> ()
    %32 = arith.addf %24, %31 : vector<2x20x16xf32>
    %c0_24 = arith.constant 0 : index
    %c4 = arith.constant 4 : index
    %c0_25 = arith.constant 0 : index
    %33 = vector.load %arg1[%c0_24, %c4, %c0_25] : memref<2x24x16xf32, #tpu.memory_space<vmem>>, vector<2x20x16xf32>
    %c4_26 = arith.constant 4 : index
    %c0_27 = arith.constant 0 : index
    %c0_28 = arith.constant 0 : index
    %34 = vector.load %arg2[%c4_26, %c0_27, %c0_28] : memref<5x16x16xf32, #tpu.memory_space<vmem>>, vector<1x16x16xf32>
    %35 = vector.shape_cast %34 : vector<1x16x16xf32> to vector<16x16xf32>
    %36 = vector.shape_cast %35 : vector<16x16xf32> to vector<1x16x16xf32>
    %37 = vector.shape_cast %36 : vector<1x16x16xf32> to vector<1x16x16xf32>
    %38 = vector.broadcast %37 : vector<1x16x16xf32> to vector<2x16x16xf32>
    "tpu.trace_start"() <{level = 10 : i32, message = "blc,bcf->blf"}> : () -> ()
    %cst_29 = arith.constant dense<0.000000e+00> : vector<2x20x16xf32>
    %39 = tpu.matmul %33, %38, %cst_29 {dimension_numbers = #tpu.dot_dimension_numbers<[2], [1], [1], [2], [0, 0, 0, 1, 1, 2], [0], [0]>} : vector<2x20x16xf32>, vector<2x16x16xf32>, vector<2x20x16xf32> -> vector<2x20x16xf32>
    "tpu.trace_stop"() : () -> ()
    %40 = arith.addf %32, %39 : vector<2x20x16xf32>
    %c0_30 = arith.constant 0 : index
    %c0_31 = arith.constant 0 : index
    %41 = vector.load %arg3[%c0_30, %c0_31] : memref<1x16xf32, #tpu.memory_space<vmem>>, vector<1x16xf32>
    %42 = vector.shape_cast %41 : vector<1x16xf32> to vector<1x1x16xf32>
    %43 = vector.broadcast %42 : vector<1x1x16xf32> to vector<2x20x16xf32>
    %44 = arith.addf %40, %43 : vector<2x20x16xf32>
    %cst_32 = arith.constant 2.000000e+01 : f32
    %45 = vector.broadcast %cst_32 : f32 to vector<2x20x16xf32>
    %46 = arith.minimumf %44, %45 : vector<2x20x16xf32>
    %47 = math.exp %46 : vector<2x20x16xf32>
    %cst_33 = arith.constant 2.000000e+00 : f32
    %48 = vector.broadcast %cst_33 : f32 to vector<2x20x16xf32>
    %49 = arith.addf %47, %48 : vector<2x20x16xf32>
    %50 = arith.mulf %47, %49 : vector<2x20x16xf32>
    %51 = arith.mulf %44, %50 : vector<2x20x16xf32>
    %cst_34 = arith.constant 2.000000e+00 : f32
    %52 = vector.broadcast %cst_34 : f32 to vector<2x20x16xf32>
    %53 = arith.addf %50, %52 : vector<2x20x16xf32>
    %54 = tpu.reciprocal %53 {approx = true} : vector<2x20x16xf32> -> vector<2x20x16xf32>
    %55 = arith.mulf %51, %54 : vector<2x20x16xf32>
    %56 = vector.extract_strided_slice %55 {offsets = [0, 0, 0], sizes = [2, 2, 16], strides = [1, 1, 1]} : vector<2x20x16xf32> to vector<2x2x16xf32>
    %cst_35 = arith.constant dense<0xFF800000> : vector<2x16xf32>
    %57 = vector.multi_reduction <maximumf>, %56, %cst_35 [1] : vector<2x2x16xf32> to vector<2x16xf32>
    %58 = vector.extract_strided_slice %55 {offsets = [0, 2, 0], sizes = [2, 2, 16], strides = [1, 1, 1]} : vector<2x20x16xf32> to vector<2x2x16xf32>
    %cst_36 = arith.constant dense<0xFF800000> : vector<2x16xf32>
    %59 = vector.multi_reduction <maximumf>, %58, %cst_36 [1] : vector<2x2x16xf32> to vector<2x16xf32>
    %60 = vector.extract_strided_slice %55 {offsets = [0, 4, 0], sizes = [2, 2, 16], strides = [1, 1, 1]} : vector<2x20x16xf32> to vector<2x2x16xf32>
    %cst_37 = arith.constant dense<0xFF800000> : vector<2x16xf32>
    %61 = vector.multi_reduction <maximumf>, %60, %cst_37 [1] : vector<2x2x16xf32> to vector<2x16xf32>
    %62 = vector.extract_strided_slice %55 {offsets = [0, 6, 0], sizes = [2, 2, 16], strides = [1, 1, 1]} : vector<2x20x16xf32> to vector<2x2x16xf32>
    %cst_38 = arith.constant dense<0xFF800000> : vector<2x16xf32>
    %63 = vector.multi_reduction <maximumf>, %62, %cst_38 [1] : vector<2x2x16xf32> to vector<2x16xf32>
    %64 = vector.extract_strided_slice %55 {offsets = [0, 8, 0], sizes = [2, 2, 16], strides = [1, 1, 1]} : vector<2x20x16xf32> to vector<2x2x16xf32>
    %cst_39 = arith.constant dense<0xFF800000> : vector<2x16xf32>
    %65 = vector.multi_reduction <maximumf>, %64, %cst_39 [1] : vector<2x2x16xf32> to vector<2x16xf32>
    %66 = vector.extract_strided_slice %55 {offsets = [0, 10, 0], sizes = [2, 2, 16], strides = [1, 1, 1]} : vector<2x20x16xf32> to vector<2x2x16xf32>
    %cst_40 = arith.constant dense<0xFF800000> : vector<2x16xf32>
    %67 = vector.multi_reduction <maximumf>, %66, %cst_40 [1] : vector<2x2x16xf32> to vector<2x16xf32>
    %68 = vector.extract_strided_slice %55 {offsets = [0, 12, 0], sizes = [2, 2, 16], strides = [1, 1, 1]} : vector<2x20x16xf32> to vector<2x2x16xf32>
    %cst_41 = arith.constant dense<0xFF800000> : vector<2x16xf32>
    %69 = vector.multi_reduction <maximumf>, %68, %cst_41 [1] : vector<2x2x16xf32> to vector<2x16xf32>
    %70 = vector.extract_strided_slice %55 {offsets = [0, 14, 0], sizes = [2, 2, 16], strides = [1, 1, 1]} : vector<2x20x16xf32> to vector<2x2x16xf32>
    %cst_42 = arith.constant dense<0xFF800000> : vector<2x16xf32>
    %71 = vector.multi_reduction <maximumf>, %70, %cst_42 [1] : vector<2x2x16xf32> to vector<2x16xf32>
    %72 = vector.extract_strided_slice %55 {offsets = [0, 16, 0], sizes = [2, 2, 16], strides = [1, 1, 1]} : vector<2x20x16xf32> to vector<2x2x16xf32>
    %cst_43 = arith.constant dense<0xFF800000> : vector<2x16xf32>
    %73 = vector.multi_reduction <maximumf>, %72, %cst_43 [1] : vector<2x2x16xf32> to vector<2x16xf32>
    %74 = vector.extract_strided_slice %55 {offsets = [0, 18, 0], sizes = [2, 2, 16], strides = [1, 1, 1]} : vector<2x20x16xf32> to vector<2x2x16xf32>
    %cst_44 = arith.constant dense<0xFF800000> : vector<2x16xf32>
    %75 = vector.multi_reduction <maximumf>, %74, %cst_44 [1] : vector<2x2x16xf32> to vector<2x16xf32>
    %76 = tpu.concatenate %57, %59, %61, %63, %65, %67, %69, %71, %73, %75 in 1 : vector<2x16xf32>, vector<2x16xf32>, vector<2x16xf32>, vector<2x16xf32>, vector<2x16xf32>, vector<2x16xf32>, vector<2x16xf32>, vector<2x16xf32>, vector<2x16xf32>, vector<2x16xf32> -> vector<2x160xf32>
    %c0_45 = arith.constant 0 : index
    %c0_46 = arith.constant 0 : index
    %77 = vector.load %arg4[%c0_45, %c0_46] : memref<160x1024xf32, #tpu.memory_space<vmem>>, vector<160x1024xf32>
    %cst_47 = arith.constant dense<0.000000e+00> : vector<2x1024xf32>
    %78 = tpu.matmul %76, %77, %cst_47 {dimension_numbers = #tpu.dot_dimension_numbers<[1], [0], [0], [1], [0, 0, 1, 1], [], []>} : vector<2x160xf32>, vector<160x1024xf32>, vector<2x1024xf32> -> vector<2x1024xf32>
    %c0_48 = arith.constant 0 : index
    %c0_49 = arith.constant 0 : index
    %79 = vector.load %arg5[%c0_48, %c0_49] : memref<1x1024xf32, #tpu.memory_space<vmem>>, vector<1x1024xf32>
    %80 = vector.broadcast %79 : vector<1x1024xf32> to vector<2x1024xf32>
    %81 = arith.addf %78, %80 : vector<2x1024xf32>
    %cst_50 = arith.constant 2.000000e+01 : f32
    %82 = vector.broadcast %cst_50 : f32 to vector<2x1024xf32>
    %83 = arith.minimumf %81, %82 : vector<2x1024xf32>
    %84 = math.exp %83 : vector<2x1024xf32>
    %cst_51 = arith.constant 2.000000e+00 : f32
    %85 = vector.broadcast %cst_51 : f32 to vector<2x1024xf32>
    %86 = arith.addf %84, %85 : vector<2x1024xf32>
    %87 = arith.mulf %84, %86 : vector<2x1024xf32>
    %88 = arith.mulf %81, %87 : vector<2x1024xf32>
    %cst_52 = arith.constant 2.000000e+00 : f32
    %89 = vector.broadcast %cst_52 : f32 to vector<2x1024xf32>
    %90 = arith.addf %87, %89 : vector<2x1024xf32>
    %91 = tpu.reciprocal %90 {approx = true} : vector<2x1024xf32> -> vector<2x1024xf32>
    %92 = arith.mulf %88, %91 : vector<2x1024xf32>
    %c0_53 = arith.constant 0 : index
    %c0_54 = arith.constant 0 : index
    %93 = vector.load %arg6[%c0_53, %c0_54] : memref<1024x512xf32, #tpu.memory_space<vmem>>, vector<1024x512xf32>
    %cst_55 = arith.constant dense<0.000000e+00> : vector<2x512xf32>
    %94 = tpu.matmul %92, %93, %cst_55 {dimension_numbers = #tpu.dot_dimension_numbers<[1], [0], [0], [1], [0, 0, 1, 1], [], []>} : vector<2x1024xf32>, vector<1024x512xf32>, vector<2x512xf32> -> vector<2x512xf32>
    %c0_56 = arith.constant 0 : index
    %c0_57 = arith.constant 0 : index
    %95 = vector.load %arg7[%c0_56, %c0_57] : memref<1x512xf32, #tpu.memory_space<vmem>>, vector<1x512xf32>
    %96 = vector.broadcast %95 : vector<1x512xf32> to vector<2x512xf32>
    %97 = arith.addf %94, %96 : vector<2x512xf32>
    %cst_58 = arith.constant 2.000000e+01 : f32
    %98 = vector.broadcast %cst_58 : f32 to vector<2x512xf32>
    %99 = arith.minimumf %97, %98 : vector<2x512xf32>
    %100 = math.exp %99 : vector<2x512xf32>
    %cst_59 = arith.constant 2.000000e+00 : f32
    %101 = vector.broadcast %cst_59 : f32 to vector<2x512xf32>
    %102 = arith.addf %100, %101 : vector<2x512xf32>
    %103 = arith.mulf %100, %102 : vector<2x512xf32>
    %104 = arith.mulf %97, %103 : vector<2x512xf32>
    %cst_60 = arith.constant 2.000000e+00 : f32
    %105 = vector.broadcast %cst_60 : f32 to vector<2x512xf32>
    %106 = arith.addf %103, %105 : vector<2x512xf32>
    %107 = tpu.reciprocal %106 {approx = true} : vector<2x512xf32> -> vector<2x512xf32>
    %108 = arith.mulf %104, %107 : vector<2x512xf32>
    %c0_61 = arith.constant 0 : index
    %c0_62 = arith.constant 0 : index
    %109 = vector.load %arg8[%c0_61, %c0_62] : memref<512x256xf32, #tpu.memory_space<vmem>>, vector<512x256xf32>
    %cst_63 = arith.constant dense<0.000000e+00> : vector<2x256xf32>
    %110 = tpu.matmul %108, %109, %cst_63 {dimension_numbers = #tpu.dot_dimension_numbers<[1], [0], [0], [1], [0, 0, 1, 1], [], []>} : vector<2x512xf32>, vector<512x256xf32>, vector<2x256xf32> -> vector<2x256xf32>
    %c0_64 = arith.constant 0 : index
    %c0_65 = arith.constant 0 : index
    %111 = vector.load %arg9[%c0_64, %c0_65] : memref<1x256xf32, #tpu.memory_space<vmem>>, vector<1x256xf32>
    %112 = vector.broadcast %111 : vector<1x256xf32> to vector<2x256xf32>
    %113 = arith.addf %110, %112 : vector<2x256xf32>
    %cst_66 = arith.constant 2.000000e+01 : f32
    %114 = vector.broadcast %cst_66 : f32 to vector<2x256xf32>
    %115 = arith.minimumf %113, %114 : vector<2x256xf32>
    %116 = math.exp %115 : vector<2x256xf32>
    %cst_67 = arith.constant 2.000000e+00 : f32
    %117 = vector.broadcast %cst_67 : f32 to vector<2x256xf32>
    %118 = arith.addf %116, %117 : vector<2x256xf32>
    %119 = arith.mulf %116, %118 : vector<2x256xf32>
    %120 = arith.mulf %113, %119 : vector<2x256xf32>
    %cst_68 = arith.constant 2.000000e+00 : f32
    %121 = vector.broadcast %cst_68 : f32 to vector<2x256xf32>
    %122 = arith.addf %119, %121 : vector<2x256xf32>
    %123 = tpu.reciprocal %122 {approx = true} : vector<2x256xf32> -> vector<2x256xf32>
    %124 = arith.mulf %120, %123 : vector<2x256xf32>
    %c0_69 = arith.constant 0 : index
    %c0_70 = arith.constant 0 : index
    %125 = vector.load %arg10[%c0_69, %c0_70] : memref<256x64xf32, #tpu.memory_space<vmem>>, vector<256x64xf32>
    %cst_71 = arith.constant dense<0.000000e+00> : vector<2x64xf32>
    %126 = tpu.matmul %124, %125, %cst_71 {dimension_numbers = #tpu.dot_dimension_numbers<[1], [0], [0], [1], [0, 0, 1, 1], [], []>} : vector<2x256xf32>, vector<256x64xf32>, vector<2x64xf32> -> vector<2x64xf32>
    %c0_72 = arith.constant 0 : index
    %c0_73 = arith.constant 0 : index
    %127 = vector.load %arg11[%c0_72, %c0_73] : memref<1x64xf32, #tpu.memory_space<vmem>>, vector<1x64xf32>
    %128 = vector.broadcast %127 : vector<1x64xf32> to vector<2x64xf32>
    %129 = arith.addf %126, %128 : vector<2x64xf32>
    %cst_74 = arith.constant 2.000000e+01 : f32
    %130 = vector.broadcast %cst_74 : f32 to vector<2x64xf32>
    %131 = arith.minimumf %129, %130 : vector<2x64xf32>
    %132 = math.exp %131 : vector<2x64xf32>
    %cst_75 = arith.constant 2.000000e+00 : f32
    %133 = vector.broadcast %cst_75 : f32 to vector<2x64xf32>
    %134 = arith.addf %132, %133 : vector<2x64xf32>
    %135 = arith.mulf %132, %134 : vector<2x64xf32>
    %136 = arith.mulf %129, %135 : vector<2x64xf32>
    %cst_76 = arith.constant 2.000000e+00 : f32
    %137 = vector.broadcast %cst_76 : f32 to vector<2x64xf32>
    %138 = arith.addf %135, %137 : vector<2x64xf32>
    %139 = tpu.reciprocal %138 {approx = true} : vector<2x64xf32> -> vector<2x64xf32>
    %140 = arith.mulf %136, %139 : vector<2x64xf32>
    %c0_77 = arith.constant 0 : index
    %c0_78 = arith.constant 0 : index
    %141 = vector.load %arg12[%c0_77, %c0_78] : memref<2x64xf32, #tpu.memory_space<vmem>>, vector<2x64xf32>
    tpu.vector_store %arg12[%c0_77, %c0_78], %140 {strides = array<i32>} : memref<2x64xf32, #tpu.memory_space<vmem>>, vector<2x64xf32>,
    return
  }
  func.func @transform_0(%arg0: i32) -> (i32, i32, i32) {
    %c0_i32 = arith.constant 0 : i32
    %c0_i32_0 = arith.constant 0 : i32
    %c0_i32_1 = arith.constant 0 : i32
    return %arg0, %c0_i32, %c0_i32_0 : i32, i32, i32
  }
  func.func @transform_1(%arg0: i32) -> (i32, i32, i32) {
    %c0_i32 = arith.constant 0 : i32
    %c0_i32_0 = arith.constant 0 : i32
    %c0_i32_1 = arith.constant 0 : i32
    %c0_i32_2 = arith.constant 0 : i32
    return %c0_i32, %c0_i32_0, %c0_i32_1 : i32, i32, i32
  }
  func.func @transform_2(%arg0: i32) -> (i32, i32) {
    %c0_i32 = arith.constant 0 : i32
    %c0_i32_0 = arith.constant 0 : i32
    %c0_i32_1 = arith.constant 0 : i32
    return %c0_i32, %c0_i32_0 : i32, i32
  }
  func.func @transform_3(%arg0: i32) -> (i32, i32) {
    %c0_i32 = arith.constant 0 : i32
    %c0_i32_0 = arith.constant 0 : i32
    %c0_i32_1 = arith.constant 0 : i32
    return %c0_i32, %c0_i32_0 : i32, i32
  }
  func.func @transform_4(%arg0: i32) -> (i32, i32) {
    %c0_i32 = arith.constant 0 : i32
    %c0_i32_0 = arith.constant 0 : i32
    %c0_i32_1 = arith.constant 0 : i32
    return %c0_i32, %c0_i32_0 : i32, i32
  }
  func.func @transform_5(%arg0: i32) -> (i32, i32) {
    %c0_i32 = arith.constant 0 : i32
    %c0_i32_0 = arith.constant 0 : i32
    %c0_i32_1 = arith.constant 0 : i32
    return %c0_i32, %c0_i32_0 : i32, i32
  }
  func.func @transform_6(%arg0: i32) -> (i32, i32) {
    %c0_i32 = arith.constant 0 : i32
    %c0_i32_0 = arith.constant 0 : i32
    %c0_i32_1 = arith.constant 0 : i32
    return %c0_i32, %c0_i32_0 : i32, i32
  }
  func.func @transform_7(%arg0: i32) -> (i32, i32) {
    %c0_i32 = arith.constant 0 : i32
    %c0_i32_0 = arith.constant 0 : i32
    %c0_i32_1 = arith.constant 0 : i32
    return %c0_i32, %c0_i32_0 : i32, i32
  }
  func.func @transform_8(%arg0: i32) -> (i32, i32) {
    %c0_i32 = arith.constant 0 : i32
    %c0_i32_0 = arith.constant 0 : i32
    %c0_i32_1 = arith.constant 0 : i32
    return %c0_i32, %c0_i32_0 : i32, i32
  }
  func.func @transform_9(%arg0: i32) -> (i32, i32) {
    %c0_i32 = arith.constant 0 : i32
    %c0_i32_0 = arith.constant 0 : i32
    %c0_i32_1 = arith.constant 0 : i32
    return %c0_i32, %c0_i32_0 : i32, i32
  }
  func.func @transform_10(%arg0: i32) -> (i32, i32) {
    %c0_i32 = arith.constant 0 : i32
    %c0_i32_0 = arith.constant 0 : i32
    %c0_i32_1 = arith.constant 0 : i32
    return %c0_i32, %c0_i32_0 : i32, i32
  }
  func.func @transform_11(%arg0: i32) -> (i32, i32) {
    %c0_i32 = arith.constant 0 : i32
    %c0_i32_0 = arith.constant 0 : i32
    return %arg0, %c0_i32 : i32, i32
  }
}

</mosaic_0001>

<llo_original>
// kernel: textcnn_cls_forward.1
$region0: #{textcnn_cls_forward.1}
  #allocation0 [shape = 'u32[]', space=smem, size = 0x4, offset = 0x4, fixed_abs, tag = 'smem constant byte address 0x4 - core index']
  #allocation1 [shape = 'u32[72,128]{1,0:T(1,128)}', space=vmem, size = 0x9000, scoped, tag = 'internal scratch']
  %s0 = inlined_call_operand.vmem [shape: f32[2,24,16], index: 0, kind: input, shape index: {}]
  %s1 = inlined_call_operand.vmem [shape: f32[5,16,16], index: 1, kind: input, shape index: {}]
  %s2 = inlined_call_operand.vmem [shape: f32[1,16], index: 2, kind: input, shape index: {}]
  %s3 = inlined_call_operand.vmem [shape: f32[160,1024], index: 3, kind: input, shape index: {}]
  %s4 = inlined_call_operand.vmem [shape: f32[1,1024], index: 4, kind: input, shape index: {}]
  %s5 = inlined_call_operand.vmem [shape: f32[1024,512], index: 5, kind: input, shape index: {}]
  %s6 = inlined_call_operand.vmem [shape: f32[1,512], index: 6, kind: input, shape index: {}]
  %s7 = inlined_call_operand.vmem [shape: f32[512,256], index: 7, kind: input, shape index: {}]
  %s8 = inlined_call_operand.vmem [shape: f32[1,256], index: 8, kind: input, shape index: {}]
  %s9 = inlined_call_operand.vmem [shape: f32[256,64], index: 9, kind: input, shape index: {}]
  %s10 = inlined_call_operand.vmem [shape: f32[1,64], index: 10, kind: input, shape index: {}]
  %s11 = inlined_call_operand.hbm [shape: f32[2,64], index: 11, kind: output, shape index: {}]
  %s12 = sld [smem:[#allocation0]]
  $region54: #{textcnn_cls_forward.1} parent=0
    _
  %s14 = ssub.s32 1, %s12
  %s15 = scalar_select 0, %s14, %s12
  $region1: #{textcnn_cls_forward.1} parent=0
    #allocation2 [shape = 'u8[1024]{0}', space=vmem, size = 0x400, scoped, tag = 'output window, operand 0, single buffered']
    #allocation3 [shape = 's32[1]{0}', space=sflag, size = 0x4, scoped, tag = 'scoped memory for textcnn_cls_forward.1']
    %16 = vsyncpa [#allocation3], 0
    // Predicated region
    $region2: #{textcnn_cls_forward.1} parent=1 // pred_check
      _
    $region3: #{textcnn_cls_forward.1} parent=1 // pred_check_branch
      %18 = sbr.rel (0) target = $region5
    $region4: #{textcnn_cls_forward.1} parent=1 // pred_region
      _
    $region5: #{textcnn_cls_forward.1} parent=1 // pred_fallthru
      _
    // Predicated region
    $region6: #{textcnn_cls_forward.1} parent=1 // pred_check
      _
    $region7: #{textcnn_cls_forward.1} parent=1 // pred_check_branch
      %20 = sbr.rel (0) target = $region9
    $region8: #{textcnn_cls_forward.1} parent=1 // pred_region
      _
    $region9: #{textcnn_cls_forward.1} parent=1 // pred_fallthru
      _
    // Predicated region
    $region10: #{textcnn_cls_forward.1} parent=1 // pred_check
      _
    $region11: #{textcnn_cls_forward.1} parent=1 // pred_check_branch
      %22 = sbr.rel (0) target = $region13
    $region12: #{textcnn_cls_forward.1} parent=1 // pred_region
      _
    $region13: #{textcnn_cls_forward.1} parent=1 // pred_fallthru
      _
    // Predicated region
    $region14: #{textcnn_cls_forward.1} parent=1 // pred_check
      _
    $region15: #{textcnn_cls_forward.1} parent=1 // pred_check_branch
      %24 = sbr.rel (0) target = $region17
    $region16: #{textcnn_cls_forward.1} parent=1 // pred_region
      _
    $region17: #{textcnn_cls_forward.1} parent=1 // pred_fallthru
      _
    // Predicated region
    $region18: #{textcnn_cls_forward.1} parent=1 // pred_check
      _
    $region19: #{textcnn_cls_forward.1} parent=1 // pred_check_branch
      %26 = sbr.rel (0) target = $region21
    $region20: #{textcnn_cls_forward.1} parent=1 // pred_region
      _
    $region21: #{textcnn_cls_forward.1} parent=1 // pred_fallthru
      _
    // Predicated region
    $region22: #{textcnn_cls_forward.1} parent=1 // pred_check
      _
    $region23: #{textcnn_cls_forward.1} parent=1 // pred_check_branch
      %28 = sbr.rel (0) target = $region25
    $region24: #{textcnn_cls_forward.1} parent=1 // pred_region
      _
    $region25: #{textcnn_cls_forward.1} parent=1 // pred_fallthru
      _
    // Predicated region
    $region26: #{textcnn_cls_forward.1} parent=1 // pred_check
      _
    $region27: #{textcnn_cls_forward.1} parent=1 // pred_check_branch
      %30 = sbr.rel (0) target = $region29
    $region28: #{textcnn_cls_forward.1} parent=1 // pred_region
      _
    $region29: #{textcnn_cls_forward.1} parent=1 // pred_fallthru
      _
    // Predicated region
    $region30: #{textcnn_cls_forward.1} parent=1 // pred_check
      _
    $region31: #{textcnn_cls_forward.1} parent=1 // pred_check_branch
      %32 = sbr.rel (0) target = $region33
    $region32: #{textcnn_cls_forward.1} parent=1 // pred_region
      _
    $region33: #{textcnn_cls_forward.1} parent=1 // pred_fallthru
      _
    // Predicated region
    $region34: #{textcnn_cls_forward.1} parent=1 // pred_check
      _
    $region35: #{textcnn_cls_forward.1} parent=1 // pred_check_branch
      %34 = sbr.rel (0) target = $region37
    $region36: #{textcnn_cls_forward.1} parent=1 // pred_region
      _
    $region37: #{textcnn_cls_forward.1} parent=1 // pred_fallthru
      _
    // Predicated region
    $region38: #{textcnn_cls_forward.1} parent=1 // pred_check
      _
    $region39: #{textcnn_cls_forward.1} parent=1 // pred_check_branch
      %36 = sbr.rel (0) target = $region41
    $region40: #{textcnn_cls_forward.1} parent=1 // pred_region
      _
    $region41: #{textcnn_cls_forward.1} parent=1 // pred_fallthru
      _
    // Predicated region
    $region42: #{textcnn_cls_forward.1} parent=1 // pred_check
      _
    $region43: #{textcnn_cls_forward.1} parent=1 // pred_check_branch
      %38 = sbr.rel (0) target = $region45
    $region44: #{textcnn_cls_forward.1} parent=1 // pred_region
      _
    $region45: #{textcnn_cls_forward.1} parent=1 // pred_fallthru
      _
    %v39 = vld [vmem:[%s0] sm:$0xff]
    %v40 = vld [vmem:[%s0 + $0x8] sm:$0xff]
    %v41 = vld [vmem:[%s0 + $0x10] sm:$0xf]
    %v42 = vld [vmem:[%s0 + $0x18] sm:$0xff]
    %v43 = vld [vmem:[%s0 + $0x20] sm:$0xff]
    %v44 = vld [vmem:[%s0 + $0x28] sm:$0xf]
    %v45 = vld [vmem:[%s1] sm:$0xff]
    %v46 = vld [vmem:[%s1 + $0x8] sm:$0xff]
    %v47 = vld [vmem:[%s0 + $0x1] sm:$0xff]
    %v48 = vld [vmem:[%s0 + $0x9] sm:$0xff]
    %v49 = vld [vmem:[%s0 + $0x11] sm:$0xf]
    %v50 = vld [vmem:[%s0 + $0x19] sm:$0xff]
    %v51 = vld [vmem:[%s0 + $0x21] sm:$0xff]
    %v52 = vld [vmem:[%s0 + $0x29] sm:$0xf]
    %s53 = scalar_lea.vmem %s1, 16
    %v54 = vld [vmem:[%s53] sm:$0xff]
    %v55 = vld [vmem:[%s53 + $0x8] sm:$0xff]
    %vm56 = vcmask 130048
    %v58 = vsel %vm56, %v47, 0
    %v61 = vsel %vm56, %v48, 0
    %v64 = vsel %vm56, %v49, 0
    %66 = vmatpush.msra.mxu0 0.0
    %67 = vmatpush.msra.mxu0 0.0
    %68 = vmatpush.msra.mxu0 0.0
    %69 = vmatpush.msra.mxu0 0.0
    %70 = vmatpush.msra.mxu0 0.0
    %71 = vmatpush.msra.mxu0 0.0
    %72 = vmatpush.msra.mxu0 0.0
    %73 = vmatpush.msra.mxu0 0.0
    %74 = vmatpush.msra.mxu0 0.0
    %75 = vmatpush.msra.mxu0 0.0
    %76 = vmatpush.msra.mxu0 0.0
    %77 = vmatpush.msra.mxu0 0.0
    %78 = vmatpush.msra.mxu0 0.0
    %79 = vmatpush.msra.mxu0 0.0
    %80 = vmatpush.msra.mxu0 %v55
    %81 = vmatpush.msra.mxu0 %v54
    %82 = vmatmul.f32.gmra.mxu0 %v58
    %v83 = vpop.f32.mrf.mxu0
    %v84 = vadd.f32 0.0, %v83
    %85 = vmatmul.f32.gmra.mxu0 %v61
    %v86 = vpop.f32.mrf.mxu0
    %v87 = vadd.f32 0.0, %v86
    %88 = vmatmul.f32.gmra.mxu0 %v64
    %v89 = vpop.f32.mrf.mxu0
    %v90 = vadd.f32 0.0, %v89
    %91 = vdwg.mxu0
    %v93 = vsel %vm56, %v50, 0
    %v96 = vsel %vm56, %v51, 0
    %v99 = vsel %vm56, %v52, 0
    %101 = vmatpush.msra.mxu0 0.0
    %102 = vmatpush.msra.mxu0 0.0
    %103 = vmatpush.msra.mxu0 0.0
    %104 = vmatpush.msra.mxu0 0.0
    %105 = vmatpush.msra.mxu0 0.0
    %106 = vmatpush.msra.mxu0 0.0
    %107 = vmatpush.msra.mxu0 0.0
    %108 = vmatpush.msra.mxu0 0.0
    %109 = vmatpush.msra.mxu0 0.0
    %110 = vmatpush.msra.mxu0 0.0
    %111 = vmatpush.msra.mxu0 0.0
    %112 = vmatpush.msra.mxu0 0.0
    %113 = vmatpush.msra.mxu0 0.0
    %114 = vmatpush.msra.mxu0 0.0
    %115 = vmatpush.msra.mxu0 %v55
    %116 = vmatpush.msra.mxu0 %v54
    %117 = vmatmul.f32.gmra.mxu0 %v93
    %v118 = vpop.f32.mrf.mxu0
    %v119 = vadd.f32 0.0, %v118
    %120 = vmatmul.f32.gmra.mxu0 %v96
    %v121 = vpop.f32.mrf.mxu0
    %v122 = vadd.f32 0.0, %v121
    %123 = vmatmul.f32.gmra.mxu0 %v99
    %v124 = vpop.f32.mrf.mxu0
    %v125 = vadd.f32 0.0, %v124
    %126 = vdwg.mxu0
    %v128 = vsel %vm56, %v39, 0
    %v131 = vsel %vm56, %v40, 0
    %v134 = vsel %vm56, %v41, 0
    %136 = vmatpush.msra.mxu0 0.0
    %137 = vmatpush.msra.mxu0 0.0
    %138 = vmatpush.msra.mxu0 0.0
    %139 = vmatpush.msra.mxu0 0.0
    %140 = vmatpush.msra.mxu0 0.0
    %141 = vmatpush.msra.mxu0 0.0
    %142 = vmatpush.msra.mxu0 0.0
    %143 = vmatpush.msra.mxu0 0.0
    %144 = vmatpush.msra.mxu0 0.0
    %145 = vmatpush.msra.mxu0 0.0
    %146 = vmatpush.msra.mxu0 0.0
    %147 = vmatpush.msra.mxu0 0.0
    %148 = vmatpush.msra.mxu0 0.0
    %149 = vmatpush.msra.mxu0 0.0
    %150 = vmatpush.msra.mxu0 %v46
    %151 = vmatpush.msra.mxu0 %v45
    %152 = vmatmul.f32.gmra.mxu0 %v128
    %v153 = vpop.f32.mrf.mxu0
    %v154 = vadd.f32 %v84, %v153
    %155 = vmatmul.f32.gmra.mxu0 %v131
    %v156 = vpop.f32.mrf.mxu0
    %v157 = vadd.f32 %v87, %v156
    %158 = vmatmul.f32.gmra.mxu0 %v134
    %v159 = vpop.f32.mrf.mxu0
    %v160 = vadd.f32 %v90, %v159
    %161 = vdwg.mxu0
    %v163 = vsel %vm56, %v42, 0
    %v166 = vsel %vm56, %v43, 0
    %v169 = vsel %vm56, %v44, 0
    %171 = vmatpush.msra.mxu0 0.0
    %172 = vmatpush.msra.mxu0 0.0
    %173 = vmatpush.msra.mxu0 0.0
    %174 = vmatpush.msra.mxu0 0.0
    %175 = vmatpush.msra.mxu0 0.0
    %176 = vmatpush.msra.mxu0 0.0
    %177 = vmatpush.msra.mxu0 0.0
    %178 = vmatpush.msra.mxu0 0.0
    %179 = vmatpush.msra.mxu0 0.0
    %180 = vmatpush.msra.mxu0 0.0
    %181 = vmatpush.msra.mxu0 0.0
    %182 = vmatpush.msra.mxu0 0.0
    %183 = vmatpush.msra.mxu0 0.0
    %184 = vmatpush.msra.mxu0 0.0
    %185 = vmatpush.msra.mxu0 %v46
    %186 = vmatpush.msra.mxu0 %v45
    %187 = vmatmul.f32.gmra.mxu0 %v163
    %v188 = vpop.f32.mrf.mxu0
    %v189 = vadd.f32 %v119, %v188
    %190 = vmatmul.f32.gmra.mxu0 %v166
    %v191 = vpop.f32.mrf.mxu0
    %v192 = vadd.f32 %v122, %v191
    %193 = vmatmul.f32.gmra.mxu0 %v169
    %v194 = vpop.f32.mrf.mxu0
    %v195 = vadd.f32 %v125, %v194
    %196 = vdwg.mxu0
    %v197 = vld [vmem:[%s0 + $0x2] sm:$0xff]
    %v198 = vld [vmem:[%s0 + $0xa] sm:$0xff]
    %v199 = vld [vmem:[%s0 + $0x12] sm:$0xf]
    %v200 = vld [vmem:[%s0 + $0x1a] sm:$0xff]
    %v201 = vld [vmem:[%s0 + $0x22] sm:$0xff]
    %v202 = vld [vmem:[%s0 + $0x2a] sm:$0xf]
    %s203 = scalar_lea.vmem %s1, 32
    %v204 = vld [vmem:[%s203] sm:$0xff]
    %v205 = vld [vmem:[%s203 + $0x8] sm:$0xff]
    %v207 = vsel %vm56, %v197, 0
    %v210 = vsel %vm56, %v198, 0
    %v213 = vsel %vm56, %v199, 0
    %215 = vmatpush.msra.mxu0 0.0
    %216 = vmatpush.msra.mxu0 0.0
    %217 = vmatpush.msra.mxu0 0.0
    %218 = vmatpush.msra.mxu0 0.0
    %219 = vmatpush.msra.mxu0 0.0
    %220 = vmatpush.msra.mxu0 0.0
    %221 = vmatpush.msra.mxu0 0.0
    %222 = vmatpush.msra.mxu0 0.0
    %223 = vmatpush.msra.mxu0 0.0
    %224 = vmatpush.msra.mxu0 0.0
    %225 = vmatpush.msra.mxu0 0.0
    %226 = vmatpush.msra.mxu0 0.0
    %227 = vmatpush.msra.mxu0 0.0
    %228 = vmatpush.msra.mxu0 0.0
    %229 = vmatpush.msra.mxu0 %v205
    %230 = vmatpush.msra.mxu0 %v204
    %231 = vmatmul.f32.gmra.mxu0 %v207
    %v232 = vpop.f32.mrf.mxu0
    %v233 = vadd.f32 0.0, %v232
    %234 = vmatmul.f32.gmra.mxu0 %v210
    %v235 = vpop.f32.mrf.mxu0
    %v236 = vadd.f32 0.0, %v235
    %237 = vmatmul.f32.gmra.mxu0 %v213
    %v238 = vpop.f32.mrf.mxu0
    %v239 = vadd.f32 0.0, %v238
    %240 = vdwg.mxu0
    %v242 = vsel %vm56, %v200, 0
    %v245 = vsel %vm56, %v201, 0
    %v248 = vsel %vm56, %v202, 0
    %250 = vmatpush.msra.mxu0 0.0
    %251 = vmatpush.msra.mxu0 0.0
    %252 = vmatpush.msra.mxu0 0.0
    %253 = vmatpush.msra.mxu0 0.0
    %254 = vmatpush.msra.mxu0 0.0
    %255 = vmatpush.msra.mxu0 0.0
    %256 = vmatpush.msra.mxu0 0.0
    %257 = vmatpush.msra.mxu0 0.0
    %258 = vmatpush.msra.mxu0 0.0
    %259 = vmatpush.msra.mxu0 0.0
    %260 = vmatpush.msra.mxu0 0.0
    %261 = vmatpush.msra.mxu0 0.0
    %262 = vmatpush.msra.mxu0 0.0
    %263 = vmatpush.msra.mxu0 0.0
    %264 = vmatpush.msra.mxu0 %v205
    %265 = vmatpush.msra.mxu0 %v204
    %266 = vmatmul.f32.gmra.mxu0 %v242
    %v267 = vpop.f32.mrf.mxu0
    %v268 = vadd.f32 0.0, %v267
    %269 = vmatmul.f32.gmra.mxu0 %v245
    %v270 = vpop.f32.mrf.mxu0
    %v271 = vadd.f32 0.0, %v270
    %272 = vmatmul.f32.gmra.mxu0 %v248
    %v273 = vpop.f32.mrf.mxu0
    %v274 = vadd.f32 0.0, %v273
    %275 = vdwg.mxu0
    %v276 = vadd.f32 %v154, %v233
    %v277 = vadd.f32 %v157, %v236
    %v278 = vadd.f32 %v160, %v239
    %v279 = vadd.f32 %v189, %v268
    %v280 = vadd.f32 %v192, %v271
    %v281 = vadd.f32 %v195, %v274
    %v282 = vld [vmem:[%s0 + $0x3] sm:$0xff]
    %v283 = vld [vmem:[%s0 + $0xb] sm:$0xff]
    %v284 = vld [vmem:[%s0 + $0x13] sm:$0xf]
    %v285 = vld [vmem:[%s0 + $0x1b] sm:$0xff]
    %v286 = vld [vmem:[%s0 + $0x23] sm:$0xff]
    %v287 = vld [vmem:[%s0 + $0x2b] sm:$0xf]
    %s288 = scalar_lea.vmem %s1, 48
    %v289 = vld [vmem:[%s288] sm:$0xff]
    %v290 = vld [vmem:[%s288 + $0x8] sm:$0xff]
    %v292 = vsel %vm56, %v282, 0
    %v295 = vsel %vm56, %v283, 0
    %v298 = vsel %vm56, %v284, 0
    %300 = vmatpush.msra.mxu0 0.0
    %301 = vmatpush.msra.mxu0 0.0
    %302 = vmatpush.msra.mxu0 0.0
    %303 = vmatpush.msra.mxu0 0.0
    %304 = vmatpush.msra.mxu0 0.0
    %305 = vmatpush.msra.mxu0 0.0
    %306 = vmatpush.msra.mxu0 0.0
    %307 = vmatpush.msra.mxu0 0.0
    %308 = vmatpush.msra.mxu0 0.0
    %309 = vmatpush.msra.mxu0 0.0
    %310 = vmatpush.msra.mxu0 0.0
    %311 = vmatpush.msra.mxu0 0.0
    %312 = vmatpush.msra.mxu0 0.0
    %313 = vmatpush.msra.mxu0 0.0
    %314 = vmatpush.msra.mxu0 %v290
    %315 = vmatpush.msra.mxu0 %v289
    %316 = vmatmul.f32.gmra.mxu0 %v292
    %v317 = vpop.f32.mrf.mxu0
    %v318 = vadd.f32 0.0, %v317
    %319 = vmatmul.f32.gmra.mxu0 %v295
    %v320 = vpop.f32.mrf.mxu0
    %v321 = vadd.f32 0.0, %v320
    %322 = vmatmul.f32.gmra.mxu0 %v298
    %v323 = vpop.f32.mrf.mxu0
    %v324 = vadd.f32 0.0, %v323
    %325 = vdwg.mxu0
    %v327 = vsel %vm56, %v285, 0
    %v330 = vsel %vm56, %v286, 0
    %v333 = vsel %vm56, %v287, 0
    %335 = vmatpush.msra.mxu0 0.0
    %336 = vmatpush.msra.mxu0 0.0
    %337 = vmatpush.msra.mxu0 0.0
    %338 = vmatpush.msra.mxu0 0.0
    %339 = vmatpush.msra.mxu0 0.0
    %340 = vmatpush.msra.mxu0 0.0
    %341 = vmatpush.msra.mxu0 0.0
    %342 = vmatpush.msra.mxu0 0.0
    %343 = vmatpush.msra.mxu0 0.0
    %344 = vmatpush.msra.mxu0 0.0
    %345 = vmatpush.msra.mxu0 0.0
    %346 = vmatpush.msra.mxu0 0.0
    %347 = vmatpush.msra.mxu0 0.0
    %348 = vmatpush.msra.mxu0 0.0
    %349 = vmatpush.msra.mxu0 %v290
    %350 = vmatpush.msra.mxu0 %v289
    %351 = vmatmul.f32.gmra.mxu0 %v327
    %v352 = vpop.f32.mrf.mxu0
    %v353 = vadd.f32 0.0, %v352
    %354 = vmatmul.f32.gmra.mxu0 %v330
    %v355 = vpop.f32.mrf.mxu0
    %v356 = vadd.f32 0.0, %v355
    %357 = vmatmul.f32.gmra.mxu0 %v333
    %v358 = vpop.f32.mrf.mxu0
    %v359 = vadd.f32 0.0, %v358
    %360 = vdwg.mxu0
    %v361 = vadd.f32 %v276, %v318
    %v362 = vadd.f32 %v277, %v321
    %v363 = vadd.f32 %v278, %v324
    %v364 = vadd.f32 %v279, %v353
    %v365 = vadd.f32 %v280, %v356
    %v366 = vadd.f32 %v281, %v359
    %v367 = vld [vmem:[%s0 + $0x4] sm:$0xff]
    %v368 = vld [vmem:[%s0 + $0xc] sm:$0xff]
    %v369 = vld [vmem:[%s0 + $0x14] sm:$0xf]
    %v370 = vld [vmem:[%s0 + $0x1c] sm:$0xff]
    %v371 = vld [vmem:[%s0 + $0x24] sm:$0xff]
    %v372 = vld [vmem:[%s0 + $0x2c] sm:$0xf]
    %s373 = scalar_lea.vmem %s1, 64
    %v374 = vld [vmem:[%s373] sm:$0xff]
    %v375 = vld [vmem:[%s373 + $0x8] sm:$0xff]
    %v377 = vsel %vm56, %v367, 0
    %v380 = vsel %vm56, %v368, 0
    %v383 = vsel %vm56, %v369, 0
    %385 = vmatpush.msra.mxu0 0.0
    %386 = vmatpush.msra.mxu0 0.0
    %387 = vmatpush.msra.mxu0 0.0
    %388 = vmatpush.msra.mxu0 0.0
    %389 = vmatpush.msra.mxu0 0.0
    %390 = vmatpush.msra.mxu0 0.0
    %391 = vmatpush.msra.mxu0 0.0
    %392 = vmatpush.msra.mxu0 0.0
    %393 = vmatpush.msra.mxu0 0.0
    %394 = vmatpush.msra.mxu0 0.0
    %395 = vmatpush.msra.mxu0 0.0
    %396 = vmatpush.msra.mxu0 0.0
    %397 = vmatpush.msra.mxu0 0.0
    %398 = vmatpush.msra.mxu0 0.0
    %399 = vmatpush.msra.mxu0 %v375
    %400 = vmatpush.msra.mxu0 %v374
    %401 = vmatmul.f32.gmra.mxu0 %v377
    %v402 = vpop.f32.mrf.mxu0
    %v403 = vadd.f32 0.0, %v402
    %404 = vmatmul.f32.gmra.mxu0 %v380
    %v405 = vpop.f32.mrf.mxu0
    %v406 = vadd.f32 0.0, %v405
    %407 = vmatmul.f32.gmra.mxu0 %v383
    %v408 = vpop.f32.mrf.mxu0
    %v409 = vadd.f32 0.0, %v408
    %410 = vdwg.mxu0
    %v412 = vsel %vm56, %v370, 0
    %v415 = vsel %vm56, %v371, 0
    %v418 = vsel %vm56, %v372, 0
    %420 = vmatpush.msra.mxu0 0.0
    %421 = vmatpush.msra.mxu0 0.0
    %422 = vmatpush.msra.mxu0 0.0
    %423 = vmatpush.msra.mxu0 0.0
    %424 = vmatpush.msra.mxu0 0.0
    %425 = vmatpush.msra.mxu0 0.0
    %426 = vmatpush.msra.mxu0 0.0
    %427 = vmatpush.msra.mxu0 0.0
    %428 = vmatpush.msra.mxu0 0.0
    %429 = vmatpush.msra.mxu0 0.0
    %430 = vmatpush.msra.mxu0 0.0
    %431 = vmatpush.msra.mxu0 0.0
    %432 = vmatpush.msra.mxu0 0.0
    %433 = vmatpush.msra.mxu0 0.0
    %434 = vmatpush.msra.mxu0 %v375
    %435 = vmatpush.msra.mxu0 %v374
    %436 = vmatmul.f32.gmra.mxu0 %v412
    %v437 = vpop.f32.mrf.mxu0
    %v438 = vadd.f32 0.0, %v437
    %439 = vmatmul.f32.gmra.mxu0 %v415
    %v440 = vpop.f32.mrf.mxu0
    %v441 = vadd.f32 0.0, %v440
    %442 = vmatmul.f32.gmra.mxu0 %v418
    %v443 = vpop.f32.mrf.mxu0
    %v444 = vadd.f32 0.0, %v443
    %445 = vdwg.mxu0
    %v446 = vadd.f32 %v361, %v403
    %v447 = vadd.f32 %v362, %v406
    %v448 = vadd.f32 %v363, %v409
    %v449 = vadd.f32 %v364, %v438
    %v450 = vadd.f32 %v365, %v441
    %v451 = vadd.f32 %v366, %v444
    %v452 = vld [vmem:[%s2] sm:$0x1]
    %v454 = vperm.slane %v452, 0
    %v456 = vadd.f32 %v446, %v454
    %v457 = vadd.f32 %v447, %v454
    %v458 = vadd.f32 %v448, %v454
    %v459 = vadd.f32 %v449, %v454
    %v460 = vadd.f32 %v450, %v454
    %v461 = vadd.f32 %v451, %v454
    %v462 = vmin.f32 %v456, 20.0
    %v463 = vmin.f32 %v457, 20.0
    %v464 = vmin.f32 %v458, 20.0
    %v465 = vmin.f32 %v459, 20.0
    %v466 = vmin.f32 %v460, 20.0
    %v467 = vmin.f32 %v461, 20.0
    %v468 = vmul.f32 %v462, 1.442695
    %v469 = vpow.pop %v468
    %v470 = vmul.f32 %v463, 1.442695
    %v471 = vpow.pop %v470
    %v472 = vmul.f32 %v464, 1.442695
    %v473 = vpow.pop %v472
    %v474 = vmul.f32 %v465, 1.442695
    %v475 = vpow.pop %v474
    %v476 = vmul.f32 %v466, 1.442695
    %v477 = vpow.pop %v476
    %v478 = vmul.f32 %v467, 1.442695
    %v479 = vpow.pop %v478
    %v480 = vadd.f32 %v469, 2.0
    %v481 = vadd.f32 %v471, 2.0
    %v482 = vadd.f32 %v473, 2.0
    %v483 = vadd.f32 %v475, 2.0
    %v484 = vadd.f32 %v477, 2.0
    %v485 = vadd.f32 %v479, 2.0
    %v486 = vmul.f32 %v469, %v480
    %v487 = vmul.f32 %v471, %v481
    %v488 = vmul.f32 %v473, %v482
    %v489 = vmul.f32 %v475, %v483
    %v490 = vmul.f32 %v477, %v484
    %v491 = vmul.f32 %v479, %v485
    %v492 = vmul.f32 %v456, %v486
    %v493 = vmul.f32 %v457, %v487
    %v494 = vmul.f32 %v458, %v488
    %v495 = vmul.f32 %v459, %v489
    %v496 = vmul.f32 %v460, %v490
    %v497 = vmul.f32 %v461, %v491
    %v498 = vadd.f32 %v486, 2.0
    %v499 = vadd.f32 %v487, 2.0
    %v500 = vadd.f32 %v488, 2.0
    %v501 = vadd.f32 %v489, 2.0
    %v502 = vadd.f32 %v490, 2.0
    %v503 = vadd.f32 %v491, 2.0
    %v504 = vrcp.pop %v498
    %v505 = vrcp.pop %v499
    %v506 = vrcp.pop %v500
    %v507 = vrcp.pop %v501
    %v508 = vrcp.pop %v502
    %v509 = vrcp.pop %v503
    %v510 = vmul.f32 %v492, %v504
    %v511 = vmul.f32 %v493, %v505
    %v512 = vmul.f32 %v494, %v506
    %v513 = vmul.f32 %v495, %v507
    %v514 = vmul.f32 %v496, %v508
    %v515 = vmul.f32 %v497, %v509
    %vm516 = vcmask 123904
    %v517 = vsel %vm516, %v510, -inf
    %v518 = vrot.slane %v517, 4
    %v519 = vmax.f32 %v517, %v518
    %v520 = vrot.slane %v519, 2
    %v521 = vmax.f32 %v519, %v520
    %v522 = vrot.slane %v521, 1
    %v523 = vmax.f32 %v521, %v522
    %v524 = vsel %vm516, %v513, -inf
    %v525 = vrot.slane %v524, 4
    %v526 = vmax.f32 %v524, %v525
    %v527 = vrot.slane %v526, 2
    %v528 = vmax.f32 %v526, %v527
    %v529 = vrot.slane %v528, 1
    %v530 = vmax.f32 %v528, %v529
    %vm531 = vcmask 125954
    %v532 = vsel %vm531, %v510, -inf
    %v533 = vrot.slane %v532, 4
    %v534 = vmax.f32 %v532, %v533
    %v535 = vrot.slane %v534, 2
    %v536 = vmax.f32 %v534, %v535
    %v537 = vrot.slane %v536, 1
    %v538 = vmax.f32 %v536, %v537
    %v539 = vsel %vm531, %v513, -inf
    %v540 = vrot.slane %v539, 4
    %v541 = vmax.f32 %v539, %v540
    %v542 = vrot.slane %v541, 2
    %v543 = vmax.f32 %v541, %v542
    %v544 = vrot.slane %v543, 1
    %v545 = vmax.f32 %v543, %v544
    %vm546 = vcmask 128004
    %v547 = vsel %vm546, %v510, -inf
    %v548 = vrot.slane %v547, 4
    %v549 = vmax.f32 %v547, %v548
    %v550 = vrot.slane %v549, 2
    %v551 = vmax.f32 %v549, %v550
    %v552 = vrot.slane %v551, 1
    %v553 = vmax.f32 %v551, %v552
    %v554 = vsel %vm546, %v513, -inf
    %v555 = vrot.slane %v554, 4
    %v556 = vmax.f32 %v554, %v555
    %v557 = vrot.slane %v556, 2
    %v558 = vmax.f32 %v556, %v557
    %v559 = vrot.slane %v558, 1
    %v560 = vmax.f32 %v558, %v559
    %vm561 = vcmask 130054
    %v562 = vsel %vm561, %v510, -inf
    %v563 = vrot.slane %v562, 4
    %v564 = vmax.f32 %v562, %v563
    %v565 = vrot.slane %v564, 2
    %v566 = vmax.f32 %v564, %v565
    %v567 = vrot.slane %v566, 1
    %v568 = vmax.f32 %v566, %v567
    %v569 = vsel %vm561, %v513, -inf
    %v570 = vrot.slane %v569, 4
    %v571 = vmax.f32 %v569, %v570
    %v572 = vrot.slane %v571, 2
    %v573 = vmax.f32 %v571, %v572
    %v574 = vrot.slane %v573, 1
    %v575 = vmax.f32 %v573, %v574
    %v576 = vsel %vm516, %v511, -inf
    %v577 = vrot.slane %v576, 4
    %v578 = vmax.f32 %v576, %v577
    %v579 = vrot.slane %v578, 2
    %v580 = vmax.f32 %v578, %v579
    %v581 = vrot.slane %v580, 1
    %v582 = vmax.f32 %v580, %v581
    %v583 = vsel %vm516, %v514, -inf
    %v584 = vrot.slane %v583, 4
    %v585 = vmax.f32 %v583, %v584
    %v586 = vrot.slane %v585, 2
    %v587 = vmax.f32 %v585, %v586
    %v588 = vrot.slane %v587, 1
    %v589 = vmax.f32 %v587, %v588
    %v590 = vsel %vm531, %v511, -inf
    %v591 = vrot.slane %v590, 4
    %v592 = vmax.f32 %v590, %v591
    %v593 = vrot.slane %v592, 2
    %v594 = vmax.f32 %v592, %v593
    %v595 = vrot.slane %v594, 1
    %v596 = vmax.f32 %v594, %v595
    %v597 = vsel %vm531, %v514, -inf
    %v598 = vrot.slane %v597, 4
    %v599 = vmax.f32 %v597, %v598
    %v600 = vrot.slane %v599, 2
    %v601 = vmax.f32 %v599, %v600
    %v602 = vrot.slane %v601, 1
    %v603 = vmax.f32 %v601, %v602
    %v604 = vsel %vm546, %v511, -inf
    %v605 = vrot.slane %v604, 4
    %v606 = vmax.f32 %v604, %v605
    %v607 = vrot.slane %v606, 2
    %v608 = vmax.f32 %v606, %v607
    %v609 = vrot.slane %v608, 1
    %v610 = vmax.f32 %v608, %v609
    %v611 = vsel %vm546, %v514, -inf
    %v612 = vrot.slane %v611, 4
    %v613 = vmax.f32 %v611, %v612
    %v614 = vrot.slane %v613, 2
    %v615 = vmax.f32 %v613, %v614
    %v616 = vrot.slane %v615, 1
    %v617 = vmax.f32 %v615, %v616
    %v618 = vsel %vm561, %v511, -inf
    %v619 = vrot.slane %v618, 4
    %v620 = vmax.f32 %v618, %v619
    %v621 = vrot.slane %v620, 2
    %v622 = vmax.f32 %v620, %v621
    %v623 = vrot.slane %v622, 1
    %v624 = vmax.f32 %v622, %v623
    %v625 = vsel %vm561, %v514, -inf
    %v626 = vrot.slane %v625, 4
    %v627 = vmax.f32 %v625, %v626
    %v628 = vrot.slane %v627, 2
    %v629 = vmax.f32 %v627, %v628
    %v630 = vrot.slane %v629, 1
    %v631 = vmax.f32 %v629, %v630
    %v632 = vsel %vm516, %v512, -inf
    %v633 = vrot.slane %v632, 4
    %v634 = vmax.f32 %v632, %v633
    %v635 = vrot.slane %v634, 2
    %v636 = vmax.f32 %v634, %v635
    %v637 = vrot.slane %v636, 1
    %v638 = vmax.f32 %v636, %v637
    %v639 = vsel %vm516, %v515, -inf
    %v640 = vrot.slane %v639, 4
    %v641 = vmax.f32 %v639, %v640
    %v642 = vrot.slane %v641, 2
    %v643 = vmax.f32 %v641, %v642
    %v644 = vrot.slane %v643, 1
    %v645 = vmax.f32 %v643, %v644
    %v646 = vsel %vm531, %v512, -inf
    %v647 = vrot.slane %v646, 4
    %v648 = vmax.f32 %v646, %v647
    %v649 = vrot.slane %v648, 2
    %v650 = vmax.f32 %v648, %v649
    %v651 = vrot.slane %v650, 1
    %v652 = vmax.f32 %v650, %v651
    %v653 = vsel %vm531, %v515, -inf
    %v654 = vrot.slane %v653, 4
    %v655 = vmax.f32 %v653, %v654
    %v656 = vrot.slane %v655, 2
    %v657 = vmax.f32 %v655, %v656
    %v658 = vrot.slane %v657, 1
    %v659 = vmax.f32 %v657, %v658
    %vm662 = vcmask 1041409
    %v663 = vsel %vm662, %v530, %v523
    %v667 = vsel %vm662, %v545, %v538
    %668 = vrot.lane.b32.xlu0 %v667, 16
    %v669 = vpop.permute.xlu0 %668
    %v673 = vsel %vm662, %v560, %v553
    %674 = vrot.lane.b32.xlu0 %v673, 32
    %v675 = vpop.permute.xlu0 %674
    %v679 = vsel %vm662, %v575, %v568
    %680 = vrot.lane.b32.xlu0 %v679, 48
    %v681 = vpop.permute.xlu0 %680
    %v685 = vsel %vm662, %v589, %v582
    %686 = vrot.lane.b32.xlu0 %v685, 64
    %v687 = vpop.permute.xlu0 %686
    %v691 = vsel %vm662, %v603, %v596
    %692 = vrot.lane.b32.xlu0 %v691, 80
    %v693 = vpop.permute.xlu0 %692
    %v697 = vsel %vm662, %v617, %v610
    %698 = vrot.lane.b32.xlu0 %v697, 96
    %v699 = vpop.permute.xlu0 %698
    %v703 = vsel %vm662, %v631, %v624
    %704 = vrot.lane.b32.xlu0 %v703, 112
    %v705 = vpop.permute.xlu0 %704
    %v709 = vsel %vm662, %v645, %v638
    %v713 = vsel %vm662, %v659, %v652
    %714 = vrot.lane.b32.xlu0 %v713, 16
    %v715 = vpop.permute.xlu0 %714
    %v717 = vsel %vm56, %v663, %v669
    %vm718 = vcmask 261120
    %v719 = vsel %vm718, %v717, %v675
    %vm720 = vcmask 392192
    %v721 = vsel %vm720, %v719, %v681
    %vm722 = vcmask 523264
    %v723 = vsel %vm722, %v721, %v687
    %vm724 = vcmask 654336
    %v725 = vsel %vm724, %v723, %v693
    %vm726 = vcmask 785408
    %v727 = vsel %vm726, %v725, %v699
    %vm728 = vcmask 916480
    %v729 = vsel %vm728, %v727, %v705
    %v730 = vsel %vm56, %v709, %v715
    %v731 = vld [vmem:[%s3] sm:$0xff]
    %v732 = vld [vmem:[%s3 + $0x8] sm:$0xff]
    %v733 = vld [vmem:[%s3 + $0x10] sm:$0xff]
    %v734 = vld [vmem:[%s3 + $0x18] sm:$0xff]
    %v735 = vld [vmem:[%s3 + $0x20] sm:$0xff]
    %v736 = vld [vmem:[%s3 + $0x28] sm:$0xff]
    %v737 = vld [vmem:[%s3 + $0x30] sm:$0xff]
    %v738 = vld [vmem:[%s3 + $0x38] sm:$0xff]
    %v739 = vld [vmem:[%s3 + $0x40] sm:$0xff]
    %v740 = vld [vmem:[%s3 + $0x48] sm:$0xff]
    %v741 = vld [vmem:[%s3 + $0x50] sm:$0xff]
    %v742 = vld [vmem:[%s3 + $0x58] sm:$0xff]
    %v743 = vld [vmem:[%s3 + $0x60] sm:$0xff]
    %v744 = vld [vmem:[%s3 + $0x68] sm:$0xff]
    %v745 = vld [vmem:[%s3 + $0x70] sm:$0xff]
    %v746 = vld [vmem:[%s3 + $0x78] sm:$0xff]
    %v747 = vld [vmem:[%s3 + $0x80] sm:$0xff]
    %v748 = vld [vmem:[%s3 + $0x88] sm:$0xff]
    %v749 = vld [vmem:[%s3 + $0x90] sm:$0xff]
    %v750 = vld [vmem:[%s3 + $0x98] sm:$0xff]
    %v751 = vld [vmem:[%s3 + $0xa0] sm:$0xff]
    %v752 = vld [vmem:[%s3 + $0xa8] sm:$0xff]
    %v753 = vld [vmem:[%s3 + $0xb0] sm:$0xff]
    %v754 = vld [vmem:[%s3 + $0xb8] sm:$0xff]
    %v755 = vld [vmem:[%s3 + $0xc0] sm:$0xff]
    %v756 = vld [vmem:[%s3 + $0xc8] sm:$0xff]
    %v757 = vld [vmem:[%s3 + $0xd0] sm:$0xff]
    %v758 = vld [vmem:[%s3 + $0xd8] sm:$0xff]
    %v759 = vld [vmem:[%s3 + $0xe0] sm:$0xff]
    %v760 = vld [vmem:[%s3 + $0xe8] sm:$0xff]
    %v761 = vld [vmem:[%s3 + $0xf0] sm:$0xff]
    %v762 = vld [vmem:[%s3 + $0xf8] sm:$0xff]
    %v763 = vld [vmem:[%s3 + $0x100] sm:$0xff]
    %v764 = vld [vmem:[%s3 + $0x108] sm:$0xff]
    %v765 = vld [vmem:[%s3 + $0x110] sm:$0xff]
    %v766 = vld [vmem:[%s3 + $0x118] sm:$0xff]
    %v767 = vld [vmem:[%s3 + $0x120] sm:$0xff]
    %v768 = vld [vmem:[%s3 + $0x128] sm:$0xff]
    %v769 = vld [vmem:[%s3 + $0x130] sm:$0xff]
    %v770 = vld [vmem:[%s3 + $0x138] sm:$0xff]
    %v771 = vld [vmem:[%s3 + $0x140] sm:$0xff]
    %v772 = vld [vmem:[%s3 + $0x148] sm:$0xff]
    %v773 = vld [vmem:[%s3 + $0x150] sm:$0xff]
    %v774 = vld [vmem:[%s3 + $0x158] sm:$0xff]
    %v775 = vld [vmem:[%s3 + $0x160] sm:$0xff]
    %v776 = vld [vmem:[%s3 + $0x168] sm:$0xff]
    %v777 = vld [vmem:[%s3 + $0x170] sm:$0xff]
    %v778 = vld [vmem:[%s3 + $0x178] sm:$0xff]
    %v779 = vld [vmem:[%s3 + $0x180] sm:$0xff]
    %v780 = vld [vmem:[%s3 + $0x188] sm:$0xff]
    %v781 = vld [vmem:[%s3 + $0x190] sm:$0xff]
    %v782 = vld [vmem:[%s3 + $0x198] sm:$0xff]
    %v783 = vld [vmem:[%s3 + $0x1a0] sm:$0xff]
    %v784 = vld [vmem:[%s3 + $0x1a8] sm:$0xff]
    %v785 = vld [vmem:[%s3 + $0x1b0] sm:$0xff]
    %v786 = vld [vmem:[%s3 + $0x1b8] sm:$0xff]
    %v787 = vld [vmem:[%s3 + $0x1c0] sm:$0xff]
    %v788 = vld [vmem:[%s3 + $0x1c8] sm:$0xff]
    %v789 = vld [vmem:[%s3 + $0x1d0] sm:$0xff]
    %v790 = vld [vmem:[%s3 + $0x1d8] sm:$0xff]
    %v791 = vld [vmem:[%s3 + $0x1e0] sm:$0xff]
    %v792 = vld [vmem:[%s3 + $0x1e8] sm:$0xff]
    %v793 = vld [vmem:[%s3 + $0x1f0] sm:$0xff]
    %v794 = vld [vmem:[%s3 + $0x1f8] sm:$0xff]
    %v795 = vld [vmem:[%s3 + $0x200] sm:$0xff]
    %v796 = vld [vmem:[%s3 + $0x208] sm:$0xff]
    %v797 = vld [vmem:[%s3 + $0x210] sm:$0xff]
    %v798 = vld [vmem:[%s3 + $0x218] sm:$0xff]
    %v799 = vld [vmem:[%s3 + $0x220] sm:$0xff]
    %v800 = vld [vmem:[%s3 + $0x228] sm:$0xff]
    %v801 = vld [vmem:[%s3 + $0x230] sm:$0xff]
    %v802 = vld [vmem:[%s3 + $0x238] sm:$0xff]
    %v803 = vld [vmem:[%s3 + $0x240] sm:$0xff]
    %v804 = vld [vmem:[%s3 + $0x248] sm:$0xff]
    %v805 = vld [vmem:[%s3 + $0x250] sm:$0xff]
    %v806 = vld [vmem:[%s3 + $0x258] sm:$0xff]
    %v807 = vld [vmem:[%s3 + $0x260] sm:$0xff]
    %v808 = vld [vmem:[%s3 + $0x268] sm:$0xff]
    %v809 = vld [vmem:[%s3 + $0x270] sm:$0xff]
    %v810 = vld [vmem:[%s3 + $0x278] sm:$0xff]
    %v811 = vld [vmem:[%s3 + $0x280] sm:$0xff]
    %v812 = vld [vmem:[%s3 + $0x288] sm:$0xff]
    %v813 = vld [vmem:[%s3 + $0x290] sm:$0xff]
    %v814 = vld [vmem:[%s3 + $0x298] sm:$0xff]
    %v815 = vld [vmem:[%s3 + $0x2a0] sm:$0xff]
    %v816 = vld [vmem:[%s3 + $0x2a8] sm:$0xff]
    %v817 = vld [vmem:[%s3 + $0x2b0] sm:$0xff]
    %v818 = vld [vmem:[%s3 + $0x2b8] sm:$0xff]
    %v819 = vld [vmem:[%s3 + $0x2c0] sm:$0xff]
    %v820 = vld [vmem:[%s3 + $0x2c8] sm:$0xff]
    %v821 = vld [vmem:[%s3 + $0x2d0] sm:$0xff]
    %v822 = vld [vmem:[%s3 + $0x2d8] sm:$0xff]
    %v823 = vld [vmem:[%s3 + $0x2e0] sm:$0xff]
    %v824 = vld [vmem:[%s3 + $0x2e8] sm:$0xff]
    %v825 = vld [vmem:[%s3 + $0x2f0] sm:$0xff]
    %v826 = vld [vmem:[%s3 + $0x2f8] sm:$0xff]
    %v827 = vld [vmem:[%s3 + $0x300] sm:$0xff]
    %v828 = vld [vmem:[%s3 + $0x308] sm:$0xff]
    %v829 = vld [vmem:[%s3 + $0x310] sm:$0xff]
    %v830 = vld [vmem:[%s3 + $0x318] sm:$0xff]
    %v831 = vld [vmem:[%s3 + $0x320] sm:$0xff]
    %v832 = vld [vmem:[%s3 + $0x328] sm:$0xff]
    %v833 = vld [vmem:[%s3 + $0x330] sm:$0xff]
    %v834 = vld [vmem:[%s3 + $0x338] sm:$0xff]
    %v835 = vld [vmem:[%s3 + $0x340] sm:$0xff]
    %v836 = vld [vmem:[%s3 + $0x348] sm:$0xff]
    %v837 = vld [vmem:[%s3 + $0x350] sm:$0xff]
    %v838 = vld [vmem:[%s3 + $0x358] sm:$0xff]
    %v839 = vld [vmem:[%s3 + $0x360] sm:$0xff]
    %v840 = vld [vmem:[%s3 + $0x368] sm:$0xff]
    %v841 = vld [vmem:[%s3 + $0x370] sm:$0xff]
    %v842 = vld [vmem:[%s3 + $0x378] sm:$0xff]
    %v843 = vld [vmem:[%s3 + $0x380] sm:$0xff]
    %v844 = vld [vmem:[%s3 + $0x388] sm:$0xff]
    %v845 = vld [vmem:[%s3 + $0x390] sm:$0xff]
    %v846 = vld [vmem:[%s3 + $0x398] sm:$0xff]
    %v847 = vld [vmem:[%s3 + $0x3a0] sm:$0xff]
    %v848 = vld [vmem:[%s3 + $0x3a8] sm:$0xff]
    %v849 = vld [vmem:[%s3 + $0x3b0] sm:$0xff]
    %v850 = vld [vmem:[%s3 + $0x3b8] sm:$0xff]
    %v851 = vld [vmem:[%s3 + $0x3c0] sm:$0xff]
    %v852 = vld [vmem:[%s3 + $0x3c8] sm:$0xff]
    %v853 = vld [vmem:[%s3 + $0x3d0] sm:$0xff]
    %v854 = vld [vmem:[%s3 + $0x3d8] sm:$0xff]
    %v855 = vld [vmem:[%s3 + $0x3e0] sm:$0xff]
    %v856 = vld [vmem:[%s3 + $0x3e8] sm:$0xff]
    %v857 = vld [vmem:[%s3 + $0x3f0] sm:$0xff]
    %v858 = vld [vmem:[%s3 + $0x3f8] sm:$0xff]
    %v859 = vld [vmem:[%s3 + $0x400] sm:$0xff]
    %v860 = vld [vmem:[%s3 + $0x408] sm:$0xff]
    %v861 = vld [vmem:[%s3 + $0x410] sm:$0xff]
    %v862 = vld [vmem:[%s3 + $0x418] sm:$0xff]
    %v863 = vld [vmem:[%s3 + $0x420] sm:$0xff]
    %v864 = vld [vmem:[%s3 + $0x428] sm:$0xff]
    %v865 = vld [vmem:[%s3 + $0x430] sm:$0xff]
    %v866 = vld [vmem:[%s3 + $0x438] sm:$0xff]
    %v867 = vld [vmem:[%s3 + $0x440] sm:$0xff]
    %v868 = vld [vmem:[%s3 + $0x448] sm:$0xff]
    %v869 = vld [vmem:[%s3 + $0x450] sm:$0xff]
    %v870 = vld [vmem:[%s3 + $0x458] sm:$0xff]
    %v871 = vld [vmem:[%s3 + $0x460] sm:$0xff]
    %v872 = vld [vmem:[%s3 + $0x468] sm:$0xff]
    %v873 = vld [vmem:[%s3 + $0x470] sm:$0xff]
    %v874 = vld [vmem:[%s3 + $0x478] sm:$0xff]
    %v875 = vld [vmem:[%s3 + $0x480] sm:$0xff]
    %v876 = vld [vmem:[%s3 + $0x488] sm:$0xff]
    %v877 = vld [vmem:[%s3 + $0x490] sm:$0xff]
    %v878 = vld [vmem:[%s3 + $0x498] sm:$0xff]
    %v879 = vld [vmem:[%s3 + $0x4a0] sm:$0xff]
    %v880 = vld [vmem:[%s3 + $0x4a8] sm:$0xff]
    %v881 = vld [vmem:[%s3 + $0x4b0] sm:$0xff]
    %v882 = vld [vmem:[%s3 + $0x4b8] sm:$0xff]
    %v883 = vld [vmem:[%s3 + $0x4c0] sm:$0xff]
    %v884 = vld [vmem:[%s3 + $0x4c8] sm:$0xff]
    %v885 = vld [vmem:[%s3 + $0x4d0] sm:$0xff]
    %v886 = vld [vmem:[%s3 + $0x4d8] sm:$0xff]
    %v887 = vld [vmem:[%s3 + $0x4e0] sm:$0xff]
    %v888 = vld [vmem:[%s3 + $0x4e8] sm:$0xff]
    %v889 = vld [vmem:[%s3 + $0x4f0] sm:$0xff]
    %v890 = vld [vmem:[%s3 + $0x4f8] sm:$0xff]
    %v891 = vld [vmem:[%s4] sm:$0xff]
    %v893 = vperm.slane %v891, 0
    %v894 = vperm.slane %v891, 1
    %v895 = vperm.slane %v891, 2
    %v896 = vperm.slane %v891, 3
    %v897 = vperm.slane %v891, 4
    %v898 = vperm.slane %v891, 5
    %v899 = vperm.slane %v891, 6
    %v900 = vperm.slane %v891, 7
    %v910 = vsel %vm718, %v730, 0
    %912 = vmatpush.msra.mxu0 %v851
    %913 = vmatpush.msra.mxu0 %v843
    %914 = vmatpush.msra.mxu0 %v835
    %915 = vmatpush.msra.mxu0 %v827
    %916 = vmatpush.msra.mxu0 %v819
    %917 = vmatpush.msra.mxu0 %v811
    %918 = vmatpush.msra.mxu0 %v803
    %919 = vmatpush.msra.mxu0 %v795
    %920 = vmatpush.msra.mxu0 %v787
    %921 = vmatpush.msra.mxu0 %v779
    %922 = vmatpush.msra.mxu0 %v771
    %923 = vmatpush.msra.mxu0 %v763
    %924 = vmatpush.msra.mxu0 %v755
    %925 = vmatpush.msra.mxu0 %v747
    %926 = vmatpush.msra.mxu0 %v739
    %927 = vmatpush.msra.mxu0 %v731
    %928 = vmatmul.f32.gmra.mxu0 %v729
    %v929 = vpop.f32.mrf.mxu0
    %v930 = vadd.f32 %v893, %v929
    %931 = vdwg.mxu0
    %932 = vmatpush.msra.mxu0 0.0
    %933 = vmatpush.msra.mxu0 0.0
    %934 = vmatpush.msra.mxu0 0.0
    %935 = vmatpush.msra.mxu0 0.0
    %936 = vmatpush.msra.mxu0 0.0
    %937 = vmatpush.msra.mxu0 0.0
    %938 = vmatpush.msra.mxu0 0.0
    %939 = vmatpush.msra.mxu0 0.0
    %940 = vmatpush.msra.mxu0 0.0
    %941 = vmatpush.msra.mxu0 0.0
    %942 = vmatpush.msra.mxu0 0.0
    %943 = vmatpush.msra.mxu0 0.0
    %944 = vmatpush.msra.mxu0 %v883
    %945 = vmatpush.msra.mxu0 %v875
    %946 = vmatpush.msra.mxu0 %v867
    %947 = vmatpush.msra.mxu0 %v859
    %948 = vmatmul.f32.gmra.mxu0 %v910
    %v949 = vpop.f32.mrf.mxu0
    %v950 = vadd.f32 %v930, %v949
    %951 = vdwg.mxu0
    %952 = vmatpush.msra.mxu0 %v852
    %953 = vmatpush.msra.mxu0 %v844
    %954 = vmatpush.msra.mxu0 %v836
    %955 = vmatpush.msra.mxu0 %v828
    %956 = vmatpush.msra.mxu0 %v820
    %957 = vmatpush.msra.mxu0 %v812
    %958 = vmatpush.msra.mxu0 %v804
    %959 = vmatpush.msra.mxu0 %v796
    %960 = vmatpush.msra.mxu0 %v788
    %961 = vmatpush.msra.mxu0 %v780
    %962 = vmatpush.msra.mxu0 %v772
    %963 = vmatpush.msra.mxu0 %v764
    %964 = vmatpush.msra.mxu0 %v756
    %965 = vmatpush.msra.mxu0 %v748
    %966 = vmatpush.msra.mxu0 %v740
    %967 = vmatpush.msra.mxu0 %v732
    %968 = vmatmul.f32.gmra.mxu0 %v729
    %v969 = vpop.f32.mrf.mxu0
    %v970 = vadd.f32 %v894, %v969
    %971 = vdwg.mxu0
    %972 = vmatpush.msra.mxu0 0.0
    %973 = vmatpush.msra.mxu0 0.0
    %974 = vmatpush.msra.mxu0 0.0
    %975 = vmatpush.msra.mxu0 0.0
    %976 = vmatpush.msra.mxu0 0.0
    %977 = vmatpush.msra.mxu0 0.0
    %978 = vmatpush.msra.mxu0 0.0
    %979 = vmatpush.msra.mxu0 0.0
    %980 = vmatpush.msra.mxu0 0.0
    %981 = vmatpush.msra.mxu0 0.0
    %982 = vmatpush.msra.mxu0 0.0
    %983 = vmatpush.msra.mxu0 0.0
    %984 = vmatpush.msra.mxu0 %v884
    %985 = vmatpush.msra.mxu0 %v876
    %986 = vmatpush.msra.mxu0 %v868
    %987 = vmatpush.msra.mxu0 %v860
    %988 = vmatmul.f32.gmra.mxu0 %v910
    %v989 = vpop.f32.mrf.mxu0
    %v990 = vadd.f32 %v970, %v989
    %991 = vdwg.mxu0
    %992 = vmatpush.msra.mxu0 %v853
    %993 = vmatpush.msra.mxu0 %v845
    %994 = vmatpush.msra.mxu0 %v837
    %995 = vmatpush.msra.mxu0 %v829
    %996 = vmatpush.msra.mxu0 %v821
    %997 = vmatpush.msra.mxu0 %v813
    %998 = vmatpush.msra.mxu0 %v805
    %999 = vmatpush.msra.mxu0 %v797
    %1000 = vmatpush.msra.mxu0 %v789
    %1001 = vmatpush.msra.mxu0 %v781
    %1002 = vmatpush.msra.mxu0 %v773
    %1003 = vmatpush.msra.mxu0 %v765
    %1004 = vmatpush.msra.mxu0 %v757
    %1005 = vmatpush.msra.mxu0 %v749
    %1006 = vmatpush.msra.mxu0 %v741
    %1007 = vmatpush.msra.mxu0 %v733
    %1008 = vmatmul.f32.gmra.mxu0 %v729
    %v1009 = vpop.f32.mrf.mxu0
    %v1010 = vadd.f32 %v895, %v1009
    %1011 = vdwg.mxu0
    %1012 = vmatpush.msra.mxu0 0.0
    %1013 = vmatpush.msra.mxu0 0.0
    %1014 = vmatpush.msra.mxu0 0.0
    %1015 = vmatpush.msra.mxu0 0.0
    %1016 = vmatpush.msra.mxu0 0.0
    %1017 = vmatpush.msra.mxu0 0.0
    %1018 = vmatpush.msra.mxu0 0.0
    %1019 = vmatpush.msra.mxu0 0.0
    %1020 = vmatpush.msra.mxu0 0.0
    %1021 = vmatpush.msra.mxu0 0.0
    %1022 = vmatpush.msra.mxu0 0.0
    %1023 = vmatpush.msra.mxu0 0.0
    %1024 = vmatpush.msra.mxu0 %v885
    %1025 = vmatpush.msra.mxu0 %v877
    %1026 = vmatpush.msra.mxu0 %v869
    %1027 = vmatpush.msra.mxu0 %v861
    %1028 = vmatmul.f32.gmra.mxu0 %v910
    %v1029 = vpop.f32.mrf.mxu0
    %v1030 = vadd.f32 %v1010, %v1029
    %1031 = vdwg.mxu0
    %1032 = vmatpush.msra.mxu0 %v854
    %1033 = vmatpush.msra.mxu0 %v846
    %1034 = vmatpush.msra.mxu0 %v838
    %1035 = vmatpush.msra.mxu0 %v830
    %1036 = vmatpush.msra.mxu0 %v822
    %1037 = vmatpush.msra.mxu0 %v814
    %1038 = vmatpush.msra.mxu0 %v806
    %1039 = vmatpush.msra.mxu0 %v798
    %1040 = vmatpush.msra.mxu0 %v790
    %1041 = vmatpush.msra.mxu0 %v782
    %1042 = vmatpush.msra.mxu0 %v774
    %1043 = vmatpush.msra.mxu0 %v766
    %1044 = vmatpush.msra.mxu0 %v758
    %1045 = vmatpush.msra.mxu0 %v750
    %1046 = vmatpush.msra.mxu0 %v742
    %1047 = vmatpush.msra.mxu0 %v734
    %1048 = vmatmul.f32.gmra.mxu0 %v729
    %v1049 = vpop.f32.mrf.mxu0
    %v1050 = vadd.f32 %v896, %v1049
    %1051 = vdwg.mxu0
    %1052 = vmatpush.msra.mxu0 0.0
    %1053 = vmatpush.msra.mxu0 0.0
    %1054 = vmatpush.msra.mxu0 0.0
    %1055 = vmatpush.msra.mxu0 0.0
    %1056 = vmatpush.msra.mxu0 0.0
    %1057 = vmatpush.msra.mxu0 0.0
    %1058 = vmatpush.msra.mxu0 0.0
    %1059 = vmatpush.msra.mxu0 0.0
    %1060 = vmatpush.msra.mxu0 0.0
    %1061 = vmatpush.msra.mxu0 0.0
    %1062 = vmatpush.msra.mxu0 0.0
    %1063 = vmatpush.msra.mxu0 0.0
    %1064 = vmatpush.msra.mxu0 %v886
    %1065 = vmatpush.msra.mxu0 %v878
    %1066 = vmatpush.msra.mxu0 %v870
    %1067 = vmatpush.msra.mxu0 %v862
    %1068 = vmatmul.f32.gmra.mxu0 %v910
    %v1069 = vpop.f32.mrf.mxu0
    %v1070 = vadd.f32 %v1050, %v1069
    %1071 = vdwg.mxu0
    %1072 = vmatpush.msra.mxu0 %v855
    %1073 = vmatpush.msra.mxu0 %v847
    %1074 = vmatpush.msra.mxu0 %v839
    %1075 = vmatpush.msra.mxu0 %v831
    %1076 = vmatpush.msra.mxu0 %v823
    %1077 = vmatpush.msra.mxu0 %v815
    %1078 = vmatpush.msra.mxu0 %v807
    %1079 = vmatpush.msra.mxu0 %v799
    %1080 = vmatpush.msra.mxu0 %v791
    %1081 = vmatpush.msra.mxu0 %v783
    %1082 = vmatpush.msra.mxu0 %v775
    %1083 = vmatpush.msra.mxu0 %v767
    %1084 = vmatpush.msra.mxu0 %v759
    %1085 = vmatpush.msra.mxu0 %v751
    %1086 = vmatpush.msra.mxu0 %v743
    %1087 = vmatpush.msra.mxu0 %v735
    %1088 = vmatmul.f32.gmra.mxu0 %v729
    %v1089 = vpop.f32.mrf.mxu0
    %v1090 = vadd.f32 %v897, %v1089
    %1091 = vdwg.mxu0
    %1092 = vmatpush.msra.mxu0 0.0
    %1093 = vmatpush.msra.mxu0 0.0
    %1094 = vmatpush.msra.mxu0 0.0
    %1095 = vmatpush.msra.mxu0 0.0
    %1096 = vmatpush.msra.mxu0 0.0
    %1097 = vmatpush.msra.mxu0 0.0
    %1098 = vmatpush.msra.mxu0 0.0
    %1099 = vmatpush.msra.mxu0 0.0
    %1100 = vmatpush.msra.mxu0 0.0
    %1101 = vmatpush.msra.mxu0 0.0
    %1102 = vmatpush.msra.mxu0 0.0
    %1103 = vmatpush.msra.mxu0 0.0
    %1104 = vmatpush.msra.mxu0 %v887
    %1105 = vmatpush.msra.mxu0 %v879
    %1106 = vmatpush.msra.mxu0 %v871
    %1107 = vmatpush.msra.mxu0 %v863
    %1108 = vmatmul.f32.gmra.mxu0 %v910
    %v1109 = vpop.f32.mrf.mxu0
    %v1110 = vadd.f32 %v1090, %v1109
    %1111 = vdwg.mxu0
    %1112 = vmatpush.msra.mxu0 %v856
    %1113 = vmatpush.msra.mxu0 %v848
    %1114 = vmatpush.msra.mxu0 %v840
    %1115 = vmatpush.msra.mxu0 %v832
    %1116 = vmatpush.msra.mxu0 %v824
    %1117 = vmatpush.msra.mxu0 %v816
    %1118 = vmatpush.msra.mxu0 %v808
    %1119 = vmatpush.msra.mxu0 %v800
    %1120 = vmatpush.msra.mxu0 %v792
    %1121 = vmatpush.msra.mxu0 %v784
    %1122 = vmatpush.msra.mxu0 %v776
    %1123 = vmatpush.msra.mxu0 %v768
    %1124 = vmatpush.msra.mxu0 %v760
    %1125 = vmatpush.msra.mxu0 %v752
    %1126 = vmatpush.msra.mxu0 %v744
    %1127 = vmatpush.msra.mxu0 %v736
    %1128 = vmatmul.f32.gmra.mxu0 %v729
    %v1129 = vpop.f32.mrf.mxu0
    %v1130 = vadd.f32 %v898, %v1129
    %1131 = vdwg.mxu0
    %1132 = vmatpush.msra.mxu0 0.0
    %1133 = vmatpush.msra.mxu0 0.0
    %1134 = vmatpush.msra.mxu0 0.0
    %1135 = vmatpush.msra.mxu0 0.0
    %1136 = vmatpush.msra.mxu0 0.0
    %1137 = vmatpush.msra.mxu0 0.0
    %1138 = vmatpush.msra.mxu0 0.0
    %1139 = vmatpush.msra.mxu0 0.0
    %1140 = vmatpush.msra.mxu0 0.0
    %1141 = vmatpush.msra.mxu0 0.0
    %1142 = vmatpush.msra.mxu0 0.0
    %1143 = vmatpush.msra.mxu0 0.0
    %1144 = vmatpush.msra.mxu0 %v888
    %1145 = vmatpush.msra.mxu0 %v880
    %1146 = vmatpush.msra.mxu0 %v872
    %1147 = vmatpush.msra.mxu0 %v864
    %1148 = vmatmul.f32.gmra.mxu0 %v910
    %v1149 = vpop.f32.mrf.mxu0
    %v1150 = vadd.f32 %v1130, %v1149
    %1151 = vdwg.mxu0
    %1152 = vmatpush.msra.mxu0 %v857
    %1153 = vmatpush.msra.mxu0 %v849
    %1154 = vmatpush.msra.mxu0 %v841
    %1155 = vmatpush.msra.mxu0 %v833
    %1156 = vmatpush.msra.mxu0 %v825
    %1157 = vmatpush.msra.mxu0 %v817
    %1158 = vmatpush.msra.mxu0 %v809
    %1159 = vmatpush.msra.mxu0 %v801
    %1160 = vmatpush.msra.mxu0 %v793
    %1161 = vmatpush.msra.mxu0 %v785
    %1162 = vmatpush.msra.mxu0 %v777
    %1163 = vmatpush.msra.mxu0 %v769
    %1164 = vmatpush.msra.mxu0 %v761
    %1165 = vmatpush.msra.mxu0 %v753
    %1166 = vmatpush.msra.mxu0 %v745
    %1167 = vmatpush.msra.mxu0 %v737
    %1168 = vmatmul.f32.gmra.mxu0 %v729
    %v1169 = vpop.f32.mrf.mxu0
    %v1170 = vadd.f32 %v899, %v1169
    %1171 = vdwg.mxu0
    %1172 = vmatpush.msra.mxu0 0.0
    %1173 = vmatpush.msra.mxu0 0.0
    %1174 = vmatpush.msra.mxu0 0.0
    %1175 = vmatpush.msra.mxu0 0.0
    %1176 = vmatpush.msra.mxu0 0.0
    %1177 = vmatpush.msra.mxu0 0.0
    %1178 = vmatpush.msra.mxu0 0.0
    %1179 = vmatpush.msra.mxu0 0.0
    %1180 = vmatpush.msra.mxu0 0.0
    %1181 = vmatpush.msra.mxu0 0.0
    %1182 = vmatpush.msra.mxu0 0.0
    %1183 = vmatpush.msra.mxu0 0.0
    %1184 = vmatpush.msra.mxu0 %v889
    %1185 = vmatpush.msra.mxu0 %v881
    %1186 = vmatpush.msra.mxu0 %v873
    %1187 = vmatpush.msra.mxu0 %v865
    %1188 = vmatmul.f32.gmra.mxu0 %v910
    %v1189 = vpop.f32.mrf.mxu0
    %v1190 = vadd.f32 %v1170, %v1189
    %1191 = vdwg.mxu0
    %1192 = vmatpush.msra.mxu0 %v858
    %1193 = vmatpush.msra.mxu0 %v850
    %1194 = vmatpush.msra.mxu0 %v842
    %1195 = vmatpush.msra.mxu0 %v834
    %1196 = vmatpush.msra.mxu0 %v826
    %1197 = vmatpush.msra.mxu0 %v818
    %1198 = vmatpush.msra.mxu0 %v810
    %1199 = vmatpush.msra.mxu0 %v802
    %1200 = vmatpush.msra.mxu0 %v794
    %1201 = vmatpush.msra.mxu0 %v786
    %1202 = vmatpush.msra.mxu0 %v778
    %1203 = vmatpush.msra.mxu0 %v770
    %1204 = vmatpush.msra.mxu0 %v762
    %1205 = vmatpush.msra.mxu0 %v754
    %1206 = vmatpush.msra.mxu0 %v746
    %1207 = vmatpush.msra.mxu0 %v738
    %1208 = vmatmul.f32.gmra.mxu0 %v729
    %v1209 = vpop.f32.mrf.mxu0
    %v1210 = vadd.f32 %v900, %v1209
    %1211 = vdwg.mxu0
    %1212 = vmatpush.msra.mxu0 0.0
    %1213 = vmatpush.msra.mxu0 0.0
    %1214 = vmatpush.msra.mxu0 0.0
    %1215 = vmatpush.msra.mxu0 0.0
    %1216 = vmatpush.msra.mxu0 0.0
    %1217 = vmatpush.msra.mxu0 0.0
    %1218 = vmatpush.msra.mxu0 0.0
    %1219 = vmatpush.msra.mxu0 0.0
    %1220 = vmatpush.msra.mxu0 0.0
    %1221 = vmatpush.msra.mxu0 0.0
    %1222 = vmatpush.msra.mxu0 0.0
    %1223 = vmatpush.msra.mxu0 0.0
    %1224 = vmatpush.msra.mxu0 %v890
    %1225 = vmatpush.msra.mxu0 %v882
    %1226 = vmatpush.msra.mxu0 %v874
    %1227 = vmatpush.msra.mxu0 %v866
    %1228 = vmatmul.f32.gmra.mxu0 %v910
    %v1229 = vpop.f32.mrf.mxu0
    %v1230 = vadd.f32 %v1210, %v1229
    %1231 = vdwg.mxu0
    %v1232 = vmin.f32 %v950, 20.0
    %v1233 = vmin.f32 %v990, 20.0
    %v1234 = vmin.f32 %v1030, 20.0
    %v1235 = vmin.f32 %v1070, 20.0
    %v1236 = vmin.f32 %v1110, 20.0
    %v1237 = vmin.f32 %v1150, 20.0
    %v1238 = vmin.f32 %v1190, 20.0
    %v1239 = vmin.f32 %v1230, 20.0
    %v1240 = vmul.f32 %v1232, 1.442695
    %v1241 = vpow.pop %v1240
    %v1242 = vmul.f32 %v1233, 1.442695
    %v1243 = vpow.pop %v1242
    %v1244 = vmul.f32 %v1234, 1.442695
    %v1245 = vpow.pop %v1244
    %v1246 = vmul.f32 %v1235, 1.442695
    %v1247 = vpow.pop %v1246
    %v1248 = vmul.f32 %v1236, 1.442695
    %v1249 = vpow.pop %v1248
    %v1250 = vmul.f32 %v1237, 1.442695
    %v1251 = vpow.pop %v1250
    %v1252 = vmul.f32 %v1238, 1.442695
    %v1253 = vpow.pop %v1252
    %v1254 = vmul.f32 %v1239, 1.442695
    %v1255 = vpow.pop %v1254
    %v1256 = vadd.f32 %v1241, 2.0
    %v1257 = vadd.f32 %v1243, 2.0
    %v1258 = vadd.f32 %v1245, 2.0
    %v1259 = vadd.f32 %v1247, 2.0
    %v1260 = vadd.f32 %v1249, 2.0
    %v1261 = vadd.f32 %v1251, 2.0
    %v1262 = vadd.f32 %v1253, 2.0
    %v1263 = vadd.f32 %v1255, 2.0
    %v1264 = vmul.f32 %v1241, %v1256
    %v1265 = vmul.f32 %v1243, %v1257
    %v1266 = vmul.f32 %v1245, %v1258
    %v1267 = vmul.f32 %v1247, %v1259
    %v1268 = vmul.f32 %v1249, %v1260
    %v1269 = vmul.f32 %v1251, %v1261
    %v1270 = vmul.f32 %v1253, %v1262
    %v1271 = vmul.f32 %v1255, %v1263
    %v1272 = vmul.f32 %v950, %v1264
    %v1273 = vmul.f32 %v990, %v1265
    %v1274 = vmul.f32 %v1030, %v1266
    %v1275 = vmul.f32 %v1070, %v1267
    %v1276 = vmul.f32 %v1110, %v1268
    %v1277 = vmul.f32 %v1150, %v1269
    %v1278 = vmul.f32 %v1190, %v1270
    %v1279 = vmul.f32 %v1230, %v1271
    %v1280 = vadd.f32 %v1264, 2.0
    %v1281 = vadd.f32 %v1265, 2.0
    %v1282 = vadd.f32 %v1266, 2.0
    %v1283 = vadd.f32 %v1267, 2.0
    %v1284 = vadd.f32 %v1268, 2.0
    %v1285 = vadd.f32 %v1269, 2.0
    %v1286 = vadd.f32 %v1270, 2.0
    %v1287 = vadd.f32 %v1271, 2.0
    %v1288 = vrcp.pop %v1280
    %v1289 = vrcp.pop %v1281
    %v1290 = vrcp.pop %v1282
    %v1291 = vrcp.pop %v1283
    %v1292 = vrcp.pop %v1284
    %v1293 = vrcp.pop %v1285
    %v1294 = vrcp.pop %v1286
    %v1295 = vrcp.pop %v1287
    %v1296 = vmul.f32 %v1272, %v1288
    %v1297 = vmul.f32 %v1273, %v1289
    %v1298 = vmul.f32 %v1274, %v1290
    %v1299 = vmul.f32 %v1275, %v1291
    %v1300 = vmul.f32 %v1276, %v1292
    %v1301 = vmul.f32 %v1277, %v1293
    %v1302 = vmul.f32 %v1278, %v1294
    %v1303 = vmul.f32 %v1279, %v1295
    %v1304 = vld [vmem:[%s5] sm:$0xff]
    %v1305 = vld [vmem:[%s5 + $0x8] sm:$0xff]
    %v1306 = vld [vmem:[%s5 + $0x10] sm:$0xff]
    %v1307 = vld [vmem:[%s5 + $0x18] sm:$0xff]
    %v1308 = vld [vmem:[%s5 + $0x20] sm:$0xff]
    %v1309 = vld [vmem:[%s5 + $0x28] sm:$0xff]
    %v1310 = vld [vmem:[%s5 + $0x30] sm:$0xff]
    %v1311 = vld [vmem:[%s5 + $0x38] sm:$0xff]
    %v1312 = vld [vmem:[%s5 + $0x40] sm:$0xff]
    %v1313 = vld [vmem:[%s5 + $0x48] sm:$0xff]
    %v1314 = vld [vmem:[%s5 + $0x50] sm:$0xff]
    %v1315 = vld [vmem:[%s5 + $0x58] sm:$0xff]
    %v1316 = vld [vmem:[%s5 + $0x60] sm:$0xff]
    %v1317 = vld [vmem:[%s5 + $0x68] sm:$0xff]
    %v1318 = vld [vmem:[%s5 + $0x70] sm:$0xff]
    %v1319 = vld [vmem:[%s5 + $0x78] sm:$0xff]
    %v1320 = vld [vmem:[%s5 + $0x80] sm:$0xff]
    %v1321 = vld [vmem:[%s5 + $0x88] sm:$0xff]
    %v1322 = vld [vmem:[%s5 + $0x90] sm:$0xff]
    %v1323 = vld [vmem:[%s5 + $0x98] sm:$0xff]
    %v1324 = vld [vmem:[%s5 + $0xa0] sm:$0xff]
    %v1325 = vld [vmem:[%s5 + $0xa8] sm:$0xff]
    %v1326 = vld [vmem:[%s5 + $0xb0] sm:$0xff]
    %v1327 = vld [vmem:[%s5 + $0xb8] sm:$0xff]
    %v1328 = vld [vmem:[%s5 + $0xc0] sm:$0xff]
    %v1329 = vld [vmem:[%s5 + $0xc8] sm:$0xff]
    %v1330 = vld [vmem:[%s5 + $0xd0] sm:$0xff]
    %v1331 = vld [vmem:[%s5 + $0xd8] sm:$0xff]
    %v1332 = vld [vmem:[%s5 + $0xe0] sm:$0xff]
    %v1333 = vld [vmem:[%s5 + $0xe8] sm:$0xff]
    %v1334 = vld [vmem:[%s5 + $0xf0] sm:$0xff]
    %v1335 = vld [vmem:[%s5 + $0xf8] sm:$0xff]
    %v1336 = vld [vmem:[%s5 + $0x100] sm:$0xff]
    %v1337 = vld [vmem:[%s5 + $0x108] sm:$0xff]
    %v1338 = vld [vmem:[%s5 + $0x110] sm:$0xff]
    %v1339 = vld [vmem:[%s5 + $0x118] sm:$0xff]
    %v1340 = vld [vmem:[%s5 + $0x120] sm:$0xff]
    %v1341 = vld [vmem:[%s5 + $0x128] sm:$0xff]
    %v1342 = vld [vmem:[%s5 + $0x130] sm:$0xff]
    %v1343 = vld [vmem:[%s5 + $0x138] sm:$0xff]
    %v1344 = vld [vmem:[%s5 + $0x140] sm:$0xff]
    %v1345 = vld [vmem:[%s5 + $0x148] sm:$0xff]
    %v1346 = vld [vmem:[%s5 + $0x150] sm:$0xff]
    %v1347 = vld [vmem:[%s5 + $0x158] sm:$0xff]
    %v1348 = vld [vmem:[%s5 + $0x160] sm:$0xff]
    %v1349 = vld [vmem:[%s5 + $0x168] sm:$0xff]
    %v1350 = vld [vmem:[%s5 + $0x170] sm:$0xff]
    %v1351 = vld [vmem:[%s5 + $0x178] sm:$0xff]
    %v1352 = vld [vmem:[%s5 + $0x180] sm:$0xff]
    %v1353 = vld [vmem:[%s5 + $0x188] sm:$0xff]
    %v1354 = vld [vmem:[%s5 + $0x190] sm:$0xff]
    %v1355 = vld [vmem:[%s5 + $0x198] sm:$0xff]
    %v1356 = vld [vmem:[%s5 + $0x1a0] sm:$0xff]
    %v1357 = vld [vmem:[%s5 + $0x1a8] sm:$0xff]
    %v1358 = vld [vmem:[%s5 + $0x1b0] sm:$0xff]
    %v1359 = vld [vmem:[%s5 + $0x1b8] sm:$0xff]
    %v1360 = vld [vmem:[%s5 + $0x1c0] sm:$0xff]
    %v1361 = vld [vmem:[%s5 + $0x1c8] sm:$0xff]
    %v1362 = vld [vmem:[%s5 + $0x1d0] sm:$0xff]
    %v1363 = vld [vmem:[%s5 + $0x1d8] sm:$0xff]
    %v1364 = vld [vmem:[%s5 + $0x1e0] sm:$0xff]
    %v1365 = vld [vmem:[%s5 + $0x1e8] sm:$0xff]
    %v1366 = vld [vmem:[%s5 + $0x1f0] sm:$0xff]
    %v1367 = vld [vmem:[%s5 + $0x1f8] sm:$0xff]
    %v1368 = vld [vmem:[%s5 + $0x200] sm:$0xff]
    %v1369 = vld [vmem:[%s5 + $0x208] sm:$0xff]
    %v1370 = vld [vmem:[%s5 + $0x210] sm:$0xff]
    %v1371 = vld [vmem:[%s5 + $0x218] sm:$0xff]
    %v1372 = vld [vmem:[%s5 + $0x220] sm:$0xff]
    %v1373 = vld [vmem:[%s5 + $0x228] sm:$0xff]
    %v1374 = vld [vmem:[%s5 + $0x230] sm:$0xff]
    %v1375 = vld [vmem:[%s5 + $0x238] sm:$0xff]
    %v1376 = vld [vmem:[%s5 + $0x240] sm:$0xff]
    %v1377 = vld [vmem:[%s5 + $0x248] sm:$0xff]
    %v1378 = vld [vmem:[%s5 + $0x250] sm:$0xff]
    %v1379 = vld [vmem:[%s5 + $0x258] sm:$0xff]
    %v1380 = vld [vmem:[%s5 + $0x260] sm:$0xff]
    %v1381 = vld [vmem:[%s5 + $0x268] sm:$0xff]
    %v1382 = vld [vmem:[%s5 + $0x270] sm:$0xff]
    %v1383 = vld [vmem:[%s5 + $0x278] sm:$0xff]
    %v1384 = vld [vmem:[%s5 + $0x280] sm:$0xff]
    %v1385 = vld [vmem:[%s5 + $0x288] sm:$0xff]
    %v1386 = vld [vmem:[%s5 + $0x290] sm:$0xff]
    %v1387 = vld [vmem:[%s5 + $0x298] sm:$0xff]
    %v1388 = vld [vmem:[%s5 + $0x2a0] sm:$0xff]
    %v1389 = vld [vmem:[%s5 + $0x2a8] sm:$0xff]
    %v1390 = vld [vmem:[%s5 + $0x2b0] sm:$0xff]
    %v1391 = vld [vmem:[%s5 + $0x2b8] sm:$0xff]
    %v1392 = vld [vmem:[%s5 + $0x2c0] sm:$0xff]
    %v1393 = vld [vmem:[%s5 + $0x2c8] sm:$0xff]
    %v1394 = vld [vmem:[%s5 + $0x2d0] sm:$0xff]
    %v1395 = vld [vmem:[%s5 + $0x2d8] sm:$0xff]
    %v1396 = vld [vmem:[%s5 + $0x2e0] sm:$0xff]
    %v1397 = vld [vmem:[%s5 + $0x2e8] sm:$0xff]
    %v1398 = vld [vmem:[%s5 + $0x2f0] sm:$0xff]
    %v1399 = vld [vmem:[%s5 + $0x2f8] sm:$0xff]
    %v1400 = vld [vmem:[%s5 + $0x300] sm:$0xff]
    %v1401 = vld [vmem:[%s5 + $0x308] sm:$0xff]
    %v1402 = vld [vmem:[%s5 + $0x310] sm:$0xff]
    %v1403 = vld [vmem:[%s5 + $0x318] sm:$0xff]
    %v1404 = vld [vmem:[%s5 + $0x320] sm:$0xff]
    %v1405 = vld [vmem:[%s5 + $0x328] sm:$0xff]
    %v1406 = vld [vmem:[%s5 + $0x330] sm:$0xff]
    %v1407 = vld [vmem:[%s5 + $0x338] sm:$0xff]
    %v1408 = vld [vmem:[%s5 + $0x340] sm:$0xff]
    %v1409 = vld [vmem:[%s5 + $0x348] sm:$0xff]
    %v1410 = vld [vmem:[%s5 + $0x350] sm:$0xff]
    %v1411 = vld [vmem:[%s5 + $0x358] sm:$0xff]
    %v1412 = vld [vmem:[%s5 + $0x360] sm:$0xff]
    %v1413 = vld [vmem:[%s5 + $0x368] sm:$0xff]
    %v1414 = vld [vmem:[%s5 + $0x370] sm:$0xff]
    %v1415 = vld [vmem:[%s5 + $0x378] sm:$0xff]
    %v1416 = vld [vmem:[%s5 + $0x380] sm:$0xff]
    %v1417 = vld [vmem:[%s5 + $0x388] sm:$0xff]
    %v1418 = vld [vmem:[%s5 + $0x390] sm:$0xff]
    %v1419 = vld [vmem:[%s5 + $0x398] sm:$0xff]
    %v1420 = vld [vmem:[%s5 + $0x3a0] sm:$0xff]
    %v1421 = vld [vmem:[%s5 + $0x3a8] sm:$0xff]
    %v1422 = vld [vmem:[%s5 + $0x3b0] sm:$0xff]
    %v1423 = vld [vmem:[%s5 + $0x3b8] sm:$0xff]
    %v1424 = vld [vmem:[%s5 + $0x3c0] sm:$0xff]
    %v1425 = vld [vmem:[%s5 + $0x3c8] sm:$0xff]
    %v1426 = vld [vmem:[%s5 + $0x3d0] sm:$0xff]
    %v1427 = vld [vmem:[%s5 + $0x3d8] sm:$0xff]
    %v1428 = vld [vmem:[%s5 + $0x3e0] sm:$0xff]
    %v1429 = vld [vmem:[%s5 + $0x3e8] sm:$0xff]
    %v1430 = vld [vmem:[%s5 + $0x3f0] sm:$0xff]
    %v1431 = vld [vmem:[%s5 + $0x3f8] sm:$0xff]
    %v1432 = vld [vmem:[%s5 + $0x400] sm:$0xff]
    %v1433 = vld [vmem:[%s5 + $0x408] sm:$0xff]
    %v1434 = vld [vmem:[%s5 + $0x410] sm:$0xff]
    %v1435 = vld [vmem:[%s5 + $0x418] sm:$0xff]
    %v1436 = vld [vmem:[%s5 + $0x420] sm:$0xff]
    %v1437 = vld [vmem:[%s5 + $0x428] sm:$0xff]
    %v1438 = vld [vmem:[%s5 + $0x430] sm:$0xff]
    %v1439 = vld [vmem:[%s5 + $0x438] sm:$0xff]
    %v1440 = vld [vmem:[%s5 + $0x440] sm:$0xff]
    %v1441 = vld [vmem:[%s5 + $0x448] sm:$0xff]
    %v1442 = vld [vmem:[%s5 + $0x450] sm:$0xff]
    %v1443 = vld [vmem:[%s5 + $0x458] sm:$0xff]
    %v1444 = vld [vmem:[%s5 + $0x460] sm:$0xff]
    %v1445 = vld [vmem:[%s5 + $0x468] sm:$0xff]
    %v1446 = vld [vmem:[%s5 + $0x470] sm:$0xff]
    %v1447 = vld [vmem:[%s5 + $0x478] sm:$0xff]
    %v1448 = vld [vmem:[%s5 + $0x480] sm:$0xff]
    %v1449 = vld [vmem:[%s5 + $0x488] sm:$0xff]
    %v1450 = vld [vmem:[%s5 + $0x490] sm:$0xff]
    %v1451 = vld [vmem:[%s5 + $0x498] sm:$0xff]
    %v1452 = vld [vmem:[%s5 + $0x4a0] sm:$0xff]
    %v1453 = vld [vmem:[%s5 + $0x4a8] sm:$0xff]
    %v1454 = vld [vmem:[%s5 + $0x4b0] sm:$0xff]
    %v1455 = vld [vmem:[%s5 + $0x4b8] sm:$0xff]
    %v1456 = vld [vmem:[%s5 + $0x4c0] sm:$0xff]
    %v1457 = vld [vmem:[%s5 + $0x4c8] sm:$0xff]
    %v1458 = vld [vmem:[%s5 + $0x4d0] sm:$0xff]
    %v1459 = vld [vmem:[%s5 + $0x4d8] sm:$0xff]
    %v1460 = vld [vmem:[%s5 + $0x4e0] sm:$0xff]
    %v1461 = vld [vmem:[%s5 + $0x4e8] sm:$0xff]
    %v1462 = vld [vmem:[%s5 + $0x4f0] sm:$0xff]
    %v1463 = vld [vmem:[%s5 + $0x4f8] sm:$0xff]
    %v1464 = vld [vmem:[%s5 + $0x500] sm:$0xff]
    %v1465 = vld [vmem:[%s5 + $0x508] sm:$0xff]
    %v1466 = vld [vmem:[%s5 + $0x510] sm:$0xff]
    %v1467 = vld [vmem:[%s5 + $0x518] sm:$0xff]
    %v1468 = vld [vmem:[%s5 + $0x520] sm:$0xff]
    %v1469 = vld [vmem:[%s5 + $0x528] sm:$0xff]
    %v1470 = vld [vmem:[%s5 + $0x530] sm:$0xff]
    %v1471 = vld [vmem:[%s5 + $0x538] sm:$0xff]
    %v1472 = vld [vmem:[%s5 + $0x540] sm:$0xff]
    %v1473 = vld [vmem:[%s5 + $0x548] sm:$0xff]
    %v1474 = vld [vmem:[%s5 + $0x550] sm:$0xff]
    %v1475 = vld [vmem:[%s5 + $0x558] sm:$0xff]
    %v1476 = vld [vmem:[%s5 + $0x560] sm:$0xff]
    %v1477 = vld [vmem:[%s5 + $0x568] sm:$0xff]
    %v1478 = vld [vmem:[%s5 + $0x570] sm:$0xff]
    %v1479 = vld [vmem:[%s5 + $0x578] sm:$0xff]
    %v1480 = vld [vmem:[%s5 + $0x580] sm:$0xff]
    %v1481 = vld [vmem:[%s5 + $0x588] sm:$0xff]
    %v1482 = vld [vmem:[%s5 + $0x590] sm:$0xff]
    %v1483 = vld [vmem:[%s5 + $0x598] sm:$0xff]
    %v1484 = vld [vmem:[%s5 + $0x5a0] sm:$0xff]
    %v1485 = vld [vmem:[%s5 + $0x5a8] sm:$0xff]
    %v1486 = vld [vmem:[%s5 + $0x5b0] sm:$0xff]
    %v1487 = vld [vmem:[%s5 + $0x5b8] sm:$0xff]
    %v1488 = vld [vmem:[%s5 + $0x5c0] sm:$0xff]
    %v1489 = vld [vmem:[%s5 + $0x5c8] sm:$0xff]
    %v1490 = vld [vmem:[%s5 + $0x5d0] sm:$0xff]
    %v1491 = vld [vmem:[%s5 + $0x5d8] sm:$0xff]
    %v1492 = vld [vmem:[%s5 + $0x5e0] sm:$0xff]
    %v1493 = vld [vmem:[%s5 + $0x5e8] sm:$0xff]
    %v1494 = vld [vmem:[%s5 + $0x5f0] sm:$0xff]
    %v1495 = vld [vmem:[%s5 + $0x5f8] sm:$0xff]
    %v1496 = vld [vmem:[%s5 + $0x600] sm:$0xff]
    %v1497 = vld [vmem:[%s5 + $0x608] sm:$0xff]
    %v1498 = vld [vmem:[%s5 + $0x610] sm:$0xff]
    %v1499 = vld [vmem:[%s5 + $0x618] sm:$0xff]
    %v1500 = vld [vmem:[%s5 + $0x620] sm:$0xff]
    %v1501 = vld [vmem:[%s5 + $0x628] sm:$0xff]
    %v1502 = vld [vmem:[%s5 + $0x630] sm:$0xff]
    %v1503 = vld [vmem:[%s5 + $0x638] sm:$0xff]
    %v1504 = vld [vmem:[%s5 + $0x640] sm:$0xff]
    %v1505 = vld [vmem:[%s5 + $0x648] sm:$0xff]
    %v1506 = vld [vmem:[%s5 + $0x650] sm:$0xff]
    %v1507 = vld [vmem:[%s5 + $0x658] sm:$0xff]
    %v1508 = vld [vmem:[%s5 + $0x660] sm:$0xff]
    %v1509 = vld [vmem:[%s5 + $0x668] sm:$0xff]
    %v1510 = vld [vmem:[%s5 + $0x670] sm:$0xff]
    %v1511 = vld [vmem:[%s5 + $0x678] sm:$0xff]
    %v1512 = vld [vmem:[%s5 + $0x680] sm:$0xff]
    %v1513 = vld [vmem:[%s5 + $0x688] sm:$0xff]
    %v1514 = vld [vmem:[%s5 + $0x690] sm:$0xff]
    %v1515 = vld [vmem:[%s5 + $0x698] sm:$0xff]
    %v1516 = vld [vmem:[%s5 + $0x6a0] sm:$0xff]
    %v1517 = vld [vmem:[%s5 + $0x6a8] sm:$0xff]
    %v1518 = vld [vmem:[%s5 + $0x6b0] sm:$0xff]
    %v1519 = vld [vmem:[%s5 + $0x6b8] sm:$0xff]
    %v1520 = vld [vmem:[%s5 + $0x6c0] sm:$0xff]
    %v1521 = vld [vmem:[%s5 + $0x6c8] sm:$0xff]
    %v1522 = vld [vmem:[%s5 + $0x6d0] sm:$0xff]
    %v1523 = vld [vmem:[%s5 + $0x6d8] sm:$0xff]
    %v1524 = vld [vmem:[%s5 + $0x6e0] sm:$0xff]
    %v1525 = vld [vmem:[%s5 + $0x6e8] sm:$0xff]
    %v1526 = vld [vmem:[%s5 + $0x6f0] sm:$0xff]
    %v1527 = vld [vmem:[%s5 + $0x6f8] sm:$0xff]
    %v1528 = vld [vmem:[%s5 + $0x700] sm:$0xff]
    %v1529 = vld [vmem:[%s5 + $0x708] sm:$0xff]
    %v1530 = vld [vmem:[%s5 + $0x710] sm:$0xff]
    %v1531 = vld [vmem:[%s5 + $0x718] sm:$0xff]
    %v1532 = vld [vmem:[%s5 + $0x720] sm:$0xff]
    %v1533 = vld [vmem:[%s5 + $0x728] sm:$0xff]
    %v1534 = vld [vmem:[%s5 + $0x730] sm:$0xff]
    %v1535 = vld [vmem:[%s5 + $0x738] sm:$0xff]
    %v1536 = vld [vmem:[%s5 + $0x740] sm:$0xff]
    %v1537 = vld [vmem:[%s5 + $0x748] sm:$0xff]
    %v1538 = vld [vmem:[%s5 + $0x750] sm:$0xff]
    %v1539 = vld [vmem:[%s5 + $0x758] sm:$0xff]
    %v1540 = vld [vmem:[%s5 + $0x760] sm:$0xff]
    %v1541 = vld [vmem:[%s5 + $0x768] sm:$0xff]
    %v1542 = vld [vmem:[%s5 + $0x770] sm:$0xff]
    %v1543 = vld [vmem:[%s5 + $0x778] sm:$0xff]
    %v1544 = vld [vmem:[%s5 + $0x780] sm:$0xff]
    %v1545 = vld [vmem:[%s5 + $0x788] sm:$0xff]
    %v1546 = vld [vmem:[%s5 + $0x790] sm:$0xff]
    %v1547 = vld [vmem:[%s5 + $0x798] sm:$0xff]
    %v1548 = vld [vmem:[%s5 + $0x7a0] sm:$0xff]
    %v1549 = vld [vmem:[%s5 + $0x7a8] sm:$0xff]
    %v1550 = vld [vmem:[%s5 + $0x7b0] sm:$0xff]
    %v1551 = vld [vmem:[%s5 + $0x7b8] sm:$0xff]
    %v1552 = vld [vmem:[%s5 + $0x7c0] sm:$0xff]
    %v1553 = vld [vmem:[%s5 + $0x7c8] sm:$0xff]
    %v1554 = vld [vmem:[%s5 + $0x7d0] sm:$0xff]
    %v1555 = vld [vmem:[%s5 + $0x7d8] sm:$0xff]
    %v1556 = vld [vmem:[%s5 + $0x7e0] sm:$0xff]
    %v1557 = vld [vmem:[%s5 + $0x7e8] sm:$0xff]
    %v1558 = vld [vmem:[%s5 + $0x7f0] sm:$0xff]
    %v1559 = vld [vmem:[%s5 + $0x7f8] sm:$0xff]
    %v1560 = vld [vmem:[%s5 + $0x800] sm:$0xff]
    %v1561 = vld [vmem:[%s5 + $0x808] sm:$0xff]
    %v1562 = vld [vmem:[%s5 + $0x810] sm:$0xff]
    %v1563 = vld [vmem:[%s5 + $0x818] sm:$0xff]
    %v1564 = vld [vmem:[%s5 + $0x820] sm:$0xff]
    %v1565 = vld [vmem:[%s5 + $0x828] sm:$0xff]
    %v1566 = vld [vmem:[%s5 + $0x830] sm:$0xff]
    %v1567 = vld [vmem:[%s5 + $0x838] sm:$0xff]
    %v1568 = vld [vmem:[%s5 + $0x840] sm:$0xff]
    %v1569 = vld [vmem:[%s5 + $0x848] sm:$0xff]
    %v1570 = vld [vmem:[%s5 + $0x850] sm:$0xff]
    %v1571 = vld [vmem:[%s5 + $0x858] sm:$0xff]
    %v1572 = vld [vmem:[%s5 + $0x860] sm:$0xff]
    %v1573 = vld [vmem:[%s5 + $0x868] sm:$0xff]
    %v1574 = vld [vmem:[%s5 + $0x870] sm:$0xff]
    %v1575 = vld [vmem:[%s5 + $0x878] sm:$0xff]
    %v1576 = vld [vmem:[%s5 + $0x880] sm:$0xff]
    %v1577 = vld [vmem:[%s5 + $0x888] sm:$0xff]
    %v1578 = vld [vmem:[%s5 + $0x890] sm:$0xff]
    %v1579 = vld [vmem:[%s5 + $0x898] sm:$0xff]
    %v1580 = vld [vmem:[%s5 + $0x8a0] sm:$0xff]
    %v1581 = vld [vmem:[%s5 + $0x8a8] sm:$0xff]
    %v1582 = vld [vmem:[%s5 + $0x8b0] sm:$0xff]
    %v1583 = vld [vmem:[%s5 + $0x8b8] sm:$0xff]
    %v1584 = vld [vmem:[%s5 + $0x8c0] sm:$0xff]
    %v1585 = vld [vmem:[%s5 + $0x8c8] sm:$0xff]
    %v1586 = vld [vmem:[%s5 + $0x8d0] sm:$0xff]
    %v1587 = vld [vmem:[%s5 + $0x8d8] sm:$0xff]
    %v1588 = vld [vmem:[%s5 + $0x8e0] sm:$0xff]
    %v1589 = vld [vmem:[%s5 + $0x8e8] sm:$0xff]
    %v1590 = vld [vmem:[%s5 + $0x8f0] sm:$0xff]
    %v1591 = vld [vmem:[%s5 + $0x8f8] sm:$0xff]
    %v1592 = vld [vmem:[%s5 + $0x900] sm:$0xff]
    %v1593 = vld [vmem:[%s5 + $0x908] sm:$0xff]
    %v1594 = vld [vmem:[%s5 + $0x910] sm:$0xff]
    %v1595 = vld [vmem:[%s5 + $0x918] sm:$0xff]
    %v1596 = vld [vmem:[%s5 + $0x920] sm:$0xff]
    %v1597 = vld [vmem:[%s5 + $0x928] sm:$0xff]
    %v1598 = vld [vmem:[%s5 + $0x930] sm:$0xff]
    %v1599 = vld [vmem:[%s5 + $0x938] sm:$0xff]
    %v1600 = vld [vmem:[%s5 + $0x940] sm:$0xff]
    %v1601 = vld [vmem:[%s5 + $0x948] sm:$0xff]
    %v1602 = vld [vmem:[%s5 + $0x950] sm:$0xff]
    %v1603 = vld [vmem:[%s5 + $0x958] sm:$0xff]
    %v1604 = vld [vmem:[%s5 + $0x960] sm:$0xff]
    %v1605 = vld [vmem:[%s5 + $0x968] sm:$0xff]
    %v1606 = vld [vmem:[%s5 + $0x970] sm:$0xff]
    %v1607 = vld [vmem:[%s5 + $0x978] sm:$0xff]
    %v1608 = vld [vmem:[%s5 + $0x980] sm:$0xff]
    %v1609 = vld [vmem:[%s5 + $0x988] sm:$0xff]
    %v1610 = vld [vmem:[%s5 + $0x990] sm:$0xff]
    %v1611 = vld [vmem:[%s5 + $0x998] sm:$0xff]
    %v1612 = vld [vmem:[%s5 + $0x9a0] sm:$0xff]
    %v1613 = vld [vmem:[%s5 + $0x9a8] sm:$0xff]
    %v1614 = vld [vmem:[%s5 + $0x9b0] sm:$0xff]
    %v1615 = vld [vmem:[%s5 + $0x9b8] sm:$0xff]
    %v1616 = vld [vmem:[%s5 + $0x9c0] sm:$0xff]
    %v1617 = vld [vmem:[%s5 + $0x9c8] sm:$0xff]
    %v1618 = vld [vmem:[%s5 + $0x9d0] sm:$0xff]
    %v1619 = vld [vmem:[%s5 + $0x9d8] sm:$0xff]
    %v1620 = vld [vmem:[%s5 + $0x9e0] sm:$0xff]
    %v1621 = vld [vmem:[%s5 + $0x9e8] sm:$0xff]
    %v1622 = vld [vmem:[%s5 + $0x9f0] sm:$0xff]
    %v1623 = vld [vmem:[%s5 + $0x9f8] sm:$0xff]
    %v1624 = vld [vmem:[%s5 + $0xa00] sm:$0xff]
    %v1625 = vld [vmem:[%s5 + $0xa08] sm:$0xff]
    %v1626 = vld [vmem:[%s5 + $0xa10] sm:$0xff]
    %v1627 = vld [vmem:[%s5 + $0xa18] sm:$0xff]
    %v1628 = vld [vmem:[%s5 + $0xa20] sm:$0xff]
    %v1629 = vld [vmem:[%s5 + $0xa28] sm:$0xff]
    %v1630 = vld [vmem:[%s5 + $0xa30] sm:$0xff]
    %v1631 = vld [vmem:[%s5 + $0xa38] sm:$0xff]
    %v1632 = vld [vmem:[%s5 + $0xa40] sm:$0xff]
    %v1633 = vld [vmem:[%s5 + $0xa48] sm:$0xff]
    %v1634 = vld [vmem:[%s5 + $0xa50] sm:$0xff]
    %v1635 = vld [vmem:[%s5 + $0xa58] sm:$0xff]
    %v1636 = vld [vmem:[%s5 + $0xa60] sm:$0xff]
    %v1637 = vld [vmem:[%s5 + $0xa68] sm:$0xff]
    %v1638 = vld [vmem:[%s5 + $0xa70] sm:$0xff]
    %v1639 = vld [vmem:[%s5 + $0xa78] sm:$0xff]
    %v1640 = vld [vmem:[%s5 + $0xa80] sm:$0xff]
    %v1641 = vld [vmem:[%s5 + $0xa88] sm:$0xff]
    %v1642 = vld [vmem:[%s5 + $0xa90] sm:$0xff]
    %v1643 = vld [vmem:[%s5 + $0xa98] sm:$0xff]
    %v1644 = vld [vmem:[%s5 + $0xaa0] sm:$0xff]
    %v1645 = vld [vmem:[%s5 + $0xaa8] sm:$0xff]
    %v1646 = vld [vmem:[%s5 + $0xab0] sm:$0xff]
    %v1647 = vld [vmem:[%s5 + $0xab8] sm:$0xff]
    %v1648 = vld [vmem:[%s5 + $0xac0] sm:$0xff]
    %v1649 = vld [vmem:[%s5 + $0xac8] sm:$0xff]
    %v1650 = vld [vmem:[%s5 + $0xad0] sm:$0xff]
    %v1651 = vld [vmem:[%s5 + $0xad8] sm:$0xff]
    %v1652 = vld [vmem:[%s5 + $0xae0] sm:$0xff]
    %v1653 = vld [vmem:[%s5 + $0xae8] sm:$0xff]
    %v1654 = vld [vmem:[%s5 + $0xaf0] sm:$0xff]
    %v1655 = vld [vmem:[%s5 + $0xaf8] sm:$0xff]
    %v1656 = vld [vmem:[%s5 + $0xb00] sm:$0xff]
    %v1657 = vld [vmem:[%s5 + $0xb08] sm:$0xff]
    %v1658 = vld [vmem:[%s5 + $0xb10] sm:$0xff]
    %v1659 = vld [vmem:[%s5 + $0xb18] sm:$0xff]
    %v1660 = vld [vmem:[%s5 + $0xb20] sm:$0xff]
    %v1661 = vld [vmem:[%s5 + $0xb28] sm:$0xff]
    %v1662 = vld [vmem:[%s5 + $0xb30] sm:$0xff]
    %v1663 = vld [vmem:[%s5 + $0xb38] sm:$0xff]
    %v1664 = vld [vmem:[%s5 + $0xb40] sm:$0xff]
    %v1665 = vld [vmem:[%s5 + $0xb48] sm:$0xff]
    %v1666 = vld [vmem:[%s5 + $0xb50] sm:$0xff]
    %v1667 = vld [vmem:[%s5 + $0xb58] sm:$0xff]
    %v1668 = vld [vmem:[%s5 + $0xb60] sm:$0xff]
    %v1669 = vld [vmem:[%s5 + $0xb68] sm:$0xff]
    %v1670 = vld [vmem:[%s5 + $0xb70] sm:$0xff]
    %v1671 = vld [vmem:[%s5 + $0xb78] sm:$0xff]
    %v1672 = vld [vmem:[%s5 + $0xb80] sm:$0xff]
    %v1673 = vld [vmem:[%s5 + $0xb88] sm:$0xff]
    %v1674 = vld [vmem:[%s5 + $0xb90] sm:$0xff]
    %v1675 = vld [vmem:[%s5 + $0xb98] sm:$0xff]
    %v1676 = vld [vmem:[%s5 + $0xba0] sm:$0xff]
    %v1677 = vld [vmem:[%s5 + $0xba8] sm:$0xff]
    %v1678 = vld [vmem:[%s5 + $0xbb0] sm:$0xff]
    %v1679 = vld [vmem:[%s5 + $0xbb8] sm:$0xff]
    %v1680 = vld [vmem:[%s5 + $0xbc0] sm:$0xff]
    %v1681 = vld [vmem:[%s5 + $0xbc8] sm:$0xff]
    %v1682 = vld [vmem:[%s5 + $0xbd0] sm:$0xff]
    %v1683 = vld [vmem:[%s5 + $0xbd8] sm:$0xff]
    %v1684 = vld [vmem:[%s5 + $0xbe0] sm:$0xff]
    %v1685 = vld [vmem:[%s5 + $0xbe8] sm:$0xff]
    %v1686 = vld [vmem:[%s5 + $0xbf0] sm:$0xff]
    %v1687 = vld [vmem:[%s5 + $0xbf8] sm:$0xff]
    %v1688 = vld [vmem:[%s5 + $0xc00] sm:$0xff]
    %v1689 = vld [vmem:[%s5 + $0xc08] sm:$0xff]
    %v1690 = vld [vmem:[%s5 + $0xc10] sm:$0xff]
    %v1691 = vld [vmem:[%s5 + $0xc18] sm:$0xff]
    %v1692 = vld [vmem:[%s5 + $0xc20] sm:$0xff]
    %v1693 = vld [vmem:[%s5 + $0xc28] sm:$0xff]
    %v1694 = vld [vmem:[%s5 + $0xc30] sm:$0xff]
    %v1695 = vld [vmem:[%s5 + $0xc38] sm:$0xff]
    %v1696 = vld [vmem:[%s5 + $0xc40] sm:$0xff]
    %v1697 = vld [vmem:[%s5 + $0xc48] sm:$0xff]
    %v1698 = vld [vmem:[%s5 + $0xc50] sm:$0xff]
    %v1699 = vld [vmem:[%s5 + $0xc58] sm:$0xff]
    %v1700 = vld [vmem:[%s5 + $0xc60] sm:$0xff]
    %v1701 = vld [vmem:[%s5 + $0xc68] sm:$0xff]
    %v1702 = vld [vmem:[%s5 + $0xc70] sm:$0xff]
    %v1703 = vld [vmem:[%s5 + $0xc78] sm:$0xff]
    %v1704 = vld [vmem:[%s5 + $0xc80] sm:$0xff]
    %v1705 = vld [vmem:[%s5 + $0xc88] sm:$0xff]
    %v1706 = vld [vmem:[%s5 + $0xc90] sm:$0xff]
    %v1707 = vld [vmem:[%s5 + $0xc98] sm:$0xff]
    %v1708 = vld [vmem:[%s5 + $0xca0] sm:$0xff]
    %v1709 = vld [vmem:[%s5 + $0xca8] sm:$0xff]
    %v1710 = vld [vmem:[%s5 + $0xcb0] sm:$0xff]
    %v1711 = vld [vmem:[%s5 + $0xcb8] sm:$0xff]
    %v1712 = vld [vmem:[%s5 + $0xcc0] sm:$0xff]
    %v1713 = vld [vmem:[%s5 + $0xcc8] sm:$0xff]
    %v1714 = vld [vmem:[%s5 + $0xcd0] sm:$0xff]
    %v1715 = vld [vmem:[%s5 + $0xcd8] sm:$0xff]
    %v1716 = vld [vmem:[%s5 + $0xce0] sm:$0xff]
    %v1717 = vld [vmem:[%s5 + $0xce8] sm:$0xff]
    %v1718 = vld [vmem:[%s5 + $0xcf0] sm:$0xff]
    %v1719 = vld [vmem:[%s5 + $0xcf8] sm:$0xff]
    %v1720 = vld [vmem:[%s5 + $0xd00] sm:$0xff]
    %v1721 = vld [vmem:[%s5 + $0xd08] sm:$0xff]
    %v1722 = vld [vmem:[%s5 + $0xd10] sm:$0xff]
    %v1723 = vld [vmem:[%s5 + $0xd18] sm:$0xff]
    %v1724 = vld [vmem:[%s5 + $0xd20] sm:$0xff]
    %v1725 = vld [vmem:[%s5 + $0xd28] sm:$0xff]
    %v1726 = vld [vmem:[%s5 + $0xd30] sm:$0xff]
    %v1727 = vld [vmem:[%s5 + $0xd38] sm:$0xff]
    %v1728 = vld [vmem:[%s5 + $0xd40] sm:$0xff]
    %v1729 = vld [vmem:[%s5 + $0xd48] sm:$0xff]
    %v1730 = vld [vmem:[%s5 + $0xd50] sm:$0xff]
    %v1731 = vld [vmem:[%s5 + $0xd58] sm:$0xff]
    %v1732 = vld [vmem:[%s5 + $0xd60] sm:$0xff]
    %v1733 = vld [vmem:[%s5 + $0xd68] sm:$0xff]
    %v1734 = vld [vmem:[%s5 + $0xd70] sm:$0xff]
    %v1735 = vld [vmem:[%s5 + $0xd78] sm:$0xff]
    %v1736 = vld [vmem:[%s5 + $0xd80] sm:$0xff]
    %v1737 = vld [vmem:[%s5 + $0xd88] sm:$0xff]
    %v1738 = vld [vmem:[%s5 + $0xd90] sm:$0xff]
    %v1739 = vld [vmem:[%s5 + $0xd98] sm:$0xff]
    %v1740 = vld [vmem:[%s5 + $0xda0] sm:$0xff]
    %v1741 = vld [vmem:[%s5 + $0xda8] sm:$0xff]
    %v1742 = vld [vmem:[%s5 + $0xdb0] sm:$0xff]
    %v1743 = vld [vmem:[%s5 + $0xdb8] sm:$0xff]
    %v1744 = vld [vmem:[%s5 + $0xdc0] sm:$0xff]
    %v1745 = vld [vmem:[%s5 + $0xdc8] sm:$0xff]
    %v1746 = vld [vmem:[%s5 + $0xdd0] sm:$0xff]
    %v1747 = vld [vmem:[%s5 + $0xdd8] sm:$0xff]
    %v1748 = vld [vmem:[%s5 + $0xde0] sm:$0xff]
    %v1749 = vld [vmem:[%s5 + $0xde8] sm:$0xff]
    %v1750 = vld [vmem:[%s5 + $0xdf0] sm:$0xff]
    %v1751 = vld [vmem:[%s5 + $0xdf8] sm:$0xff]
    %v1752 = vld [vmem:[%s5 + $0xe00] sm:$0xff]
    %v1753 = vld [vmem:[%s5 + $0xe08] sm:$0xff]
    %v1754 = vld [vmem:[%s5 + $0xe10] sm:$0xff]
    %v1755 = vld [vmem:[%s5 + $0xe18] sm:$0xff]
    %v1756 = vld [vmem:[%s5 + $0xe20] sm:$0xff]
    %v1757 = vld [vmem:[%s5 + $0xe28] sm:$0xff]
    %v1758 = vld [vmem:[%s5 + $0xe30] sm:$0xff]
    %v1759 = vld [vmem:[%s5 + $0xe38] sm:$0xff]
    %v1760 = vld [vmem:[%s5 + $0xe40] sm:$0xff]
    %v1761 = vld [vmem:[%s5 + $0xe48] sm:$0xff]
    %v1762 = vld [vmem:[%s5 + $0xe50] sm:$0xff]
    %v1763 = vld [vmem:[%s5 + $0xe58] sm:$0xff]
    %v1764 = vld [vmem:[%s5 + $0xe60] sm:$0xff]
    %v1765 = vld [vmem:[%s5 + $0xe68] sm:$0xff]
    %v1766 = vld [vmem:[%s5 + $0xe70] sm:$0xff]
    %v1767 = vld [vmem:[%s5 + $0xe78] sm:$0xff]
    %v1768 = vld [vmem:[%s5 + $0xe80] sm:$0xff]
    %v1769 = vld [vmem:[%s5 + $0xe88] sm:$0xff]
    %v1770 = vld [vmem:[%s5 + $0xe90] sm:$0xff]
    %v1771 = vld [vmem:[%s5 + $0xe98] sm:$0xff]
    %v1772 = vld [vmem:[%s5 + $0xea0] sm:$0xff]
    %v1773 = vld [vmem:[%s5 + $0xea8] sm:$0xff]
    %v1774 = vld [vmem:[%s5 + $0xeb0] sm:$0xff]
    %v1775 = vld [vmem:[%s5 + $0xeb8] sm:$0xff]
    %v1776 = vld [vmem:[%s5 + $0xec0] sm:$0xff]
    %v1777 = vld [vmem:[%s5 + $0xec8] sm:$0xff]
    %v1778 = vld [vmem:[%s5 + $0xed0] sm:$0xff]
    %v1779 = vld [vmem:[%s5 + $0xed8] sm:$0xff]
    %v1780 = vld [vmem:[%s5 + $0xee0] sm:$0xff]
    %v1781 = vld [vmem:[%s5 + $0xee8] sm:$0xff]
    %v1782 = vld [vmem:[%s5 + $0xef0] sm:$0xff]
    %v1783 = vld [vmem:[%s5 + $0xef8] sm:$0xff]
    %v1784 = vld [vmem:[%s5 + $0xf00] sm:$0xff]
    %v1785 = vld [vmem:[%s5 + $0xf08] sm:$0xff]
    %v1786 = vld [vmem:[%s5 + $0xf10] sm:$0xff]
    %v1787 = vld [vmem:[%s5 + $0xf18] sm:$0xff]
    %v1788 = vld [vmem:[%s5 + $0xf20] sm:$0xff]
    %v1789 = vld [vmem:[%s5 + $0xf28] sm:$0xff]
    %v1790 = vld [vmem:[%s5 + $0xf30] sm:$0xff]
    %v1791 = vld [vmem:[%s5 + $0xf38] sm:$0xff]
    %v1792 = vld [vmem:[%s5 + $0xf40] sm:$0xff]
    %v1793 = vld [vmem:[%s5 + $0xf48] sm:$0xff]
    %v1794 = vld [vmem:[%s5 + $0xf50] sm:$0xff]
    %v1795 = vld [vmem:[%s5 + $0xf58] sm:$0xff]
    %v1796 = vld [vmem:[%s5 + $0xf60] sm:$0xff]
    %v1797 = vld [vmem:[%s5 + $0xf68] sm:$0xff]
    %v1798 = vld [vmem:[%s5 + $0xf70] sm:$0xff]
    %v1799 = vld [vmem:[%s5 + $0xf78] sm:$0xff]
    %v1800 = vld [vmem:[%s5 + $0xf80] sm:$0xff]
    %v1801 = vld [vmem:[%s5 + $0xf88] sm:$0xff]
    %v1802 = vld [vmem:[%s5 + $0xf90] sm:$0xff]
    %v1803 = vld [vmem:[%s5 + $0xf98] sm:$0xff]
    %v1804 = vld [vmem:[%s5 + $0xfa0] sm:$0xff]
    %v1805 = vld [vmem:[%s5 + $0xfa8] sm:$0xff]
    %v1806 = vld [vmem:[%s5 + $0xfb0] sm:$0xff]
    %v1807 = vld [vmem:[%s5 + $0xfb8] sm:$0xff]
    %v1808 = vld [vmem:[%s5 + $0xfc0] sm:$0xff]
    %v1809 = vld [vmem:[%s5 + $0xfc8] sm:$0xff]
    %v1810 = vld [vmem:[%s5 + $0xfd0] sm:$0xff]
    %v1811 = vld [vmem:[%s5 + $0xfd8] sm:$0xff]
    %v1812 = vld [vmem:[%s5 + $0xfe0] sm:$0xff]
    %v1813 = vld [vmem:[%s5 + $0xfe8] sm:$0xff]
    %v1814 = vld [vmem:[%s5 + $0xff0] sm:$0xff]
    %v1815 = vld [vmem:[%s5 + $0xff8] sm:$0xff]
    %v1816 = vld [vmem:[%s6] sm:$0xf]
    %v1818 = vperm.slane %v1816, 0
    %v1819 = vperm.slane %v1816, 1
    %v1820 = vperm.slane %v1816, 2
    %v1821 = vperm.slane %v1816, 3
    %1826 = vmatpush.msra.mxu0 %v1364
    %1827 = vmatpush.msra.mxu0 %v1360
    %1828 = vmatpush.msra.mxu0 %v1356
    %1829 = vmatpush.msra.mxu0 %v1352
    %1830 = vmatpush.msra.mxu0 %v1348
    %1831 = vmatpush.msra.mxu0 %v1344
    %1832 = vmatpush.msra.mxu0 %v1340
    %1833 = vmatpush.msra.mxu0 %v1336
    %1834 = vmatpush.msra.mxu0 %v1332
    %1835 = vmatpush.msra.mxu0 %v1328
    %1836 = vmatpush.msra.mxu0 %v1324
    %1837 = vmatpush.msra.mxu0 %v1320
    %1838 = vmatpush.msra.mxu0 %v1316
    %1839 = vmatpush.msra.mxu0 %v1312
    %1840 = vmatpush.msra.mxu0 %v1308
    %1841 = vmatpush.msra.mxu0 %v1304
    %1842 = vmatmul.f32.gmra.mxu0 %v1296
    %v1843 = vpop.f32.mrf.mxu0
    %v1844 = vadd.f32 %v1818, %v1843
    %1845 = vdwg.mxu0
    %1846 = vmatpush.msra.mxu0 %v1428
    %1847 = vmatpush.msra.mxu0 %v1424
    %1848 = vmatpush.msra.mxu0 %v1420
    %1849 = vmatpush.msra.mxu0 %v1416
    %1850 = vmatpush.msra.mxu0 %v1412
    %1851 = vmatpush.msra.mxu0 %v1408
    %1852 = vmatpush.msra.mxu0 %v1404
    %1853 = vmatpush.msra.mxu0 %v1400
    %1854 = vmatpush.msra.mxu0 %v1396
    %1855 = vmatpush.msra.mxu0 %v1392
    %1856 = vmatpush.msra.mxu0 %v1388
    %1857 = vmatpush.msra.mxu0 %v1384
    %1858 = vmatpush.msra.mxu0 %v1380
    %1859 = vmatpush.msra.mxu0 %v1376
    %1860 = vmatpush.msra.mxu0 %v1372
    %1861 = vmatpush.msra.mxu0 %v1368
    %1862 = vmatmul.f32.gmra.mxu0 %v1297
    %v1863 = vpop.f32.mrf.mxu0
    %v1864 = vadd.f32 %v1844, %v1863
    %1865 = vdwg.mxu0
    %1866 = vmatpush.msra.mxu0 %v1492
    %1867 = vmatpush.msra.mxu0 %v1488
    %1868 = vmatpush.msra.mxu0 %v1484
    %1869 = vmatpush.msra.mxu0 %v1480
    %1870 = vmatpush.msra.mxu0 %v1476
    %1871 = vmatpush.msra.mxu0 %v1472
    %1872 = vmatpush.msra.mxu0 %v1468
    %1873 = vmatpush.msra.mxu0 %v1464
    %1874 = vmatpush.msra.mxu0 %v1460
    %1875 = vmatpush.msra.mxu0 %v1456
    %1876 = vmatpush.msra.mxu0 %v1452
    %1877 = vmatpush.msra.mxu0 %v1448
    %1878 = vmatpush.msra.mxu0 %v1444
    %1879 = vmatpush.msra.mxu0 %v1440
    %1880 = vmatpush.msra.mxu0 %v1436
    %1881 = vmatpush.msra.mxu0 %v1432
    %1882 = vmatmul.f32.gmra.mxu0 %v1298
    %v1883 = vpop.f32.mrf.mxu0
    %v1884 = vadd.f32 %v1864, %v1883
    %1885 = vdwg.mxu0
    %1886 = vmatpush.msra.mxu0 %v1556
    %1887 = vmatpush.msra.mxu0 %v1552
    %1888 = vmatpush.msra.mxu0 %v1548
    %1889 = vmatpush.msra.mxu0 %v1544
    %1890 = vmatpush.msra.mxu0 %v1540
    %1891 = vmatpush.msra.mxu0 %v1536
    %1892 = vmatpush.msra.mxu0 %v1532
    %1893 = vmatpush.msra.mxu0 %v1528
    %1894 = vmatpush.msra.mxu0 %v1524
    %1895 = vmatpush.msra.mxu0 %v1520
    %1896 = vmatpush.msra.mxu0 %v1516
    %1897 = vmatpush.msra.mxu0 %v1512
    %1898 = vmatpush.msra.mxu0 %v1508
    %1899 = vmatpush.msra.mxu0 %v1504
    %1900 = vmatpush.msra.mxu0 %v1500
    %1901 = vmatpush.msra.mxu0 %v1496
    %1902 = vmatmul.f32.gmra.mxu0 %v1299
    %v1903 = vpop.f32.mrf.mxu0
    %v1904 = vadd.f32 %v1884, %v1903
    %1905 = vdwg.mxu0
    %1906 = vmatpush.msra.mxu0 %v1620
    %1907 = vmatpush.msra.mxu0 %v1616
    %1908 = vmatpush.msra.mxu0 %v1612
    %1909 = vmatpush.msra.mxu0 %v1608
    %1910 = vmatpush.msra.mxu0 %v1604
    %1911 = vmatpush.msra.mxu0 %v1600
    %1912 = vmatpush.msra.mxu0 %v1596
    %1913 = vmatpush.msra.mxu0 %v1592
    %1914 = vmatpush.msra.mxu0 %v1588
    %1915 = vmatpush.msra.mxu0 %v1584
    %1916 = vmatpush.msra.mxu0 %v1580
    %1917 = vmatpush.msra.mxu0 %v1576
    %1918 = vmatpush.msra.mxu0 %v1572
    %1919 = vmatpush.msra.mxu0 %v1568
    %1920 = vmatpush.msra.mxu0 %v1564
    %1921 = vmatpush.msra.mxu0 %v1560
    %1922 = vmatmul.f32.gmra.mxu0 %v1300
    %v1923 = vpop.f32.mrf.mxu0
    %v1924 = vadd.f32 %v1904, %v1923
    %1925 = vdwg.mxu0
    %1926 = vmatpush.msra.mxu0 %v1684
    %1927 = vmatpush.msra.mxu0 %v1680
    %1928 = vmatpush.msra.mxu0 %v1676
    %1929 = vmatpush.msra.mxu0 %v1672
    %1930 = vmatpush.msra.mxu0 %v1668
    %1931 = vmatpush.msra.mxu0 %v1664
    %1932 = vmatpush.msra.mxu0 %v1660
    %1933 = vmatpush.msra.mxu0 %v1656
    %1934 = vmatpush.msra.mxu0 %v1652
    %1935 = vmatpush.msra.mxu0 %v1648
    %1936 = vmatpush.msra.mxu0 %v1644
    %1937 = vmatpush.msra.mxu0 %v1640
    %1938 = vmatpush.msra.mxu0 %v1636
    %1939 = vmatpush.msra.mxu0 %v1632
    %1940 = vmatpush.msra.mxu0 %v1628
    %1941 = vmatpush.msra.mxu0 %v1624
    %1942 = vmatmul.f32.gmra.mxu0 %v1301
    %v1943 = vpop.f32.mrf.mxu0
    %v1944 = vadd.f32 %v1924, %v1943
    %1945 = vdwg.mxu0
    %1946 = vmatpush.msra.mxu0 %v1748
    %1947 = vmatpush.msra.mxu0 %v1744
    %1948 = vmatpush.msra.mxu0 %v1740
    %1949 = vmatpush.msra.mxu0 %v1736
    %1950 = vmatpush.msra.mxu0 %v1732
    %1951 = vmatpush.msra.mxu0 %v1728
    %1952 = vmatpush.msra.mxu0 %v1724
    %1953 = vmatpush.msra.mxu0 %v1720
    %1954 = vmatpush.msra.mxu0 %v1716
    %1955 = vmatpush.msra.mxu0 %v1712
    %1956 = vmatpush.msra.mxu0 %v1708
    %1957 = vmatpush.msra.mxu0 %v1704
    %1958 = vmatpush.msra.mxu0 %v1700
    %1959 = vmatpush.msra.mxu0 %v1696
    %1960 = vmatpush.msra.mxu0 %v1692
    %1961 = vmatpush.msra.mxu0 %v1688
    %1962 = vmatmul.f32.gmra.mxu0 %v1302
    %v1963 = vpop.f32.mrf.mxu0
    %v1964 = vadd.f32 %v1944, %v1963
    %1965 = vdwg.mxu0
    %1966 = vmatpush.msra.mxu0 %v1812
    %1967 = vmatpush.msra.mxu0 %v1808
    %1968 = vmatpush.msra.mxu0 %v1804
    %1969 = vmatpush.msra.mxu0 %v1800
    %1970 = vmatpush.msra.mxu0 %v1796
    %1971 = vmatpush.msra.mxu0 %v1792
    %1972 = vmatpush.msra.mxu0 %v1788
    %1973 = vmatpush.msra.mxu0 %v1784
    %1974 = vmatpush.msra.mxu0 %v1780
    %1975 = vmatpush.msra.mxu0 %v1776
    %1976 = vmatpush.msra.mxu0 %v1772
    %1977 = vmatpush.msra.mxu0 %v1768
    %1978 = vmatpush.msra.mxu0 %v1764
    %1979 = vmatpush.msra.mxu0 %v1760
    %1980 = vmatpush.msra.mxu0 %v1756
    %1981 = vmatpush.msra.mxu0 %v1752
    %1982 = vmatmul.f32.gmra.mxu0 %v1303
    %v1983 = vpop.f32.mrf.mxu0
    %v1984 = vadd.f32 %v1964, %v1983
    %1985 = vdwg.mxu0
    %1986 = vmatpush.msra.mxu0 %v1365
    %1987 = vmatpush.msra.mxu0 %v1361
    %1988 = vmatpush.msra.mxu0 %v1357
    %1989 = vmatpush.msra.mxu0 %v1353
    %1990 = vmatpush.msra.mxu0 %v1349
    %1991 = vmatpush.msra.mxu0 %v1345
    %1992 = vmatpush.msra.mxu0 %v1341
    %1993 = vmatpush.msra.mxu0 %v1337
    %1994 = vmatpush.msra.mxu0 %v1333
    %1995 = vmatpush.msra.mxu0 %v1329
    %1996 = vmatpush.msra.mxu0 %v1325
    %1997 = vmatpush.msra.mxu0 %v1321
    %1998 = vmatpush.msra.mxu0 %v1317
    %1999 = vmatpush.msra.mxu0 %v1313
    %2000 = vmatpush.msra.mxu0 %v1309
    %2001 = vmatpush.msra.mxu0 %v1305
    %2002 = vmatmul.f32.gmra.mxu0 %v1296
    %v2003 = vpop.f32.mrf.mxu0
    %v2004 = vadd.f32 %v1819, %v2003
    %2005 = vdwg.mxu0
    %2006 = vmatpush.msra.mxu0 %v1429
    %2007 = vmatpush.msra.mxu0 %v1425
    %2008 = vmatpush.msra.mxu0 %v1421
    %2009 = vmatpush.msra.mxu0 %v1417
    %2010 = vmatpush.msra.mxu0 %v1413
    %2011 = vmatpush.msra.mxu0 %v1409
    %2012 = vmatpush.msra.mxu0 %v1405
    %2013 = vmatpush.msra.mxu0 %v1401
    %2014 = vmatpush.msra.mxu0 %v1397
    %2015 = vmatpush.msra.mxu0 %v1393
    %2016 = vmatpush.msra.mxu0 %v1389
    %2017 = vmatpush.msra.mxu0 %v1385
    %2018 = vmatpush.msra.mxu0 %v1381
    %2019 = vmatpush.msra.mxu0 %v1377
    %2020 = vmatpush.msra.mxu0 %v1373
    %2021 = vmatpush.msra.mxu0 %v1369
    %2022 = vmatmul.f32.gmra.mxu0 %v1297
    %v2023 = vpop.f32.mrf.mxu0
    %v2024 = vadd.f32 %v2004, %v2023
    %2025 = vdwg.mxu0
    %2026 = vmatpush.msra.mxu0 %v1493
    %2027 = vmatpush.msra.mxu0 %v1489
    %2028 = vmatpush.msra.mxu0 %v1485
    %2029 = vmatpush.msra.mxu0 %v1481
    %2030 = vmatpush.msra.mxu0 %v1477
    %2031 = vmatpush.msra.mxu0 %v1473
    %2032 = vmatpush.msra.mxu0 %v1469
    %2033 = vmatpush.msra.mxu0 %v1465
    %2034 = vmatpush.msra.mxu0 %v1461
    %2035 = vmatpush.msra.mxu0 %v1457
    %2036 = vmatpush.msra.mxu0 %v1453
    %2037 = vmatpush.msra.mxu0 %v1449
    %2038 = vmatpush.msra.mxu0 %v1445
    %2039 = vmatpush.msra.mxu0 %v1441
    %2040 = vmatpush.msra.mxu0 %v1437
    %2041 = vmatpush.msra.mxu0 %v1433
    %2042 = vmatmul.f32.gmra.mxu0 %v1298
    %v2043 = vpop.f32.mrf.mxu0
    %v2044 = vadd.f32 %v2024, %v2043
    %2045 = vdwg.mxu0
    %2046 = vmatpush.msra.mxu0 %v1557
    %2047 = vmatpush.msra.mxu0 %v1553
    %2048 = vmatpush.msra.mxu0 %v1549
    %2049 = vmatpush.msra.mxu0 %v1545
    %2050 = vmatpush.msra.mxu0 %v1541
    %2051 = vmatpush.msra.mxu0 %v1537
    %2052 = vmatpush.msra.mxu0 %v1533
    %2053 = vmatpush.msra.mxu0 %v1529
    %2054 = vmatpush.msra.mxu0 %v1525
    %2055 = vmatpush.msra.mxu0 %v1521
    %2056 = vmatpush.msra.mxu0 %v1517
    %2057 = vmatpush.msra.mxu0 %v1513
    %2058 = vmatpush.msra.mxu0 %v1509
    %2059 = vmatpush.msra.mxu0 %v1505
    %2060 = vmatpush.msra.mxu0 %v1501
    %2061 = vmatpush.msra.mxu0 %v1497
    %2062 = vmatmul.f32.gmra.mxu0 %v1299
    %v2063 = vpop.f32.mrf.mxu0
    %v2064 = vadd.f32 %v2044, %v2063
    %2065 = vdwg.mxu0
    %2066 = vmatpush.msra.mxu0 %v1621
    %2067 = vmatpush.msra.mxu0 %v1617
    %2068 = vmatpush.msra.mxu0 %v1613
    %2069 = vmatpush.msra.mxu0 %v1609
    %2070 = vmatpush.msra.mxu0 %v1605
    %2071 = vmatpush.msra.mxu0 %v1601
    %2072 = vmatpush.msra.mxu0 %v1597
    %2073 = vmatpush.msra.mxu0 %v1593
    %2074 = vmatpush.msra.mxu0 %v1589
    %2075 = vmatpush.msra.mxu0 %v1585
    %2076 = vmatpush.msra.mxu0 %v1581
    %2077 = vmatpush.msra.mxu0 %v1577
    %2078 = vmatpush.msra.mxu0 %v1573
    %2079 = vmatpush.msra.mxu0 %v1569
    %2080 = vmatpush.msra.mxu0 %v1565
    %2081 = vmatpush.msra.mxu0 %v1561
    %2082 = vmatmul.f32.gmra.mxu0 %v1300
    %v2083 = vpop.f32.mrf.mxu0
    %v2084 = vadd.f32 %v2064, %v2083
    %2085 = vdwg.mxu0
    %2086 = vmatpush.msra.mxu0 %v1685
    %2087 = vmatpush.msra.mxu0 %v1681
    %2088 = vmatpush.msra.mxu0 %v1677
    %2089 = vmatpush.msra.mxu0 %v1673
    %2090 = vmatpush.msra.mxu0 %v1669
    %2091 = vmatpush.msra.mxu0 %v1665
    %2092 = vmatpush.msra.mxu0 %v1661
    %2093 = vmatpush.msra.mxu0 %v1657
    %2094 = vmatpush.msra.mxu0 %v1653
    %2095 = vmatpush.msra.mxu0 %v1649
    %2096 = vmatpush.msra.mxu0 %v1645
    %2097 = vmatpush.msra.mxu0 %v1641
    %2098 = vmatpush.msra.mxu0 %v1637
    %2099 = vmatpush.msra.mxu0 %v1633
    %2100 = vmatpush.msra.mxu0 %v1629
    %2101 = vmatpush.msra.mxu0 %v1625
    %2102 = vmatmul.f32.gmra.mxu0 %v1301
    %v2103 = vpop.f32.mrf.mxu0
    %v2104 = vadd.f32 %v2084, %v2103
    %2105 = vdwg.mxu0
    %2106 = vmatpush.msra.mxu0 %v1749
    %2107 = vmatpush.msra.mxu0 %v1745
    %2108 = vmatpush.msra.mxu0 %v1741
    %2109 = vmatpush.msra.mxu0 %v1737
    %2110 = vmatpush.msra.mxu0 %v1733
    %2111 = vmatpush.msra.mxu0 %v1729
    %2112 = vmatpush.msra.mxu0 %v1725
    %2113 = vmatpush.msra.mxu0 %v1721
    %2114 = vmatpush.msra.mxu0 %v1717
    %2115 = vmatpush.msra.mxu0 %v1713
    %2116 = vmatpush.msra.mxu0 %v1709
    %2117 = vmatpush.msra.mxu0 %v1705
    %2118 = vmatpush.msra.mxu0 %v1701
    %2119 = vmatpush.msra.mxu0 %v1697
    %2120 = vmatpush.msra.mxu0 %v1693
    %2121 = vmatpush.msra.mxu0 %v1689
    %2122 = vmatmul.f32.gmra.mxu0 %v1302
    %v2123 = vpop.f32.mrf.mxu0
    %v2124 = vadd.f32 %v2104, %v2123
    %2125 = vdwg.mxu0
    %2126 = vmatpush.msra.mxu0 %v1813
    %2127 = vmatpush.msra.mxu0 %v1809
    %2128 = vmatpush.msra.mxu0 %v1805
    %2129 = vmatpush.msra.mxu0 %v1801
    %2130 = vmatpush.msra.mxu0 %v1797
    %2131 = vmatpush.msra.mxu0 %v1793
    %2132 = vmatpush.msra.mxu0 %v1789
    %2133 = vmatpush.msra.mxu0 %v1785
    %2134 = vmatpush.msra.mxu0 %v1781
    %2135 = vmatpush.msra.mxu0 %v1777
    %2136 = vmatpush.msra.mxu0 %v1773
    %2137 = vmatpush.msra.mxu0 %v1769
    %2138 = vmatpush.msra.mxu0 %v1765
    %2139 = vmatpush.msra.mxu0 %v1761
    %2140 = vmatpush.msra.mxu0 %v1757
    %2141 = vmatpush.msra.mxu0 %v1753
    %2142 = vmatmul.f32.gmra.mxu0 %v1303
    %v2143 = vpop.f32.mrf.mxu0
    %v2144 = vadd.f32 %v2124, %v2143
    %2145 = vdwg.mxu0
    %2146 = vmatpush.msra.mxu0 %v1366
    %2147 = vmatpush.msra.mxu0 %v1362
    %2148 = vmatpush.msra.mxu0 %v1358
    %2149 = vmatpush.msra.mxu0 %v1354
    %2150 = vmatpush.msra.mxu0 %v1350
    %2151 = vmatpush.msra.mxu0 %v1346
    %2152 = vmatpush.msra.mxu0 %v1342
    %2153 = vmatpush.msra.mxu0 %v1338
    %2154 = vmatpush.msra.mxu0 %v1334
    %2155 = vmatpush.msra.mxu0 %v1330
    %2156 = vmatpush.msra.mxu0 %v1326
    %2157 = vmatpush.msra.mxu0 %v1322
    %2158 = vmatpush.msra.mxu0 %v1318
    %2159 = vmatpush.msra.mxu0 %v1314
    %2160 = vmatpush.msra.mxu0 %v1310
    %2161 = vmatpush.msra.mxu0 %v1306
    %2162 = vmatmul.f32.gmra.mxu0 %v1296
    %v2163 = vpop.f32.mrf.mxu0
    %v2164 = vadd.f32 %v1820, %v2163
    %2165 = vdwg.mxu0
    %2166 = vmatpush.msra.mxu0 %v1430
    %2167 = vmatpush.msra.mxu0 %v1426
    %2168 = vmatpush.msra.mxu0 %v1422
    %2169 = vmatpush.msra.mxu0 %v1418
    %2170 = vmatpush.msra.mxu0 %v1414
    %2171 = vmatpush.msra.mxu0 %v1410
    %2172 = vmatpush.msra.mxu0 %v1406
    %2173 = vmatpush.msra.mxu0 %v1402
    %2174 = vmatpush.msra.mxu0 %v1398
    %2175 = vmatpush.msra.mxu0 %v1394
    %2176 = vmatpush.msra.mxu0 %v1390
    %2177 = vmatpush.msra.mxu0 %v1386
    %2178 = vmatpush.msra.mxu0 %v1382
    %2179 = vmatpush.msra.mxu0 %v1378
    %2180 = vmatpush.msra.mxu0 %v1374
    %2181 = vmatpush.msra.mxu0 %v1370
    %2182 = vmatmul.f32.gmra.mxu0 %v1297
    %v2183 = vpop.f32.mrf.mxu0
    %v2184 = vadd.f32 %v2164, %v2183
    %2185 = vdwg.mxu0
    %2186 = vmatpush.msra.mxu0 %v1494
    %2187 = vmatpush.msra.mxu0 %v1490
    %2188 = vmatpush.msra.mxu0 %v1486
    %2189 = vmatpush.msra.mxu0 %v1482
    %2190 = vmatpush.msra.mxu0 %v1478
    %2191 = vmatpush.msra.mxu0 %v1474
    %2192 = vmatpush.msra.mxu0 %v1470
    %2193 = vmatpush.msra.mxu0 %v1466
    %2194 = vmatpush.msra.mxu0 %v1462
    %2195 = vmatpush.msra.mxu0 %v1458
    %2196 = vmatpush.msra.mxu0 %v1454
    %2197 = vmatpush.msra.mxu0 %v1450
    %2198 = vmatpush.msra.mxu0 %v1446
    %2199 = vmatpush.msra.mxu0 %v1442
    %2200 = vmatpush.msra.mxu0 %v1438
    %2201 = vmatpush.msra.mxu0 %v1434
    %2202 = vmatmul.f32.gmra.mxu0 %v1298
    %v2203 = vpop.f32.mrf.mxu0
    %v2204 = vadd.f32 %v2184, %v2203
    %2205 = vdwg.mxu0
    %2206 = vmatpush.msra.mxu0 %v1558
    %2207 = vmatpush.msra.mxu0 %v1554
    %2208 = vmatpush.msra.mxu0 %v1550
    %2209 = vmatpush.msra.mxu0 %v1546
    %2210 = vmatpush.msra.mxu0 %v1542
    %2211 = vmatpush.msra.mxu0 %v1538
    %2212 = vmatpush.msra.mxu0 %v1534
    %2213 = vmatpush.msra.mxu0 %v1530
    %2214 = vmatpush.msra.mxu0 %v1526
    %2215 = vmatpush.msra.mxu0 %v1522
    %2216 = vmatpush.msra.mxu0 %v1518
    %2217 = vmatpush.msra.mxu0 %v1514
    %2218 = vmatpush.msra.mxu0 %v1510
    %2219 = vmatpush.msra.mxu0 %v1506
    %2220 = vmatpush.msra.mxu0 %v1502
    %2221 = vmatpush.msra.mxu0 %v1498
    %2222 = vmatmul.f32.gmra.mxu0 %v1299
    %v2223 = vpop.f32.mrf.mxu0
    %v2224 = vadd.f32 %v2204, %v2223
    %2225 = vdwg.mxu0
    %2226 = vmatpush.msra.mxu0 %v1622
    %2227 = vmatpush.msra.mxu0 %v1618
    %2228 = vmatpush.msra.mxu0 %v1614
    %2229 = vmatpush.msra.mxu0 %v1610
    %2230 = vmatpush.msra.mxu0 %v1606
    %2231 = vmatpush.msra.mxu0 %v1602
    %2232 = vmatpush.msra.mxu0 %v1598
    %2233 = vmatpush.msra.mxu0 %v1594
    %2234 = vmatpush.msra.mxu0 %v1590
    %2235 = vmatpush.msra.mxu0 %v1586
    %2236 = vmatpush.msra.mxu0 %v1582
    %2237 = vmatpush.msra.mxu0 %v1578
    %2238 = vmatpush.msra.mxu0 %v1574
    %2239 = vmatpush.msra.mxu0 %v1570
    %2240 = vmatpush.msra.mxu0 %v1566
    %2241 = vmatpush.msra.mxu0 %v1562
    %2242 = vmatmul.f32.gmra.mxu0 %v1300
    %v2243 = vpop.f32.mrf.mxu0
    %v2244 = vadd.f32 %v2224, %v2243
    %2245 = vdwg.mxu0
    %2246 = vmatpush.msra.mxu0 %v1686
    %2247 = vmatpush.msra.mxu0 %v1682
    %2248 = vmatpush.msra.mxu0 %v1678
    %2249 = vmatpush.msra.mxu0 %v1674
    %2250 = vmatpush.msra.mxu0 %v1670
    %2251 = vmatpush.msra.mxu0 %v1666
    %2252 = vmatpush.msra.mxu0 %v1662
    %2253 = vmatpush.msra.mxu0 %v1658
    %2254 = vmatpush.msra.mxu0 %v1654
    %2255 = vmatpush.msra.mxu0 %v1650
    %2256 = vmatpush.msra.mxu0 %v1646
    %2257 = vmatpush.msra.mxu0 %v1642
    %2258 = vmatpush.msra.mxu0 %v1638
    %2259 = vmatpush.msra.mxu0 %v1634
    %2260 = vmatpush.msra.mxu0 %v1630
    %2261 = vmatpush.msra.mxu0 %v1626
    %2262 = vmatmul.f32.gmra.mxu0 %v1301
    %v2263 = vpop.f32.mrf.mxu0
    %v2264 = vadd.f32 %v2244, %v2263
    %2265 = vdwg.mxu0
    %2266 = vmatpush.msra.mxu0 %v1750
    %2267 = vmatpush.msra.mxu0 %v1746
    %2268 = vmatpush.msra.mxu0 %v1742
    %2269 = vmatpush.msra.mxu0 %v1738
    %2270 = vmatpush.msra.mxu0 %v1734
    %2271 = vmatpush.msra.mxu0 %v1730
    %2272 = vmatpush.msra.mxu0 %v1726
    %2273 = vmatpush.msra.mxu0 %v1722
    %2274 = vmatpush.msra.mxu0 %v1718
    %2275 = vmatpush.msra.mxu0 %v1714
    %2276 = vmatpush.msra.mxu0 %v1710
    %2277 = vmatpush.msra.mxu0 %v1706
    %2278 = vmatpush.msra.mxu0 %v1702
    %2279 = vmatpush.msra.mxu0 %v1698
    %2280 = vmatpush.msra.mxu0 %v1694
    %2281 = vmatpush.msra.mxu0 %v1690
    %2282 = vmatmul.f32.gmra.mxu0 %v1302
    %v2283 = vpop.f32.mrf.mxu0
    %v2284 = vadd.f32 %v2264, %v2283
    %2285 = vdwg.mxu0
    %2286 = vmatpush.msra.mxu0 %v1814
    %2287 = vmatpush.msra.mxu0 %v1810
    %2288 = vmatpush.msra.mxu0 %v1806
    %2289 = vmatpush.msra.mxu0 %v1802
    %2290 = vmatpush.msra.mxu0 %v1798
    %2291 = vmatpush.msra.mxu0 %v1794
    %2292 = vmatpush.msra.mxu0 %v1790
    %2293 = vmatpush.msra.mxu0 %v1786
    %2294 = vmatpush.msra.mxu0 %v1782
    %2295 = vmatpush.msra.mxu0 %v1778
    %2296 = vmatpush.msra.mxu0 %v1774
    %2297 = vmatpush.msra.mxu0 %v1770
    %2298 = vmatpush.msra.mxu0 %v1766
    %2299 = vmatpush.msra.mxu0 %v1762
    %2300 = vmatpush.msra.mxu0 %v1758
    %2301 = vmatpush.msra.mxu0 %v1754
    %2302 = vmatmul.f32.gmra.mxu0 %v1303
    %v2303 = vpop.f32.mrf.mxu0
    %v2304 = vadd.f32 %v2284, %v2303
    %2305 = vdwg.mxu0
    %2306 = vmatpush.msra.mxu0 %v1367
    %2307 = vmatpush.msra.mxu0 %v1363
    %2308 = vmatpush.msra.mxu0 %v1359
    %2309 = vmatpush.msra.mxu0 %v1355
    %2310 = vmatpush.msra.mxu0 %v1351
    %2311 = vmatpush.msra.mxu0 %v1347
    %2312 = vmatpush.msra.mxu0 %v1343
    %2313 = vmatpush.msra.mxu0 %v1339
    %2314 = vmatpush.msra.mxu0 %v1335
    %2315 = vmatpush.msra.mxu0 %v1331
    %2316 = vmatpush.msra.mxu0 %v1327
    %2317 = vmatpush.msra.mxu0 %v1323
    %2318 = vmatpush.msra.mxu0 %v1319
    %2319 = vmatpush.msra.mxu0 %v1315
    %2320 = vmatpush.msra.mxu0 %v1311
    %2321 = vmatpush.msra.mxu0 %v1307
    %2322 = vmatmul.f32.gmra.mxu0 %v1296
    %v2323 = vpop.f32.mrf.mxu0
    %v2324 = vadd.f32 %v1821, %v2323
    %2325 = vdwg.mxu0
    %2326 = vmatpush.msra.mxu0 %v1431
    %2327 = vmatpush.msra.mxu0 %v1427
    %2328 = vmatpush.msra.mxu0 %v1423
    %2329 = vmatpush.msra.mxu0 %v1419
    %2330 = vmatpush.msra.mxu0 %v1415
    %2331 = vmatpush.msra.mxu0 %v1411
    %2332 = vmatpush.msra.mxu0 %v1407
    %2333 = vmatpush.msra.mxu0 %v1403
    %2334 = vmatpush.msra.mxu0 %v1399
    %2335 = vmatpush.msra.mxu0 %v1395
    %2336 = vmatpush.msra.mxu0 %v1391
    %2337 = vmatpush.msra.mxu0 %v1387
    %2338 = vmatpush.msra.mxu0 %v1383
    %2339 = vmatpush.msra.mxu0 %v1379
    %2340 = vmatpush.msra.mxu0 %v1375
    %2341 = vmatpush.msra.mxu0 %v1371
    %2342 = vmatmul.f32.gmra.mxu0 %v1297
    %v2343 = vpop.f32.mrf.mxu0
    %v2344 = vadd.f32 %v2324, %v2343
    %2345 = vdwg.mxu0
    %2346 = vmatpush.msra.mxu0 %v1495
    %2347 = vmatpush.msra.mxu0 %v1491
    %2348 = vmatpush.msra.mxu0 %v1487
    %2349 = vmatpush.msra.mxu0 %v1483
    %2350 = vmatpush.msra.mxu0 %v1479
    %2351 = vmatpush.msra.mxu0 %v1475
    %2352 = vmatpush.msra.mxu0 %v1471
    %2353 = vmatpush.msra.mxu0 %v1467
    %2354 = vmatpush.msra.mxu0 %v1463
    %2355 = vmatpush.msra.mxu0 %v1459
    %2356 = vmatpush.msra.mxu0 %v1455
    %2357 = vmatpush.msra.mxu0 %v1451
    %2358 = vmatpush.msra.mxu0 %v1447
    %2359 = vmatpush.msra.mxu0 %v1443
    %2360 = vmatpush.msra.mxu0 %v1439
    %2361 = vmatpush.msra.mxu0 %v1435
    %2362 = vmatmul.f32.gmra.mxu0 %v1298
    %v2363 = vpop.f32.mrf.mxu0
    %v2364 = vadd.f32 %v2344, %v2363
    %2365 = vdwg.mxu0
    %2366 = vmatpush.msra.mxu0 %v1559
    %2367 = vmatpush.msra.mxu0 %v1555
    %2368 = vmatpush.msra.mxu0 %v1551
    %2369 = vmatpush.msra.mxu0 %v1547
    %2370 = vmatpush.msra.mxu0 %v1543
    %2371 = vmatpush.msra.mxu0 %v1539
    %2372 = vmatpush.msra.mxu0 %v1535
    %2373 = vmatpush.msra.mxu0 %v1531
    %2374 = vmatpush.msra.mxu0 %v1527
    %2375 = vmatpush.msra.mxu0 %v1523
    %2376 = vmatpush.msra.mxu0 %v1519
    %2377 = vmatpush.msra.mxu0 %v1515
    %2378 = vmatpush.msra.mxu0 %v1511
    %2379 = vmatpush.msra.mxu0 %v1507
    %2380 = vmatpush.msra.mxu0 %v1503
    %2381 = vmatpush.msra.mxu0 %v1499
    %2382 = vmatmul.f32.gmra.mxu0 %v1299
    %v2383 = vpop.f32.mrf.mxu0
    %v2384 = vadd.f32 %v2364, %v2383
    %2385 = vdwg.mxu0
    %2386 = vmatpush.msra.mxu0 %v1623
    %2387 = vmatpush.msra.mxu0 %v1619
    %2388 = vmatpush.msra.mxu0 %v1615
    %2389 = vmatpush.msra.mxu0 %v1611
    %2390 = vmatpush.msra.mxu0 %v1607
    %2391 = vmatpush.msra.mxu0 %v1603
    %2392 = vmatpush.msra.mxu0 %v1599
    %2393 = vmatpush.msra.mxu0 %v1595
    %2394 = vmatpush.msra.mxu0 %v1591
    %2395 = vmatpush.msra.mxu0 %v1587
    %2396 = vmatpush.msra.mxu0 %v1583
    %2397 = vmatpush.msra.mxu0 %v1579
    %2398 = vmatpush.msra.mxu0 %v1575
    %2399 = vmatpush.msra.mxu0 %v1571
    %2400 = vmatpush.msra.mxu0 %v1567
    %2401 = vmatpush.msra.mxu0 %v1563
    %2402 = vmatmul.f32.gmra.mxu0 %v1300
    %v2403 = vpop.f32.mrf.mxu0
    %v2404 = vadd.f32 %v2384, %v2403
    %2405 = vdwg.mxu0
    %2406 = vmatpush.msra.mxu0 %v1687
    %2407 = vmatpush.msra.mxu0 %v1683
    %2408 = vmatpush.msra.mxu0 %v1679
    %2409 = vmatpush.msra.mxu0 %v1675
    %2410 = vmatpush.msra.mxu0 %v1671
    %2411 = vmatpush.msra.mxu0 %v1667
    %2412 = vmatpush.msra.mxu0 %v1663
    %2413 = vmatpush.msra.mxu0 %v1659
    %2414 = vmatpush.msra.mxu0 %v1655
    %2415 = vmatpush.msra.mxu0 %v1651
    %2416 = vmatpush.msra.mxu0 %v1647
    %2417 = vmatpush.msra.mxu0 %v1643
    %2418 = vmatpush.msra.mxu0 %v1639
    %2419 = vmatpush.msra.mxu0 %v1635
    %2420 = vmatpush.msra.mxu0 %v1631
    %2421 = vmatpush.msra.mxu0 %v1627
    %2422 = vmatmul.f32.gmra.mxu0 %v1301
    %v2423 = vpop.f32.mrf.mxu0
    %v2424 = vadd.f32 %v2404, %v2423
    %2425 = vdwg.mxu0
    %2426 = vmatpush.msra.mxu0 %v1751
    %2427 = vmatpush.msra.mxu0 %v1747
    %2428 = vmatpush.msra.mxu0 %v1743
    %2429 = vmatpush.msra.mxu0 %v1739
    %2430 = vmatpush.msra.mxu0 %v1735
    %2431 = vmatpush.msra.mxu0 %v1731
    %2432 = vmatpush.msra.mxu0 %v1727
    %2433 = vmatpush.msra.mxu0 %v1723
    %2434 = vmatpush.msra.mxu0 %v1719
    %2435 = vmatpush.msra.mxu0 %v1715
    %2436 = vmatpush.msra.mxu0 %v1711
    %2437 = vmatpush.msra.mxu0 %v1707
    %2438 = vmatpush.msra.mxu0 %v1703
    %2439 = vmatpush.msra.mxu0 %v1699
    %2440 = vmatpush.msra.mxu0 %v1695
    %2441 = vmatpush.msra.mxu0 %v1691
    %2442 = vmatmul.f32.gmra.mxu0 %v1302
    %v2443 = vpop.f32.mrf.mxu0
    %v2444 = vadd.f32 %v2424, %v2443
    %2445 = vdwg.mxu0
    %2446 = vmatpush.msra.mxu0 %v1815
    %2447 = vmatpush.msra.mxu0 %v1811
    %2448 = vmatpush.msra.mxu0 %v1807
    %2449 = vmatpush.msra.mxu0 %v1803
    %2450 = vmatpush.msra.mxu0 %v1799
    %2451 = vmatpush.msra.mxu0 %v1795
    %2452 = vmatpush.msra.mxu0 %v1791
    %2453 = vmatpush.msra.mxu0 %v1787
    %2454 = vmatpush.msra.mxu0 %v1783
    %2455 = vmatpush.msra.mxu0 %v1779
    %2456 = vmatpush.msra.mxu0 %v1775
    %2457 = vmatpush.msra.mxu0 %v1771
    %2458 = vmatpush.msra.mxu0 %v1767
    %2459 = vmatpush.msra.mxu0 %v1763
    %2460 = vmatpush.msra.mxu0 %v1759
    %2461 = vmatpush.msra.mxu0 %v1755
    %2462 = vmatmul.f32.gmra.mxu0 %v1303
    %v2463 = vpop.f32.mrf.mxu0
    %v2464 = vadd.f32 %v2444, %v2463
    %2465 = vdwg.mxu0
    %v2466 = vmin.f32 %v1984, 20.0
    %v2467 = vmin.f32 %v2144, 20.0
    %v2468 = vmin.f32 %v2304, 20.0
    %v2469 = vmin.f32 %v2464, 20.0
    %v2470 = vmul.f32 %v2466, 1.442695
    %v2471 = vpow.pop %v2470
    %v2472 = vmul.f32 %v2467, 1.442695
    %v2473 = vpow.pop %v2472
    %v2474 = vmul.f32 %v2468, 1.442695
    %v2475 = vpow.pop %v2474
    %v2476 = vmul.f32 %v2469, 1.442695
    %v2477 = vpow.pop %v2476
    %v2478 = vadd.f32 %v2471, 2.0
    %v2479 = vadd.f32 %v2473, 2.0
    %v2480 = vadd.f32 %v2475, 2.0
    %v2481 = vadd.f32 %v2477, 2.0
    %v2482 = vmul.f32 %v2471, %v2478
    %v2483 = vmul.f32 %v2473, %v2479
    %v2484 = vmul.f32 %v2475, %v2480
    %v2485 = vmul.f32 %v2477, %v2481
    %v2486 = vmul.f32 %v1984, %v2482
    %v2487 = vmul.f32 %v2144, %v2483
    %v2488 = vmul.f32 %v2304, %v2484
    %v2489 = vmul.f32 %v2464, %v2485
    %v2490 = vadd.f32 %v2482, 2.0
    %v2491 = vadd.f32 %v2483, 2.0
    %v2492 = vadd.f32 %v2484, 2.0
    %v2493 = vadd.f32 %v2485, 2.0
    %v2494 = vrcp.pop %v2490
    %v2495 = vrcp.pop %v2491
    %v2496 = vrcp.pop %v2492
    %v2497 = vrcp.pop %v2493
    %v2498 = vmul.f32 %v2486, %v2494
    %v2499 = vmul.f32 %v2487, %v2495
    %v2500 = vmul.f32 %v2488, %v2496
    %v2501 = vmul.f32 %v2489, %v2497
    %v2502 = vld [vmem:[%s7] sm:$0xff]
    %v2503 = vld [vmem:[%s7 + $0x8] sm:$0xff]
    %v2504 = vld [vmem:[%s7 + $0x10] sm:$0xff]
    %v2505 = vld [vmem:[%s7 + $0x18] sm:$0xff]
    %v2506 = vld [vmem:[%s7 + $0x20] sm:$0xff]
    %v2507 = vld [vmem:[%s7 + $0x28] sm:$0xff]
    %v2508 = vld [vmem:[%s7 + $0x30] sm:$0xff]
    %v2509 = vld [vmem:[%s7 + $0x38] sm:$0xff]
    %v2510 = vld [vmem:[%s7 + $0x40] sm:$0xff]
    %v2511 = vld [vmem:[%s7 + $0x48] sm:$0xff]
    %v2512 = vld [vmem:[%s7 + $0x50] sm:$0xff]
    %v2513 = vld [vmem:[%s7 + $0x58] sm:$0xff]
    %v2514 = vld [vmem:[%s7 + $0x60] sm:$0xff]
    %v2515 = vld [vmem:[%s7 + $0x68] sm:$0xff]
    %v2516 = vld [vmem:[%s7 + $0x70] sm:$0xff]
    %v2517 = vld [vmem:[%s7 + $0x78] sm:$0xff]
    %v2518 = vld [vmem:[%s7 + $0x80] sm:$0xff]
    %v2519 = vld [vmem:[%s7 + $0x88] sm:$0xff]
    %v2520 = vld [vmem:[%s7 + $0x90] sm:$0xff]
    %v2521 = vld [vmem:[%s7 + $0x98] sm:$0xff]
    %v2522 = vld [vmem:[%s7 + $0xa0] sm:$0xff]
    %v2523 = vld [vmem:[%s7 + $0xa8] sm:$0xff]
    %v2524 = vld [vmem:[%s7 + $0xb0] sm:$0xff]
    %v2525 = vld [vmem:[%s7 + $0xb8] sm:$0xff]
    %v2526 = vld [vmem:[%s7 + $0xc0] sm:$0xff]
    %v2527 = vld [vmem:[%s7 + $0xc8] sm:$0xff]
    %v2528 = vld [vmem:[%s7 + $0xd0] sm:$0xff]
    %v2529 = vld [vmem:[%s7 + $0xd8] sm:$0xff]
    %v2530 = vld [vmem:[%s7 + $0xe0] sm:$0xff]
    %v2531 = vld [vmem:[%s7 + $0xe8] sm:$0xff]
    %v2532 = vld [vmem:[%s7 + $0xf0] sm:$0xff]
    %v2533 = vld [vmem:[%s7 + $0xf8] sm:$0xff]
    %v2534 = vld [vmem:[%s7 + $0x100] sm:$0xff]
    %v2535 = vld [vmem:[%s7 + $0x108] sm:$0xff]
    %v2536 = vld [vmem:[%s7 + $0x110] sm:$0xff]
    %v2537 = vld [vmem:[%s7 + $0x118] sm:$0xff]
    %v2538 = vld [vmem:[%s7 + $0x120] sm:$0xff]
    %v2539 = vld [vmem:[%s7 + $0x128] sm:$0xff]
    %v2540 = vld [vmem:[%s7 + $0x130] sm:$0xff]
    %v2541 = vld [vmem:[%s7 + $0x138] sm:$0xff]
    %v2542 = vld [vmem:[%s7 + $0x140] sm:$0xff]
    %v2543 = vld [vmem:[%s7 + $0x148] sm:$0xff]
    %v2544 = vld [vmem:[%s7 + $0x150] sm:$0xff]
    %v2545 = vld [vmem:[%s7 + $0x158] sm:$0xff]
    %v2546 = vld [vmem:[%s7 + $0x160] sm:$0xff]
    %v2547 = vld [vmem:[%s7 + $0x168] sm:$0xff]
    %v2548 = vld [vmem:[%s7 + $0x170] sm:$0xff]
    %v2549 = vld [vmem:[%s7 + $0x178] sm:$0xff]
    %v2550 = vld [vmem:[%s7 + $0x180] sm:$0xff]
    %v2551 = vld [vmem:[%s7 + $0x188] sm:$0xff]
    %v2552 = vld [vmem:[%s7 + $0x190] sm:$0xff]
    %v2553 = vld [vmem:[%s7 + $0x198] sm:$0xff]
    %v2554 = vld [vmem:[%s7 + $0x1a0] sm:$0xff]
    %v2555 = vld [vmem:[%s7 + $0x1a8] sm:$0xff]
    %v2556 = vld [vmem:[%s7 + $0x1b0] sm:$0xff]
    %v2557 = vld [vmem:[%s7 + $0x1b8] sm:$0xff]
    %v2558 = vld [vmem:[%s7 + $0x1c0] sm:$0xff]
    %v2559 = vld [vmem:[%s7 + $0x1c8] sm:$0xff]
    %v2560 = vld [vmem:[%s7 + $0x1d0] sm:$0xff]
    %v2561 = vld [vmem:[%s7 + $0x1d8] sm:$0xff]
    %v2562 = vld [vmem:[%s7 + $0x1e0] sm:$0xff]
    %v2563 = vld [vmem:[%s7 + $0x1e8] sm:$0xff]
    %v2564 = vld [vmem:[%s7 + $0x1f0] sm:$0xff]
    %v2565 = vld [vmem:[%s7 + $0x1f8] sm:$0xff]
    %v2566 = vld [vmem:[%s7 + $0x200] sm:$0xff]
    %v2567 = vld [vmem:[%s7 + $0x208] sm:$0xff]
    %v2568 = vld [vmem:[%s7 + $0x210] sm:$0xff]
    %v2569 = vld [vmem:[%s7 + $0x218] sm:$0xff]
    %v2570 = vld [vmem:[%s7 + $0x220] sm:$0xff]
    %v2571 = vld [vmem:[%s7 + $0x228] sm:$0xff]
    %v2572 = vld [vmem:[%s7 + $0x230] sm:$0xff]
    %v2573 = vld [vmem:[%s7 + $0x238] sm:$0xff]
    %v2574 = vld [vmem:[%s7 + $0x240] sm:$0xff]
    %v2575 = vld [vmem:[%s7 + $0x248] sm:$0xff]
    %v2576 = vld [vmem:[%s7 + $0x250] sm:$0xff]
    %v2577 = vld [vmem:[%s7 + $0x258] sm:$0xff]
    %v2578 = vld [vmem:[%s7 + $0x260] sm:$0xff]
    %v2579 = vld [vmem:[%s7 + $0x268] sm:$0xff]
    %v2580 = vld [vmem:[%s7 + $0x270] sm:$0xff]
    %v2581 = vld [vmem:[%s7 + $0x278] sm:$0xff]
    %v2582 = vld [vmem:[%s7 + $0x280] sm:$0xff]
    %v2583 = vld [vmem:[%s7 + $0x288] sm:$0xff]
    %v2584 = vld [vmem:[%s7 + $0x290] sm:$0xff]
    %v2585 = vld [vmem:[%s7 + $0x298] sm:$0xff]
    %v2586 = vld [vmem:[%s7 + $0x2a0] sm:$0xff]
    %v2587 = vld [vmem:[%s7 + $0x2a8] sm:$0xff]
    %v2588 = vld [vmem:[%s7 + $0x2b0] sm:$0xff]
    %v2589 = vld [vmem:[%s7 + $0x2b8] sm:$0xff]
    %v2590 = vld [vmem:[%s7 + $0x2c0] sm:$0xff]
    %v2591 = vld [vmem:[%s7 + $0x2c8] sm:$0xff]
    %v2592 = vld [vmem:[%s7 + $0x2d0] sm:$0xff]
    %v2593 = vld [vmem:[%s7 + $0x2d8] sm:$0xff]
    %v2594 = vld [vmem:[%s7 + $0x2e0] sm:$0xff]
    %v2595 = vld [vmem:[%s7 + $0x2e8] sm:$0xff]
    %v2596 = vld [vmem:[%s7 + $0x2f0] sm:$0xff]
    %v2597 = vld [vmem:[%s7 + $0x2f8] sm:$0xff]
    %v2598 = vld [vmem:[%s7 + $0x300] sm:$0xff]
    %v2599 = vld [vmem:[%s7 + $0x308] sm:$0xff]
    %v2600 = vld [vmem:[%s7 + $0x310] sm:$0xff]
    %v2601 = vld [vmem:[%s7 + $0x318] sm:$0xff]
    %v2602 = vld [vmem:[%s7 + $0x320] sm:$0xff]
    %v2603 = vld [vmem:[%s7 + $0x328] sm:$0xff]
    %v2604 = vld [vmem:[%s7 + $0x330] sm:$0xff]
    %v2605 = vld [vmem:[%s7 + $0x338] sm:$0xff]
    %v2606 = vld [vmem:[%s7 + $0x340] sm:$0xff]
    %v2607 = vld [vmem:[%s7 + $0x348] sm:$0xff]
    %v2608 = vld [vmem:[%s7 + $0x350] sm:$0xff]
    %v2609 = vld [vmem:[%s7 + $0x358] sm:$0xff]
    %v2610 = vld [vmem:[%s7 + $0x360] sm:$0xff]
    %v2611 = vld [vmem:[%s7 + $0x368] sm:$0xff]
    %v2612 = vld [vmem:[%s7 + $0x370] sm:$0xff]
    %v2613 = vld [vmem:[%s7 + $0x378] sm:$0xff]
    %v2614 = vld [vmem:[%s7 + $0x380] sm:$0xff]
    %v2615 = vld [vmem:[%s7 + $0x388] sm:$0xff]
    %v2616 = vld [vmem:[%s7 + $0x390] sm:$0xff]
    %v2617 = vld [vmem:[%s7 + $0x398] sm:$0xff]
    %v2618 = vld [vmem:[%s7 + $0x3a0] sm:$0xff]
    %v2619 = vld [vmem:[%s7 + $0x3a8] sm:$0xff]
    %v2620 = vld [vmem:[%s7 + $0x3b0] sm:$0xff]
    %v2621 = vld [vmem:[%s7 + $0x3b8] sm:$0xff]
    %v2622 = vld [vmem:[%s7 + $0x3c0] sm:$0xff]
    %v2623 = vld [vmem:[%s7 + $0x3c8] sm:$0xff]
    %v2624 = vld [vmem:[%s7 + $0x3d0] sm:$0xff]
    %v2625 = vld [vmem:[%s7 + $0x3d8] sm:$0xff]
    %v2626 = vld [vmem:[%s7 + $0x3e0] sm:$0xff]
    %v2627 = vld [vmem:[%s7 + $0x3e8] sm:$0xff]
    %v2628 = vld [vmem:[%s7 + $0x3f0] sm:$0xff]
    %v2629 = vld [vmem:[%s7 + $0x3f8] sm:$0xff]
    %v2630 = vld [vmem:[%s8] sm:$0x3]
    %v2632 = vperm.slane %v2630, 0
    %v2633 = vperm.slane %v2630, 1
    %2636 = vmatpush.msra.mxu0 %v2532
    %2637 = vmatpush.msra.mxu0 %v2530
    %2638 = vmatpush.msra.mxu0 %v2528
    %2639 = vmatpush.msra.mxu0 %v2526
    %2640 = vmatpush.msra.mxu0 %v2524
    %2641 = vmatpush.msra.mxu0 %v2522
    %2642 = vmatpush.msra.mxu0 %v2520
    %2643 = vmatpush.msra.mxu0 %v2518
    %2644 = vmatpush.msra.mxu0 %v2516
    %2645 = vmatpush.msra.mxu0 %v2514
    %2646 = vmatpush.msra.mxu0 %v2512
    %2647 = vmatpush.msra.mxu0 %v2510
    %2648 = vmatpush.msra.mxu0 %v2508
    %2649 = vmatpush.msra.mxu0 %v2506
    %2650 = vmatpush.msra.mxu0 %v2504
    %2651 = vmatpush.msra.mxu0 %v2502
    %2652 = vmatmul.f32.gmra.mxu0 %v2498
    %v2653 = vpop.f32.mrf.mxu0
    %v2654 = vadd.f32 %v2632, %v2653
    %2655 = vdwg.mxu0
    %2656 = vmatpush.msra.mxu0 %v2564
    %2657 = vmatpush.msra.mxu0 %v2562
    %2658 = vmatpush.msra.mxu0 %v2560
    %2659 = vmatpush.msra.mxu0 %v2558
    %2660 = vmatpush.msra.mxu0 %v2556
    %2661 = vmatpush.msra.mxu0 %v2554
    %2662 = vmatpush.msra.mxu0 %v2552
    %2663 = vmatpush.msra.mxu0 %v2550
    %2664 = vmatpush.msra.mxu0 %v2548
    %2665 = vmatpush.msra.mxu0 %v2546
    %2666 = vmatpush.msra.mxu0 %v2544
    %2667 = vmatpush.msra.mxu0 %v2542
    %2668 = vmatpush.msra.mxu0 %v2540
    %2669 = vmatpush.msra.mxu0 %v2538
    %2670 = vmatpush.msra.mxu0 %v2536
    %2671 = vmatpush.msra.mxu0 %v2534
    %2672 = vmatmul.f32.gmra.mxu0 %v2499
    %v2673 = vpop.f32.mrf.mxu0
    %v2674 = vadd.f32 %v2654, %v2673
    %2675 = vdwg.mxu0
    %2676 = vmatpush.msra.mxu0 %v2596
    %2677 = vmatpush.msra.mxu0 %v2594
    %2678 = vmatpush.msra.mxu0 %v2592
    %2679 = vmatpush.msra.mxu0 %v2590
    %2680 = vmatpush.msra.mxu0 %v2588
    %2681 = vmatpush.msra.mxu0 %v2586
    %2682 = vmatpush.msra.mxu0 %v2584
    %2683 = vmatpush.msra.mxu0 %v2582
    %2684 = vmatpush.msra.mxu0 %v2580
    %2685 = vmatpush.msra.mxu0 %v2578
    %2686 = vmatpush.msra.mxu0 %v2576
    %2687 = vmatpush.msra.mxu0 %v2574
    %2688 = vmatpush.msra.mxu0 %v2572
    %2689 = vmatpush.msra.mxu0 %v2570
    %2690 = vmatpush.msra.mxu0 %v2568
    %2691 = vmatpush.msra.mxu0 %v2566
    %2692 = vmatmul.f32.gmra.mxu0 %v2500
    %v2693 = vpop.f32.mrf.mxu0
    %v2694 = vadd.f32 %v2674, %v2693
    %2695 = vdwg.mxu0
    %2696 = vmatpush.msra.mxu0 %v2628
    %2697 = vmatpush.msra.mxu0 %v2626
    %2698 = vmatpush.msra.mxu0 %v2624
    %2699 = vmatpush.msra.mxu0 %v2622
    %2700 = vmatpush.msra.mxu0 %v2620
    %2701 = vmatpush.msra.mxu0 %v2618
    %2702 = vmatpush.msra.mxu0 %v2616
    %2703 = vmatpush.msra.mxu0 %v2614
    %2704 = vmatpush.msra.mxu0 %v2612
    %2705 = vmatpush.msra.mxu0 %v2610
    %2706 = vmatpush.msra.mxu0 %v2608
    %2707 = vmatpush.msra.mxu0 %v2606
    %2708 = vmatpush.msra.mxu0 %v2604
    %2709 = vmatpush.msra.mxu0 %v2602
    %2710 = vmatpush.msra.mxu0 %v2600
    %2711 = vmatpush.msra.mxu0 %v2598
    %2712 = vmatmul.f32.gmra.mxu0 %v2501
    %v2713 = vpop.f32.mrf.mxu0
    %v2714 = vadd.f32 %v2694, %v2713
    %2715 = vdwg.mxu0
    %2716 = vmatpush.msra.mxu0 %v2533
    %2717 = vmatpush.msra.mxu0 %v2531
    %2718 = vmatpush.msra.mxu0 %v2529
    %2719 = vmatpush.msra.mxu0 %v2527
    %2720 = vmatpush.msra.mxu0 %v2525
    %2721 = vmatpush.msra.mxu0 %v2523
    %2722 = vmatpush.msra.mxu0 %v2521
    %2723 = vmatpush.msra.mxu0 %v2519
    %2724 = vmatpush.msra.mxu0 %v2517
    %2725 = vmatpush.msra.mxu0 %v2515
    %2726 = vmatpush.msra.mxu0 %v2513
    %2727 = vmatpush.msra.mxu0 %v2511
    %2728 = vmatpush.msra.mxu0 %v2509
    %2729 = vmatpush.msra.mxu0 %v2507
    %2730 = vmatpush.msra.mxu0 %v2505
    %2731 = vmatpush.msra.mxu0 %v2503
    %2732 = vmatmul.f32.gmra.mxu0 %v2498
    %v2733 = vpop.f32.mrf.mxu0
    %v2734 = vadd.f32 %v2633, %v2733
    %2735 = vdwg.mxu0
    %2736 = vmatpush.msra.mxu0 %v2565
    %2737 = vmatpush.msra.mxu0 %v2563
    %2738 = vmatpush.msra.mxu0 %v2561
    %2739 = vmatpush.msra.mxu0 %v2559
    %2740 = vmatpush.msra.mxu0 %v2557
    %2741 = vmatpush.msra.mxu0 %v2555
    %2742 = vmatpush.msra.mxu0 %v2553
    %2743 = vmatpush.msra.mxu0 %v2551
    %2744 = vmatpush.msra.mxu0 %v2549
    %2745 = vmatpush.msra.mxu0 %v2547
    %2746 = vmatpush.msra.mxu0 %v2545
    %2747 = vmatpush.msra.mxu0 %v2543
    %2748 = vmatpush.msra.mxu0 %v2541
    %2749 = vmatpush.msra.mxu0 %v2539
    %2750 = vmatpush.msra.mxu0 %v2537
    %2751 = vmatpush.msra.mxu0 %v2535
    %2752 = vmatmul.f32.gmra.mxu0 %v2499
    %v2753 = vpop.f32.mrf.mxu0
    %v2754 = vadd.f32 %v2734, %v2753
    %2755 = vdwg.mxu0
    %2756 = vmatpush.msra.mxu0 %v2597
    %2757 = vmatpush.msra.mxu0 %v2595
    %2758 = vmatpush.msra.mxu0 %v2593
    %2759 = vmatpush.msra.mxu0 %v2591
    %2760 = vmatpush.msra.mxu0 %v2589
    %2761 = vmatpush.msra.mxu0 %v2587
    %2762 = vmatpush.msra.mxu0 %v2585
    %2763 = vmatpush.msra.mxu0 %v2583
    %2764 = vmatpush.msra.mxu0 %v2581
    %2765 = vmatpush.msra.mxu0 %v2579
    %2766 = vmatpush.msra.mxu0 %v2577
    %2767 = vmatpush.msra.mxu0 %v2575
    %2768 = vmatpush.msra.mxu0 %v2573
    %2769 = vmatpush.msra.mxu0 %v2571
    %2770 = vmatpush.msra.mxu0 %v2569
    %2771 = vmatpush.msra.mxu0 %v2567
    %2772 = vmatmul.f32.gmra.mxu0 %v2500
    %v2773 = vpop.f32.mrf.mxu0
    %v2774 = vadd.f32 %v2754, %v2773
    %2775 = vdwg.mxu0
    %2776 = vmatpush.msra.mxu0 %v2629
    %2777 = vmatpush.msra.mxu0 %v2627
    %2778 = vmatpush.msra.mxu0 %v2625
    %2779 = vmatpush.msra.mxu0 %v2623
    %2780 = vmatpush.msra.mxu0 %v2621
    %2781 = vmatpush.msra.mxu0 %v2619
    %2782 = vmatpush.msra.mxu0 %v2617
    %2783 = vmatpush.msra.mxu0 %v2615
    %2784 = vmatpush.msra.mxu0 %v2613
    %2785 = vmatpush.msra.mxu0 %v2611
    %2786 = vmatpush.msra.mxu0 %v2609
    %2787 = vmatpush.msra.mxu0 %v2607
    %2788 = vmatpush.msra.mxu0 %v2605
    %2789 = vmatpush.msra.mxu0 %v2603
    %2790 = vmatpush.msra.mxu0 %v2601
    %2791 = vmatpush.msra.mxu0 %v2599
    %2792 = vmatmul.f32.gmra.mxu0 %v2501
    %v2793 = vpop.f32.mrf.mxu0
    %v2794 = vadd.f32 %v2774, %v2793
    %2795 = vdwg.mxu0
    %v2796 = vmin.f32 %v2714, 20.0
    %v2797 = vmin.f32 %v2794, 20.0
    %v2798 = vmul.f32 %v2796, 1.442695
    %v2799 = vpow.pop %v2798
    %v2800 = vmul.f32 %v2797, 1.442695
    %v2801 = vpow.pop %v2800
    %v2802 = vadd.f32 %v2799, 2.0
    %v2803 = vadd.f32 %v2801, 2.0
    %v2804 = vmul.f32 %v2799, %v2802
    %v2805 = vmul.f32 %v2801, %v2803
    %v2806 = vmul.f32 %v2714, %v2804
    %v2807 = vmul.f32 %v2794, %v2805
    %v2808 = vadd.f32 %v2804, 2.0
    %v2809 = vadd.f32 %v2805, 2.0
    %v2810 = vrcp.pop %v2808
    %v2811 = vrcp.pop %v2809
    %v2812 = vmul.f32 %v2806, %v2810
    %v2813 = vmul.f32 %v2807, %v2811
    %v2814 = vld [vmem:[%s9] sm:$0xff]
    %v2815 = vld [vmem:[%s9 + $0x8] sm:$0xff]
    %v2816 = vld [vmem:[%s9 + $0x10] sm:$0xff]
    %v2817 = vld [vmem:[%s9 + $0x18] sm:$0xff]
    %v2818 = vld [vmem:[%s9 + $0x20] sm:$0xff]
    %v2819 = vld [vmem:[%s9 + $0x28] sm:$0xff]
    %v2820 = vld [vmem:[%s9 + $0x30] sm:$0xff]
    %v2821 = vld [vmem:[%s9 + $0x38] sm:$0xff]
    %v2822 = vld [vmem:[%s9 + $0x40] sm:$0xff]
    %v2823 = vld [vmem:[%s9 + $0x48] sm:$0xff]
    %v2824 = vld [vmem:[%s9 + $0x50] sm:$0xff]
    %v2825 = vld [vmem:[%s9 + $0x58] sm:$0xff]
    %v2826 = vld [vmem:[%s9 + $0x60] sm:$0xff]
    %v2827 = vld [vmem:[%s9 + $0x68] sm:$0xff]
    %v2828 = vld [vmem:[%s9 + $0x70] sm:$0xff]
    %v2829 = vld [vmem:[%s9 + $0x78] sm:$0xff]
    %v2830 = vld [vmem:[%s9 + $0x80] sm:$0xff]
    %v2831 = vld [vmem:[%s9 + $0x88] sm:$0xff]
    %v2832 = vld [vmem:[%s9 + $0x90] sm:$0xff]
    %v2833 = vld [vmem:[%s9 + $0x98] sm:$0xff]
    %v2834 = vld [vmem:[%s9 + $0xa0] sm:$0xff]
    %v2835 = vld [vmem:[%s9 + $0xa8] sm:$0xff]
    %v2836 = vld [vmem:[%s9 + $0xb0] sm:$0xff]
    %v2837 = vld [vmem:[%s9 + $0xb8] sm:$0xff]
    %v2838 = vld [vmem:[%s9 + $0xc0] sm:$0xff]
    %v2839 = vld [vmem:[%s9 + $0xc8] sm:$0xff]
    %v2840 = vld [vmem:[%s9 + $0xd0] sm:$0xff]
    %v2841 = vld [vmem:[%s9 + $0xd8] sm:$0xff]
    %v2842 = vld [vmem:[%s9 + $0xe0] sm:$0xff]
    %v2843 = vld [vmem:[%s9 + $0xe8] sm:$0xff]
    %v2844 = vld [vmem:[%s9 + $0xf0] sm:$0xff]
    %v2845 = vld [vmem:[%s9 + $0xf8] sm:$0xff]
    %v2846 = vld [vmem:[%s10] sm:$0x1]
    %v2848 = vperm.slane %v2846, 0
    %2850 = vmatpush.msra.mxu0 %v2829
    %2851 = vmatpush.msra.mxu0 %v2828
    %2852 = vmatpush.msra.mxu0 %v2827
    %2853 = vmatpush.msra.mxu0 %v2826
    %2854 = vmatpush.msra.mxu0 %v2825
    %2855 = vmatpush.msra.mxu0 %v2824
    %2856 = vmatpush.msra.mxu0 %v2823
    %2857 = vmatpush.msra.mxu0 %v2822
    %2858 = vmatpush.msra.mxu0 %v2821
    %2859 = vmatpush.msra.mxu0 %v2820
    %2860 = vmatpush.msra.mxu0 %v2819
    %2861 = vmatpush.msra.mxu0 %v2818
    %2862 = vmatpush.msra.mxu0 %v2817
    %2863 = vmatpush.msra.mxu0 %v2816
    %2864 = vmatpush.msra.mxu0 %v2815
    %2865 = vmatpush.msra.mxu0 %v2814
    %2866 = vmatmul.f32.gmra.mxu0 %v2812
    %v2867 = vpop.f32.mrf.mxu0
    %v2868 = vadd.f32 %v2848, %v2867
    %2869 = vdwg.mxu0
    %2870 = vmatpush.msra.mxu0 %v2845
    %2871 = vmatpush.msra.mxu0 %v2844
    %2872 = vmatpush.msra.mxu0 %v2843
    %2873 = vmatpush.msra.mxu0 %v2842
    %2874 = vmatpush.msra.mxu0 %v2841
    %2875 = vmatpush.msra.mxu0 %v2840
    %2876 = vmatpush.msra.mxu0 %v2839
    %2877 = vmatpush.msra.mxu0 %v2838
    %2878 = vmatpush.msra.mxu0 %v2837
    %2879 = vmatpush.msra.mxu0 %v2836
    %2880 = vmatpush.msra.mxu0 %v2835
    %2881 = vmatpush.msra.mxu0 %v2834
    %2882 = vmatpush.msra.mxu0 %v2833
    %2883 = vmatpush.msra.mxu0 %v2832
    %2884 = vmatpush.msra.mxu0 %v2831
    %2885 = vmatpush.msra.mxu0 %v2830
    %2886 = vmatmul.f32.gmra.mxu0 %v2813
    %v2887 = vpop.f32.mrf.mxu0
    %v2888 = vadd.f32 %v2868, %v2887
    %2889 = vdwg.mxu0
    %v2890 = vmin.f32 %v2888, 20.0
    %v2891 = vmul.f32 %v2890, 1.442695
    %v2892 = vpow.pop %v2891
    %v2893 = vadd.f32 %v2892, 2.0
    %v2894 = vmul.f32 %v2892, %v2893
    %v2895 = vmul.f32 %v2888, %v2894
    %v2896 = vadd.f32 %v2894, 2.0
    %v2897 = vrcp.pop %v2896
    %v2898 = vmul.f32 %v2895, %v2897
    %vm2899 = vcmask 517120
    %2900 = vst.msk [vmem:[#allocation2] sm:$0x3] %vm2899, %v2898
    // Predicated region
    $region46: #{textcnn_cls_forward.1} parent=1 // pred_check
      _
    $region47: #{textcnn_cls_forward.1} parent=1 // pred_check_branch
      %2902 = sbr.rel (0) target = $region49
    $region48: #{textcnn_cls_forward.1} parent=1 // pred_region
      %2904 = vsyncadd [#allocation3], 0
      %s2906 = sshll.u32 [#allocation2], 4
      %s2907 = int_to_ptr.vmem [resolvable:$true] %s2906
      %s2908 = sshll.u32 %s11, 4
      %s2909 = int_to_ptr.hbm [resolvable:$true] %s2908
      %2911 = dma.vmem_to_hbm [thread:$0]  %s2907, 32, %s2909, [#allocation3]
    $region49: #{textcnn_cls_forward.1} parent=1 // pred_fallthru
      _
    // Predicated region
    $region50: #{textcnn_cls_forward.1} parent=1 // pred_check
      _
    $region51: #{textcnn_cls_forward.1} parent=1 // pred_check_branch
      %2913 = sbr.rel (0) target = $region53
    $region52: #{textcnn_cls_forward.1} parent=1 // pred_region
      %2915 = dma.done [#allocation3], 32
    $region53: #{textcnn_cls_forward.1} parent=1 // pred_fallthru
      _
    %2916 = vsyncpa [#allocation3], 1

</llo_original>
